<compile_context>
chip_gen: v5e
topology: v5e:2x2
jax: 0.10.0
libtpu: 0.0.40
codegen_flags: <defaults>
</compile_context>

<pallas_src>
import math

import jax
import jax.numpy as jnp
from jax.experimental import pallas as pl
from jax.experimental.pallas import tpu as pltpu


def _per_kernel(params_ref, x1_ref, x2_ref, out_ref):
    # params_ref: SMEM (3,) -> [c1 = 2*pi/period, c2 = 1/l^2, c3 = sv^2]
    c1 = params_ref[0]
    c2 = params_ref[1]
    c3 = params_ref[2]

    # (tn, 1) - (1, tm) -> (tn, tm) pairwise difference; abs dropped (cos even).
    d = x1_ref[...] - x2_ref[...]
    # sv^2 * exp(-2 sin^2(pi d / p) / l^2)  ==  c3 * exp(c2 * (cos(c1 d) - 1))
    out_ref[...] = c3 * jnp.exp(c2 * (jnp.cos(c1 * d) - 1.0))


def _round_up(v, m):
    return ((v + m - 1) // m) * m


def periodic_kernel(x1, x2, length_scale, signal_variance, period,
                    *, tile_n=512, tile_m=1024):
    """x1: (N,), x2: (M,)  ->  covariance matrix (N, M), float32."""
    x1 = jnp.asarray(x1, jnp.float32).reshape(-1)
    x2 = jnp.asarray(x2, jnp.float32).reshape(-1)
    N = x1.shape[0]
    M = x2.shape[0]

    # Clamp tiles to the (padded) problem size so small inputs are one grid
    # step; sublane dim multiple of 8, lane dim multiple of 128.
    tn = min(tile_n, _round_up(N, 8))
    tm = min(tile_m, _round_up(M, 128))
    Np = _round_up(N, tn)
    Mp = _round_up(M, tm)

    x1_col = jnp.pad(x1, (0, Np - N)).reshape(Np, 1)   # rows  (x1.unsqueeze(1))
    x2_row = jnp.pad(x2, (0, Mp - M)).reshape(1, Mp)   # cols  (x2.unsqueeze(0))

    # Host-precomputed constants: no per-element division / abs / square.
    c1 = 2.0 * math.pi / period
    c2 = 1.0 / (length_scale * length_scale)
    c3 = signal_variance * signal_variance
    params = jnp.array([c1, c2, c3], jnp.float32)

    grid = (Np // tn, Mp // tm)

    out = pl.pallas_call(
        _per_kernel,
        out_shape=jax.ShapeDtypeStruct((Np, Mp), jnp.float32),
        grid_spec=pl.GridSpec(
            grid=grid,
            in_specs=[
                pl.BlockSpec(memory_space=pltpu.SMEM),        # params (3,)
                pl.BlockSpec((tn, 1), lambda i, j: (i, 0)),   # x1 column tile
                pl.BlockSpec((1, tm), lambda i, j: (0, j)),   # x2 row tile
            ],
            out_specs=pl.BlockSpec((tn, tm), lambda i, j: (i, j)),
        ),
        compiler_params=pltpu.CompilerParams(
            dimension_semantics=("parallel", "parallel")),
    )(params, x1_col, x2_row)

    return out[:N, :M]


def periodic_kernel_ref(x1, x2, length_scale, signal_variance, period):
    dist = jnp.abs(x1[:, None] - x2[None, :])
    sin_term = jnp.sin(jnp.pi * dist / period) ** 2
    return (signal_variance ** 2) * jnp.exp(-2.0 * sin_term / (length_scale ** 2))


if __name__ == "__main__":
    key = jax.random.PRNGKey(0)
    k1, k2 = jax.random.split(key)

    # Small 1-D input sets; deliberately NOT tile multiples to exercise the
    # pad-and-trim path.
    N, M = 100, 200
    x1 = jax.random.normal(k1, (N,), jnp.float32) * 2.0
    x2 = jax.random.normal(k2, (M,), jnp.float32) * 2.0

    # Parameters matching nn.Parameter defaults.
    length_scale = 1.0
    signal_variance = 1.0
    period = 1.0

    ref = periodic_kernel_ref(x1, x2, length_scale, signal_variance, period)

    # Default (large-tile) path: single grid step at this size.
    out = periodic_kernel(x1, x2, length_scale, signal_variance, period)
    out = jax.block_until_ready(out)
    assert out.shape == (N, M)
    assert jnp.allclose(out, ref, atol=1e-5, rtol=1e-5), (
        float(jnp.max(jnp.abs(out - ref))))

    # Multi-tile path (several grid steps + padding) to validate the grid logic.
    out2 = periodic_kernel(x1, x2, length_scale, signal_variance, period,
                           tile_n=16, tile_m=128)
    out2 = jax.block_until_ready(out2)
    assert jnp.allclose(out2, ref, atol=1e-5, rtol=1e-5), (
        float(jnp.max(jnp.abs(out2 - ref))))

    print("KERNEL_OK")
</pallas_src>

<mosaic_0001>
module attributes {stable_mosaic.version = 11 : i64} {
  func.func @_per_kernel(%arg0: i32, %arg1: i32, %arg2: memref<3xf32, #tpu.memory_space<smem>>, %arg3: memref<104x1xf32, #tpu.memory_space<vmem>>, %arg4: memref<1x256xf32, #tpu.memory_space<vmem>>, %arg5: memref<104x256xf32, #tpu.memory_space<vmem>>) attributes {dimension_semantics = [#tpu.dimension_semantics<parallel>, #tpu.dimension_semantics<parallel>], iteration_bounds = array<i64: 1, 1>, scalar_prefetch = 0 : i64, scratch_operands = 0 : i64, tpu.core_type = #tpu.core_type<tc>, window_params = [{transform_indices = @transform_0, window_bounds = array<i64: 3>}, {transform_indices = @transform_1, window_bounds = array<i64: 104, 1>}, {transform_indices = @transform_2, window_bounds = array<i64: 1, 256>}, {transform_indices = @transform_3, window_bounds = array<i64: 104, 256>}]} {
    %c0 = arith.constant 0 : index
    %0 = memref.load %arg2[%c0] : memref<3xf32, #tpu.memory_space<smem>>
    %c1 = arith.constant 1 : index
    %1 = memref.load %arg2[%c1] : memref<3xf32, #tpu.memory_space<smem>>
    %c2 = arith.constant 2 : index
    %2 = memref.load %arg2[%c2] : memref<3xf32, #tpu.memory_space<smem>>
    %c0_0 = arith.constant 0 : index
    %c0_1 = arith.constant 0 : index
    %3 = vector.load %arg3[%c0_0, %c0_1] : memref<104x1xf32, #tpu.memory_space<vmem>>, vector<104x1xf32>
    %c0_2 = arith.constant 0 : index
    %c0_3 = arith.constant 0 : index
    %4 = vector.load %arg4[%c0_2, %c0_3] : memref<1x256xf32, #tpu.memory_space<vmem>>, vector<1x256xf32>
    %5 = vector.broadcast %3 : vector<104x1xf32> to vector<104x256xf32>
    %6 = vector.broadcast %4 : vector<1x256xf32> to vector<104x256xf32>
    %7 = arith.subf %5, %6 : vector<104x256xf32>
    %8 = vector.broadcast %0 : f32 to vector<104x256xf32>
    %9 = arith.mulf %8, %7 : vector<104x256xf32>
    %10 = math.cos %9 : vector<104x256xf32>
    %cst = arith.constant 1.000000e+00 : f32
    %11 = vector.broadcast %cst : f32 to vector<104x256xf32>
    %12 = arith.subf %10, %11 : vector<104x256xf32>
    %13 = vector.broadcast %1 : f32 to vector<104x256xf32>
    %14 = arith.mulf %13, %12 : vector<104x256xf32>
    %15 = math.exp %14 : vector<104x256xf32>
    %16 = vector.broadcast %2 : f32 to vector<104x256xf32>
    %17 = arith.mulf %16, %15 : vector<104x256xf32>
    %c0_4 = arith.constant 0 : index
    %c0_5 = arith.constant 0 : index
    %18 = vector.load %arg5[%c0_4, %c0_5] : memref<104x256xf32, #tpu.memory_space<vmem>>, vector<104x256xf32>
    tpu.vector_store %arg5[%c0_4, %c0_5], %17 {strides = array<i32>} : memref<104x256xf32, #tpu.memory_space<vmem>>, vector<104x256xf32>,
    return
  }
  func.func @transform_0(%arg0: i32, %arg1: i32) -> i32 {
    %c0_i32 = arith.constant 0 : i32
    %c0_i32_0 = arith.constant 0 : i32
    return %c0_i32 : i32
  }
  func.func @transform_1(%arg0: i32, %arg1: i32) -> (i32, i32) {
    %c0_i32 = arith.constant 0 : i32
    %c0_i32_0 = arith.constant 0 : i32
    return %arg0, %c0_i32 : i32, i32
  }
  func.func @transform_2(%arg0: i32, %arg1: i32) -> (i32, i32) {
    %c0_i32 = arith.constant 0 : i32
    %c0_i32_0 = arith.constant 0 : i32
    return %c0_i32, %arg1 : i32, i32
  }
  func.func @transform_3(%arg0: i32, %arg1: i32) -> (i32, i32) {
    %c0_i32 = arith.constant 0 : i32
    return %arg0, %arg1 : i32, i32
  }
}

</mosaic_0001>

<llo_original>
// kernel: tpu_custom_call.1
$region0: #{tpu_custom_call.1}
  #allocation0 [shape = 'u32[]', space=smem, size = 0x4, offset = 0x4, fixed_abs, tag = 'smem constant byte address 0x4 - core index']
  #allocation1 [shape = 'u32[72,128]{1,0:T(1,128)}', space=vmem, size = 0x9000, scoped, tag = 'internal scratch']
  %s0 = inlined_call_operand.vmem [shape: f32[3], index: 0, kind: input, shape index: {}]
  %s1 = inlined_call_operand.vmem [shape: f32[104,1], index: 1, kind: input, shape index: {}]
  %s2 = inlined_call_operand.vmem [shape: f32[1,256], index: 2, kind: input, shape index: {}]
  %s3 = inlined_call_operand.hbm [shape: f32[104,256], index: 3, kind: output, shape index: {}]
  %s4 = sld [smem:[#allocation0]]
  $region26: #{tpu_custom_call.1} parent=0
    _
  %s6 = ssub.s32 1, %s4
  %s7 = scalar_select 0, %s6, %s4
  $region1: #{tpu_custom_call.1} parent=0
    #allocation2 [shape = 'u8[512]{0}', space=smem, size = 0x200, scoped, tag = 'input window, operand 0, single buffered']
    #allocation3 [shape = 's32[1]{0}', space=sflag, size = 0x4, scoped, tag = 'scoped memory for tpu_custom_call.1']
    #allocation4 [shape = 's32[1]{0}', space=sflag, size = 0x4, scoped, tag = 'scoped memory for tpu_custom_call.1']
    #allocation5 [shape = 'u8[106496]{0}', space=vmem, size = 0x1a000, scoped, tag = 'output window, operand 0, single buffered']
    %8 = vsyncpa [#allocation4], 0
    %9 = vsyncpa [#allocation3], 0
    // Predicated region
    $region2: #{tpu_custom_call.1} parent=1 // pred_check
      _
    $region3: #{tpu_custom_call.1} parent=1 // pred_check_branch
      %11 = sbr.rel (0) target = $region5
    $region4: #{tpu_custom_call.1} parent=1 // pred_region
      %13 = vsyncadd [#allocation4], 0
      %s15 = sshll.u32 %s0, 4
      %s16 = int_to_ptr.vmem [resolvable:$true] %s15
      %18 = dma.vmem_to_smem %s16, 16, [#allocation2], [#allocation4]
    $region5: #{tpu_custom_call.1} parent=1 // pred_fallthru
      _
    // Predicated region
    $region6: #{tpu_custom_call.1} parent=1 // pred_check
      _
    $region7: #{tpu_custom_call.1} parent=1 // pred_check_branch
      %20 = sbr.rel (0) target = $region9
    $region8: #{tpu_custom_call.1} parent=1 // pred_region
      _
    $region9: #{tpu_custom_call.1} parent=1 // pred_fallthru
      _
    // Predicated region
    $region10: #{tpu_custom_call.1} parent=1 // pred_check
      _
    $region11: #{tpu_custom_call.1} parent=1 // pred_check_branch
      %22 = sbr.rel (0) target = $region13
    $region12: #{tpu_custom_call.1} parent=1 // pred_region
      _
    $region13: #{tpu_custom_call.1} parent=1 // pred_fallthru
      _
    // Predicated region
    $region14: #{tpu_custom_call.1} parent=1 // pred_check
      _
    $region15: #{tpu_custom_call.1} parent=1 // pred_check_branch
      %24 = sbr.rel (0) target = $region17
    $region16: #{tpu_custom_call.1} parent=1 // pred_region
      %26 = dma.done [#allocation4], 16
    $region17: #{tpu_custom_call.1} parent=1 // pred_fallthru
      _
    %27 = sfence
    %s28 = sld [smem:[#allocation2]]
    %s29 = sld [smem:[#allocation2 + $0x1]]
    %s30 = sld [smem:[#allocation2 + $0x2]]
    %v31 = vld [vmem:[%s1] sm:$0xff]
    %v32 = vld [vmem:[%s1 + $0x8] sm:$0xff]
    %v33 = vld [vmem:[%s1 + $0x10] sm:$0xff]
    %v34 = vld [vmem:[%s1 + $0x18] sm:$0xff]
    %v35 = vld [vmem:[%s1 + $0x20] sm:$0xff]
    %v36 = vld [vmem:[%s1 + $0x28] sm:$0xff]
    %v37 = vld [vmem:[%s1 + $0x30] sm:$0xff]
    %v38 = vld [vmem:[%s1 + $0x38] sm:$0xff]
    %v39 = vld [vmem:[%s1 + $0x40] sm:$0xff]
    %v40 = vld [vmem:[%s1 + $0x48] sm:$0xff]
    %v41 = vld [vmem:[%s1 + $0x50] sm:$0xff]
    %v42 = vld [vmem:[%s1 + $0x58] sm:$0xff]
    %v43 = vld [vmem:[%s1 + $0x60] sm:$0xff]
    %v44 = vld [vmem:[%s2] sm:$0x3]
    %46 = vset.pattern.permute.xlu0 0
    %47 = vperm.xlu0 %46, %v31
    %v48 = vpop.permute.xlu0 %47
    %51 = vset.pattern.permute.xlu0 0
    %52 = vperm.xlu0 %51, %v32
    %v53 = vpop.permute.xlu0 %52
    %56 = vset.pattern.permute.xlu0 0
    %57 = vperm.xlu0 %56, %v33
    %v58 = vpop.permute.xlu0 %57
    %61 = vset.pattern.permute.xlu0 0
    %62 = vperm.xlu0 %61, %v34
    %v63 = vpop.permute.xlu0 %62
    %66 = vset.pattern.permute.xlu0 0
    %67 = vperm.xlu0 %66, %v35
    %v68 = vpop.permute.xlu0 %67
    %71 = vset.pattern.permute.xlu0 0
    %72 = vperm.xlu0 %71, %v36
    %v73 = vpop.permute.xlu0 %72
    %76 = vset.pattern.permute.xlu0 0
    %77 = vperm.xlu0 %76, %v37
    %v78 = vpop.permute.xlu0 %77
    %81 = vset.pattern.permute.xlu0 0
    %82 = vperm.xlu0 %81, %v38
    %v83 = vpop.permute.xlu0 %82
    %86 = vset.pattern.permute.xlu0 0
    %87 = vperm.xlu0 %86, %v39
    %v88 = vpop.permute.xlu0 %87
    %91 = vset.pattern.permute.xlu0 0
    %92 = vperm.xlu0 %91, %v40
    %v93 = vpop.permute.xlu0 %92
    %96 = vset.pattern.permute.xlu0 0
    %97 = vperm.xlu0 %96, %v41
    %v98 = vpop.permute.xlu0 %97
    %101 = vset.pattern.permute.xlu0 0
    %102 = vperm.xlu0 %101, %v42
    %v103 = vpop.permute.xlu0 %102
    %106 = vset.pattern.permute.xlu0 0
    %107 = vperm.xlu0 %106, %v43
    %v108 = vpop.permute.xlu0 %107
    %v111 = vperm.slane %v44, 0
    %v112 = vperm.slane %v44, 1
    %v115 = vsub.f32 %v48, %v111
    %v116 = vsub.f32 %v48, %v112
    %v117 = vsub.f32 %v53, %v111
    %v118 = vsub.f32 %v53, %v112
    %v119 = vsub.f32 %v58, %v111
    %v120 = vsub.f32 %v58, %v112
    %v121 = vsub.f32 %v63, %v111
    %v122 = vsub.f32 %v63, %v112
    %v123 = vsub.f32 %v68, %v111
    %v124 = vsub.f32 %v68, %v112
    %v125 = vsub.f32 %v73, %v111
    %v126 = vsub.f32 %v73, %v112
    %v127 = vsub.f32 %v78, %v111
    %v128 = vsub.f32 %v78, %v112
    %v129 = vsub.f32 %v83, %v111
    %v130 = vsub.f32 %v83, %v112
    %v131 = vsub.f32 %v88, %v111
    %v132 = vsub.f32 %v88, %v112
    %v133 = vsub.f32 %v93, %v111
    %v134 = vsub.f32 %v93, %v112
    %v135 = vsub.f32 %v98, %v111
    %v136 = vsub.f32 %v98, %v112
    %v137 = vsub.f32 %v103, %v111
    %v138 = vsub.f32 %v103, %v112
    %v139 = vsub.f32 %v108, %v111
    %v140 = vsub.f32 %v108, %v112
    %v141 = vstv %s28
    %v142 = vmul.f32 %v141, %v115
    %v143 = vmul.f32 %v141, %v116
    %v144 = vmul.f32 %v141, %v117
    %v145 = vmul.f32 %v141, %v118
    %v146 = vmul.f32 %v141, %v119
    %v147 = vmul.f32 %v141, %v120
    %v148 = vmul.f32 %v141, %v121
    %v149 = vmul.f32 %v141, %v122
    %v150 = vmul.f32 %v141, %v123
    %v151 = vmul.f32 %v141, %v124
    %v152 = vmul.f32 %v141, %v125
    %v153 = vmul.f32 %v141, %v126
    %v154 = vmul.f32 %v141, %v127
    %v155 = vmul.f32 %v141, %v128
    %v156 = vmul.f32 %v141, %v129
    %v157 = vmul.f32 %v141, %v130
    %v158 = vmul.f32 %v141, %v131
    %v159 = vmul.f32 %v141, %v132
    %v160 = vmul.f32 %v141, %v133
    %v161 = vmul.f32 %v141, %v134
    %v162 = vmul.f32 %v141, %v135
    %v163 = vmul.f32 %v141, %v136
    %v164 = vmul.f32 %v141, %v137
    %v165 = vmul.f32 %v141, %v138
    %v166 = vmul.f32 %v141, %v139
    %v167 = vmul.f32 %v141, %v140
    %v168 = vand.u32 2147483647, %v142
    %vm169 = vcmp.le.f32.partialorder %v168, 0.7853982
    %vm170 = vcmp.lt.s32.totalorder %v142, 0
    %v171 = vand.u32 %v142, 2139095040
    %v172 = vshrl.u32 %v171, 23
    %v173 = vsub.s32 %v172, 127
    %v174 = vand.u32 2147483647, %v142
    %v175 = vand.u32 %v174, 8388607
    %v176 = vor.u32 %v175, 8388608
    %v177 = vsub.s32 0, %v176
    %v178 = vadd.s32 %v173, 1
    %vm179 = vcmp.gt.s32.totalorder %v178, 0
    %v180 = vsel %vm179, %v178, 0
    %v181 = vshrl.u32 %v180, 5
    %v182 = vand.u32 %v180, 31
    %v183 = vsub.s32 32, %v182
    %v184 = vshrl.u32 683565275, %v183
    %v185 = vshll.u32 683565275, %v182
    %v186 = vshrl.u32 2475754826, %v183
    %v187 = vor.u32 %v185, %v186
    %v188 = vshll.u32 2475754826, %v182
    %v189 = vshrl.u32 2131351028, %v183
    %v190 = vor.u32 %v188, %v189
    %v191 = vshll.u32 2131351028, %v182
    %v192 = vshrl.u32 2102212464, %v183
    %v193 = vor.u32 %v191, %v192
    %v194 = vshll.u32 2102212464, %v182
    %v195 = vshrl.u32 920167782, %v183
    %v196 = vor.u32 %v194, %v195
    %v197 = vshll.u32 920167782, %v182
    %v198 = vshrl.u32 1326507024, %v183
    %v199 = vor.u32 %v197, %v198
    %vm200 = vcmp.lt.s32.totalorder %v181, 1
    %vm201 = vcmp.lt.s32.totalorder %v181, 2
    %vm202 = vcmp.lt.s32.totalorder %v181, 3
    %vm203 = vcmp.lt.s32.totalorder %v181, 4
    %v204 = vsel %vm200, %v184, %v187
    %v205 = vsel %vm203, %v193, 2102212464
    %v206 = vsel %vm202, %v190, %v205
    %v207 = vsel %vm201, %v204, %v206
    %v208 = vsel %vm200, %v187, %v190
    %v209 = vsel %vm203, %v196, 920167782
    %v210 = vsel %vm202, %v193, %v209
    %v211 = vsel %vm201, %v208, %v210
    %v212 = vsel %vm200, %v190, %v193
    %v213 = vsel %vm203, %v199, 1326507024
    %v214 = vsel %vm202, %v196, %v213
    %v215 = vsel %vm201, %v212, %v214
    %v216 = vshll.u32 %v176, 8
    %v217 = vand.u32 %v216, 65535
    %v218 = vshrl.u32 %v216, 16
    %v219 = vand.u32 %v215, 65535
    %v220 = vshrl.u32 %v215, 16
    %v221 = vmul.u32 %v217, %v219
    %v222 = vmul.u32 %v217, %v220
    %v223 = vmul.u32 %v218, %v219
    %v224 = vmul.u32 %v218, %v220
    %v225 = vshll.u32 %v222, 16
    %v226 = vshrl.u32 %v222, 16
    %v227 = vshll.u32 %v223, 16
    %v228 = vshrl.u32 %v223, 16
    %vm229 = vc.u32 %v221, %v225
    %v230 = vsel %vm229, 1, 0
    %v231 = vadd.s32 %v221, %v225
    %v232 = vadd.s32 %v224, %v230
    %vm233 = vc.u32 %v231, %v227
    %v234 = vsel %vm233, 1, 0
    %v235 = vadd.s32 %v231, %v227
    %v236 = vadd.s32 %v232, %v234
    %v237 = vadd.s32 %v236, %v226
    %v238 = vadd.s32 %v237, %v228
    %v239 = vand.u32 %v216, 65535
    %v240 = vshrl.u32 %v216, 16
    %v241 = vand.u32 %v211, 65535
    %v242 = vshrl.u32 %v211, 16
    %v243 = vmul.u32 %v239, %v241
    %v244 = vmul.u32 %v239, %v242
    %v245 = vmul.u32 %v240, %v241
    %v246 = vmul.u32 %v240, %v242
    %v247 = vshll.u32 %v244, 16
    %v248 = vshrl.u32 %v244, 16
    %v249 = vshll.u32 %v245, 16
    %v250 = vshrl.u32 %v245, 16
    %vm251 = vc.u32 %v243, %v247
    %v252 = vsel %vm251, 1, 0
    %v253 = vadd.s32 %v243, %v247
    %v254 = vadd.s32 %v246, %v252
    %vm255 = vc.u32 %v253, %v249
    %v256 = vsel %vm255, 1, 0
    %v257 = vadd.s32 %v253, %v249
    %v258 = vadd.s32 %v254, %v256
    %v259 = vadd.s32 %v258, %v248
    %v260 = vadd.s32 %v259, %v250
    %v261 = vmul.u32 %v216, %v207
    %v262 = vadd.s32 %v238, %v257
    %vm263 = vc.u32 %v238, %v257
    %v264 = vadd.s32 %v260, 1
    %v265 = vsel %vm263, %v264, %v260
    %v266 = vadd.s32 %v261, %v265
    %v267 = vadd.s32 %v266, 536870912
    %v268 = vshrl.u32 %v267, 30
    %v269 = vshll.u32 %v268, 30
    %v270 = vsub.s32 %v266, %v269
    %vm271 = vcmp.lt.s32.totalorder %v270, 0
    %v272 = vsub.s32 0, %v270
    %v273 = vsel %vm271, %v272, %v270
    %v274 = vclz %v273
    %v275 = vsub.s32 %v274, 2
    %vm276 = vcmp.gt.s32.totalorder 0, %v275
    %v277 = vsel %vm276, 0, %v275
    %v278 = vsub.s32 32, %v277
    %v279 = vshll.u32 %v270, %v277
    %v280 = vshrl.u32 %v262, %v278
    %v281 = vor.u32 %v279, %v280
    %v282 = vsub.s32 4294967266, %v277
    %v283 = vadd.s32 %v282, 127
    %v284 = vshll.u32 %v283, 23
    %v285 = vor.u32 4788187, %v284
    %v286 = vand.u32 2147483647, %v285
    %v288 = vcvt.s32.f32 %v281
    %v289 = vmul.f32 %v288, %v286
    %v290 = vxor.u32 %v289, 2147483648
    %v291 = vsel %vm170, %v290, %v289
    %v292 = vsub.s32 4, %v268
    %v293 = vsel %vm170, %v292, %v268
    %v294 = vsel %vm169, %v142, %v291
    %v295 = vsel %vm169, 0, %v293
    %v296 = vmul.f32 %v294, %v294
    %v297 = vmul.f32 %v296, -0.001358992
    %v298 = vadd.f32 %v297, 0.041655596
    %v299 = vmul.f32 %v296, %v298
    %v300 = vadd.f32 %v299, -0.4999988
    %v301 = vmul.f32 %v296, %v300
    %v302 = vadd.f32 1.0, %v301
    %v303 = vmul.f32 %v294, %v294
    %v304 = vmul.f32 %v303, -0.00019511016
    %v305 = vadd.f32 %v304, 0.008332121
    %v306 = vmul.f32 %v303, %v305
    %v307 = vadd.f32 %v306, -0.16666654
    %v308 = vmul.f32 %v303, %v307
    %v309 = vadd.f32 %v308, 1.0
    %v310 = vmul.f32 %v309, %v294
    %vm311 = vweird.f32 %v142
    %v312 = vand.u32 %v295, 3
    %vm313 = vcmp.lt.s32.totalorder %v312, 2
    %vm314 = vcmp.eq.s32.totalorder %v312, 0
    %v315 = vxor.u32 %v310, 2147483648
    %v316 = vsel %vm314, %v302, %v315
    %vm317 = vcmp.eq.s32.totalorder %v312, 2
    %v318 = vxor.u32 %v302, 2147483648
    %v319 = vsel %vm317, %v318, %v310
    %v320 = vsel %vm313, %v316, %v319
    %v321 = vsel %vm311, nan, %v320
    %v322 = vand.u32 2147483647, %v143
    %vm323 = vcmp.le.f32.partialorder %v322, 0.7853982
    %vm324 = vcmp.lt.s32.totalorder %v143, 0
    %v325 = vand.u32 %v143, 2139095040
    %v326 = vshrl.u32 %v325, 23
    %v327 = vsub.s32 %v326, 127
    %v328 = vand.u32 2147483647, %v143
    %v329 = vand.u32 %v328, 8388607
    %v330 = vor.u32 %v329, 8388608
    %v331 = vsub.s32 0, %v330
    %v332 = vadd.s32 %v327, 1
    %vm333 = vcmp.gt.s32.totalorder %v332, 0
    %v334 = vsel %vm333, %v332, 0
    %v335 = vshrl.u32 %v334, 5
    %v336 = vand.u32 %v334, 31
    %v337 = vsub.s32 32, %v336
    %v338 = vshrl.u32 683565275, %v337
    %v339 = vshll.u32 683565275, %v336
    %v340 = vshrl.u32 2475754826, %v337
    %v341 = vor.u32 %v339, %v340
    %v342 = vshll.u32 2475754826, %v336
    %v343 = vshrl.u32 2131351028, %v337
    %v344 = vor.u32 %v342, %v343
    %v345 = vshll.u32 2131351028, %v336
    %v346 = vshrl.u32 2102212464, %v337
    %v347 = vor.u32 %v345, %v346
    %v348 = vshll.u32 2102212464, %v336
    %v349 = vshrl.u32 920167782, %v337
    %v350 = vor.u32 %v348, %v349
    %v351 = vshll.u32 920167782, %v336
    %v352 = vshrl.u32 1326507024, %v337
    %v353 = vor.u32 %v351, %v352
    %vm354 = vcmp.lt.s32.totalorder %v335, 1
    %vm355 = vcmp.lt.s32.totalorder %v335, 2
    %vm356 = vcmp.lt.s32.totalorder %v335, 3
    %vm357 = vcmp.lt.s32.totalorder %v335, 4
    %v358 = vsel %vm354, %v338, %v341
    %v359 = vsel %vm357, %v347, 2102212464
    %v360 = vsel %vm356, %v344, %v359
    %v361 = vsel %vm355, %v358, %v360
    %v362 = vsel %vm354, %v341, %v344
    %v363 = vsel %vm357, %v350, 920167782
    %v364 = vsel %vm356, %v347, %v363
    %v365 = vsel %vm355, %v362, %v364
    %v366 = vsel %vm354, %v344, %v347
    %v367 = vsel %vm357, %v353, 1326507024
    %v368 = vsel %vm356, %v350, %v367
    %v369 = vsel %vm355, %v366, %v368
    %v370 = vshll.u32 %v330, 8
    %v371 = vand.u32 %v370, 65535
    %v372 = vshrl.u32 %v370, 16
    %v373 = vand.u32 %v369, 65535
    %v374 = vshrl.u32 %v369, 16
    %v375 = vmul.u32 %v371, %v373
    %v376 = vmul.u32 %v371, %v374
    %v377 = vmul.u32 %v372, %v373
    %v378 = vmul.u32 %v372, %v374
    %v379 = vshll.u32 %v376, 16
    %v380 = vshrl.u32 %v376, 16
    %v381 = vshll.u32 %v377, 16
    %v382 = vshrl.u32 %v377, 16
    %vm383 = vc.u32 %v375, %v379
    %v384 = vsel %vm383, 1, 0
    %v385 = vadd.s32 %v375, %v379
    %v386 = vadd.s32 %v378, %v384
    %vm387 = vc.u32 %v385, %v381
    %v388 = vsel %vm387, 1, 0
    %v389 = vadd.s32 %v385, %v381
    %v390 = vadd.s32 %v386, %v388
    %v391 = vadd.s32 %v390, %v380
    %v392 = vadd.s32 %v391, %v382
    %v393 = vand.u32 %v370, 65535
    %v394 = vshrl.u32 %v370, 16
    %v395 = vand.u32 %v365, 65535
    %v396 = vshrl.u32 %v365, 16
    %v397 = vmul.u32 %v393, %v395
    %v398 = vmul.u32 %v393, %v396
    %v399 = vmul.u32 %v394, %v395
    %v400 = vmul.u32 %v394, %v396
    %v401 = vshll.u32 %v398, 16
    %v402 = vshrl.u32 %v398, 16
    %v403 = vshll.u32 %v399, 16
    %v404 = vshrl.u32 %v399, 16
    %vm405 = vc.u32 %v397, %v401
    %v406 = vsel %vm405, 1, 0
    %v407 = vadd.s32 %v397, %v401
    %v408 = vadd.s32 %v400, %v406
    %vm409 = vc.u32 %v407, %v403
    %v410 = vsel %vm409, 1, 0
    %v411 = vadd.s32 %v407, %v403
    %v412 = vadd.s32 %v408, %v410
    %v413 = vadd.s32 %v412, %v402
    %v414 = vadd.s32 %v413, %v404
    %v415 = vmul.u32 %v370, %v361
    %v416 = vadd.s32 %v392, %v411
    %vm417 = vc.u32 %v392, %v411
    %v418 = vadd.s32 %v414, 1
    %v419 = vsel %vm417, %v418, %v414
    %v420 = vadd.s32 %v415, %v419
    %v421 = vadd.s32 %v420, 536870912
    %v422 = vshrl.u32 %v421, 30
    %v423 = vshll.u32 %v422, 30
    %v424 = vsub.s32 %v420, %v423
    %vm425 = vcmp.lt.s32.totalorder %v424, 0
    %v426 = vsub.s32 0, %v424
    %v427 = vsel %vm425, %v426, %v424
    %v428 = vclz %v427
    %v429 = vsub.s32 %v428, 2
    %vm430 = vcmp.gt.s32.totalorder 0, %v429
    %v431 = vsel %vm430, 0, %v429
    %v432 = vsub.s32 32, %v431
    %v433 = vshll.u32 %v424, %v431
    %v434 = vshrl.u32 %v416, %v432
    %v435 = vor.u32 %v433, %v434
    %v436 = vsub.s32 4294967266, %v431
    %v437 = vadd.s32 %v436, 127
    %v438 = vshll.u32 %v437, 23
    %v439 = vor.u32 4788187, %v438
    %v440 = vand.u32 2147483647, %v439
    %v442 = vcvt.s32.f32 %v435
    %v443 = vmul.f32 %v442, %v440
    %v444 = vxor.u32 %v443, 2147483648
    %v445 = vsel %vm324, %v444, %v443
    %v446 = vsub.s32 4, %v422
    %v447 = vsel %vm324, %v446, %v422
    %v448 = vsel %vm323, %v143, %v445
    %v449 = vsel %vm323, 0, %v447
    %v450 = vmul.f32 %v448, %v448
    %v451 = vmul.f32 %v450, -0.001358992
    %v452 = vadd.f32 %v451, 0.041655596
    %v453 = vmul.f32 %v450, %v452
    %v454 = vadd.f32 %v453, -0.4999988
    %v455 = vmul.f32 %v450, %v454
    %v456 = vadd.f32 1.0, %v455
    %v457 = vmul.f32 %v448, %v448
    %v458 = vmul.f32 %v457, -0.00019511016
    %v459 = vadd.f32 %v458, 0.008332121
    %v460 = vmul.f32 %v457, %v459
    %v461 = vadd.f32 %v460, -0.16666654
    %v462 = vmul.f32 %v457, %v461
    %v463 = vadd.f32 %v462, 1.0
    %v464 = vmul.f32 %v463, %v448
    %vm465 = vweird.f32 %v143
    %v466 = vand.u32 %v449, 3
    %vm467 = vcmp.lt.s32.totalorder %v466, 2
    %vm468 = vcmp.eq.s32.totalorder %v466, 0
    %v469 = vxor.u32 %v464, 2147483648
    %v470 = vsel %vm468, %v456, %v469
    %vm471 = vcmp.eq.s32.totalorder %v466, 2
    %v472 = vxor.u32 %v456, 2147483648
    %v473 = vsel %vm471, %v472, %v464
    %v474 = vsel %vm467, %v470, %v473
    %v475 = vsel %vm465, nan, %v474
    %v476 = vand.u32 2147483647, %v144
    %vm477 = vcmp.le.f32.partialorder %v476, 0.7853982
    %vm478 = vcmp.lt.s32.totalorder %v144, 0
    %v479 = vand.u32 %v144, 2139095040
    %v480 = vshrl.u32 %v479, 23
    %v481 = vsub.s32 %v480, 127
    %v482 = vand.u32 2147483647, %v144
    %v483 = vand.u32 %v482, 8388607
    %v484 = vor.u32 %v483, 8388608
    %v485 = vsub.s32 0, %v484
    %v486 = vadd.s32 %v481, 1
    %vm487 = vcmp.gt.s32.totalorder %v486, 0
    %v488 = vsel %vm487, %v486, 0
    %v489 = vshrl.u32 %v488, 5
    %v490 = vand.u32 %v488, 31
    %v491 = vsub.s32 32, %v490
    %v492 = vshrl.u32 683565275, %v491
    %v493 = vshll.u32 683565275, %v490
    %v494 = vshrl.u32 2475754826, %v491
    %v495 = vor.u32 %v493, %v494
    %v496 = vshll.u32 2475754826, %v490
    %v497 = vshrl.u32 2131351028, %v491
    %v498 = vor.u32 %v496, %v497
    %v499 = vshll.u32 2131351028, %v490
    %v500 = vshrl.u32 2102212464, %v491
    %v501 = vor.u32 %v499, %v500
    %v502 = vshll.u32 2102212464, %v490
    %v503 = vshrl.u32 920167782, %v491
    %v504 = vor.u32 %v502, %v503
    %v505 = vshll.u32 920167782, %v490
    %v506 = vshrl.u32 1326507024, %v491
    %v507 = vor.u32 %v505, %v506
    %vm508 = vcmp.lt.s32.totalorder %v489, 1
    %vm509 = vcmp.lt.s32.totalorder %v489, 2
    %vm510 = vcmp.lt.s32.totalorder %v489, 3
    %vm511 = vcmp.lt.s32.totalorder %v489, 4
    %v512 = vsel %vm508, %v492, %v495
    %v513 = vsel %vm511, %v501, 2102212464
    %v514 = vsel %vm510, %v498, %v513
    %v515 = vsel %vm509, %v512, %v514
    %v516 = vsel %vm508, %v495, %v498
    %v517 = vsel %vm511, %v504, 920167782
    %v518 = vsel %vm510, %v501, %v517
    %v519 = vsel %vm509, %v516, %v518
    %v520 = vsel %vm508, %v498, %v501
    %v521 = vsel %vm511, %v507, 1326507024
    %v522 = vsel %vm510, %v504, %v521
    %v523 = vsel %vm509, %v520, %v522
    %v524 = vshll.u32 %v484, 8
    %v525 = vand.u32 %v524, 65535
    %v526 = vshrl.u32 %v524, 16
    %v527 = vand.u32 %v523, 65535
    %v528 = vshrl.u32 %v523, 16
    %v529 = vmul.u32 %v525, %v527
    %v530 = vmul.u32 %v525, %v528
    %v531 = vmul.u32 %v526, %v527
    %v532 = vmul.u32 %v526, %v528
    %v533 = vshll.u32 %v530, 16
    %v534 = vshrl.u32 %v530, 16
    %v535 = vshll.u32 %v531, 16
    %v536 = vshrl.u32 %v531, 16
    %vm537 = vc.u32 %v529, %v533
    %v538 = vsel %vm537, 1, 0
    %v539 = vadd.s32 %v529, %v533
    %v540 = vadd.s32 %v532, %v538
    %vm541 = vc.u32 %v539, %v535
    %v542 = vsel %vm541, 1, 0
    %v543 = vadd.s32 %v539, %v535
    %v544 = vadd.s32 %v540, %v542
    %v545 = vadd.s32 %v544, %v534
    %v546 = vadd.s32 %v545, %v536
    %v547 = vand.u32 %v524, 65535
    %v548 = vshrl.u32 %v524, 16
    %v549 = vand.u32 %v519, 65535
    %v550 = vshrl.u32 %v519, 16
    %v551 = vmul.u32 %v547, %v549
    %v552 = vmul.u32 %v547, %v550
    %v553 = vmul.u32 %v548, %v549
    %v554 = vmul.u32 %v548, %v550
    %v555 = vshll.u32 %v552, 16
    %v556 = vshrl.u32 %v552, 16
    %v557 = vshll.u32 %v553, 16
    %v558 = vshrl.u32 %v553, 16
    %vm559 = vc.u32 %v551, %v555
    %v560 = vsel %vm559, 1, 0
    %v561 = vadd.s32 %v551, %v555
    %v562 = vadd.s32 %v554, %v560
    %vm563 = vc.u32 %v561, %v557
    %v564 = vsel %vm563, 1, 0
    %v565 = vadd.s32 %v561, %v557
    %v566 = vadd.s32 %v562, %v564
    %v567 = vadd.s32 %v566, %v556
    %v568 = vadd.s32 %v567, %v558
    %v569 = vmul.u32 %v524, %v515
    %v570 = vadd.s32 %v546, %v565
    %vm571 = vc.u32 %v546, %v565
    %v572 = vadd.s32 %v568, 1
    %v573 = vsel %vm571, %v572, %v568
    %v574 = vadd.s32 %v569, %v573
    %v575 = vadd.s32 %v574, 536870912
    %v576 = vshrl.u32 %v575, 30
    %v577 = vshll.u32 %v576, 30
    %v578 = vsub.s32 %v574, %v577
    %vm579 = vcmp.lt.s32.totalorder %v578, 0
    %v580 = vsub.s32 0, %v578
    %v581 = vsel %vm579, %v580, %v578
    %v582 = vclz %v581
    %v583 = vsub.s32 %v582, 2
    %vm584 = vcmp.gt.s32.totalorder 0, %v583
    %v585 = vsel %vm584, 0, %v583
    %v586 = vsub.s32 32, %v585
    %v587 = vshll.u32 %v578, %v585
    %v588 = vshrl.u32 %v570, %v586
    %v589 = vor.u32 %v587, %v588
    %v590 = vsub.s32 4294967266, %v585
    %v591 = vadd.s32 %v590, 127
    %v592 = vshll.u32 %v591, 23
    %v593 = vor.u32 4788187, %v592
    %v594 = vand.u32 2147483647, %v593
    %v596 = vcvt.s32.f32 %v589
    %v597 = vmul.f32 %v596, %v594
    %v598 = vxor.u32 %v597, 2147483648
    %v599 = vsel %vm478, %v598, %v597
    %v600 = vsub.s32 4, %v576
    %v601 = vsel %vm478, %v600, %v576
    %v602 = vsel %vm477, %v144, %v599
    %v603 = vsel %vm477, 0, %v601
    %v604 = vmul.f32 %v602, %v602
    %v605 = vmul.f32 %v604, -0.001358992
    %v606 = vadd.f32 %v605, 0.041655596
    %v607 = vmul.f32 %v604, %v606
    %v608 = vadd.f32 %v607, -0.4999988
    %v609 = vmul.f32 %v604, %v608
    %v610 = vadd.f32 1.0, %v609
    %v611 = vmul.f32 %v602, %v602
    %v612 = vmul.f32 %v611, -0.00019511016
    %v613 = vadd.f32 %v612, 0.008332121
    %v614 = vmul.f32 %v611, %v613
    %v615 = vadd.f32 %v614, -0.16666654
    %v616 = vmul.f32 %v611, %v615
    %v617 = vadd.f32 %v616, 1.0
    %v618 = vmul.f32 %v617, %v602
    %vm619 = vweird.f32 %v144
    %v620 = vand.u32 %v603, 3
    %vm621 = vcmp.lt.s32.totalorder %v620, 2
    %vm622 = vcmp.eq.s32.totalorder %v620, 0
    %v623 = vxor.u32 %v618, 2147483648
    %v624 = vsel %vm622, %v610, %v623
    %vm625 = vcmp.eq.s32.totalorder %v620, 2
    %v626 = vxor.u32 %v610, 2147483648
    %v627 = vsel %vm625, %v626, %v618
    %v628 = vsel %vm621, %v624, %v627
    %v629 = vsel %vm619, nan, %v628
    %v630 = vand.u32 2147483647, %v145
    %vm631 = vcmp.le.f32.partialorder %v630, 0.7853982
    %vm632 = vcmp.lt.s32.totalorder %v145, 0
    %v633 = vand.u32 %v145, 2139095040
    %v634 = vshrl.u32 %v633, 23
    %v635 = vsub.s32 %v634, 127
    %v636 = vand.u32 2147483647, %v145
    %v637 = vand.u32 %v636, 8388607
    %v638 = vor.u32 %v637, 8388608
    %v639 = vsub.s32 0, %v638
    %v640 = vadd.s32 %v635, 1
    %vm641 = vcmp.gt.s32.totalorder %v640, 0
    %v642 = vsel %vm641, %v640, 0
    %v643 = vshrl.u32 %v642, 5
    %v644 = vand.u32 %v642, 31
    %v645 = vsub.s32 32, %v644
    %v646 = vshrl.u32 683565275, %v645
    %v647 = vshll.u32 683565275, %v644
    %v648 = vshrl.u32 2475754826, %v645
    %v649 = vor.u32 %v647, %v648
    %v650 = vshll.u32 2475754826, %v644
    %v651 = vshrl.u32 2131351028, %v645
    %v652 = vor.u32 %v650, %v651
    %v653 = vshll.u32 2131351028, %v644
    %v654 = vshrl.u32 2102212464, %v645
    %v655 = vor.u32 %v653, %v654
    %v656 = vshll.u32 2102212464, %v644
    %v657 = vshrl.u32 920167782, %v645
    %v658 = vor.u32 %v656, %v657
    %v659 = vshll.u32 920167782, %v644
    %v660 = vshrl.u32 1326507024, %v645
    %v661 = vor.u32 %v659, %v660
    %vm662 = vcmp.lt.s32.totalorder %v643, 1
    %vm663 = vcmp.lt.s32.totalorder %v643, 2
    %vm664 = vcmp.lt.s32.totalorder %v643, 3
    %vm665 = vcmp.lt.s32.totalorder %v643, 4
    %v666 = vsel %vm662, %v646, %v649
    %v667 = vsel %vm665, %v655, 2102212464
    %v668 = vsel %vm664, %v652, %v667
    %v669 = vsel %vm663, %v666, %v668
    %v670 = vsel %vm662, %v649, %v652
    %v671 = vsel %vm665, %v658, 920167782
    %v672 = vsel %vm664, %v655, %v671
    %v673 = vsel %vm663, %v670, %v672
    %v674 = vsel %vm662, %v652, %v655
    %v675 = vsel %vm665, %v661, 1326507024
    %v676 = vsel %vm664, %v658, %v675
    %v677 = vsel %vm663, %v674, %v676
    %v678 = vshll.u32 %v638, 8
    %v679 = vand.u32 %v678, 65535
    %v680 = vshrl.u32 %v678, 16
    %v681 = vand.u32 %v677, 65535
    %v682 = vshrl.u32 %v677, 16
    %v683 = vmul.u32 %v679, %v681
    %v684 = vmul.u32 %v679, %v682
    %v685 = vmul.u32 %v680, %v681
    %v686 = vmul.u32 %v680, %v682
    %v687 = vshll.u32 %v684, 16
    %v688 = vshrl.u32 %v684, 16
    %v689 = vshll.u32 %v685, 16
    %v690 = vshrl.u32 %v685, 16
    %vm691 = vc.u32 %v683, %v687
    %v692 = vsel %vm691, 1, 0
    %v693 = vadd.s32 %v683, %v687
    %v694 = vadd.s32 %v686, %v692
    %vm695 = vc.u32 %v693, %v689
    %v696 = vsel %vm695, 1, 0
    %v697 = vadd.s32 %v693, %v689
    %v698 = vadd.s32 %v694, %v696
    %v699 = vadd.s32 %v698, %v688
    %v700 = vadd.s32 %v699, %v690
    %v701 = vand.u32 %v678, 65535
    %v702 = vshrl.u32 %v678, 16
    %v703 = vand.u32 %v673, 65535
    %v704 = vshrl.u32 %v673, 16
    %v705 = vmul.u32 %v701, %v703
    %v706 = vmul.u32 %v701, %v704
    %v707 = vmul.u32 %v702, %v703
    %v708 = vmul.u32 %v702, %v704
    %v709 = vshll.u32 %v706, 16
    %v710 = vshrl.u32 %v706, 16
    %v711 = vshll.u32 %v707, 16
    %v712 = vshrl.u32 %v707, 16
    %vm713 = vc.u32 %v705, %v709
    %v714 = vsel %vm713, 1, 0
    %v715 = vadd.s32 %v705, %v709
    %v716 = vadd.s32 %v708, %v714
    %vm717 = vc.u32 %v715, %v711
    %v718 = vsel %vm717, 1, 0
    %v719 = vadd.s32 %v715, %v711
    %v720 = vadd.s32 %v716, %v718
    %v721 = vadd.s32 %v720, %v710
    %v722 = vadd.s32 %v721, %v712
    %v723 = vmul.u32 %v678, %v669
    %v724 = vadd.s32 %v700, %v719
    %vm725 = vc.u32 %v700, %v719
    %v726 = vadd.s32 %v722, 1
    %v727 = vsel %vm725, %v726, %v722
    %v728 = vadd.s32 %v723, %v727
    %v729 = vadd.s32 %v728, 536870912
    %v730 = vshrl.u32 %v729, 30
    %v731 = vshll.u32 %v730, 30
    %v732 = vsub.s32 %v728, %v731
    %vm733 = vcmp.lt.s32.totalorder %v732, 0
    %v734 = vsub.s32 0, %v732
    %v735 = vsel %vm733, %v734, %v732
    %v736 = vclz %v735
    %v737 = vsub.s32 %v736, 2
    %vm738 = vcmp.gt.s32.totalorder 0, %v737
    %v739 = vsel %vm738, 0, %v737
    %v740 = vsub.s32 32, %v739
    %v741 = vshll.u32 %v732, %v739
    %v742 = vshrl.u32 %v724, %v740
    %v743 = vor.u32 %v741, %v742
    %v744 = vsub.s32 4294967266, %v739
    %v745 = vadd.s32 %v744, 127
    %v746 = vshll.u32 %v745, 23
    %v747 = vor.u32 4788187, %v746
    %v748 = vand.u32 2147483647, %v747
    %v750 = vcvt.s32.f32 %v743
    %v751 = vmul.f32 %v750, %v748
    %v752 = vxor.u32 %v751, 2147483648
    %v753 = vsel %vm632, %v752, %v751
    %v754 = vsub.s32 4, %v730
    %v755 = vsel %vm632, %v754, %v730
    %v756 = vsel %vm631, %v145, %v753
    %v757 = vsel %vm631, 0, %v755
    %v758 = vmul.f32 %v756, %v756
    %v759 = vmul.f32 %v758, -0.001358992
    %v760 = vadd.f32 %v759, 0.041655596
    %v761 = vmul.f32 %v758, %v760
    %v762 = vadd.f32 %v761, -0.4999988
    %v763 = vmul.f32 %v758, %v762
    %v764 = vadd.f32 1.0, %v763
    %v765 = vmul.f32 %v756, %v756
    %v766 = vmul.f32 %v765, -0.00019511016
    %v767 = vadd.f32 %v766, 0.008332121
    %v768 = vmul.f32 %v765, %v767
    %v769 = vadd.f32 %v768, -0.16666654
    %v770 = vmul.f32 %v765, %v769
    %v771 = vadd.f32 %v770, 1.0
    %v772 = vmul.f32 %v771, %v756
    %vm773 = vweird.f32 %v145
    %v774 = vand.u32 %v757, 3
    %vm775 = vcmp.lt.s32.totalorder %v774, 2
    %vm776 = vcmp.eq.s32.totalorder %v774, 0
    %v777 = vxor.u32 %v772, 2147483648
    %v778 = vsel %vm776, %v764, %v777
    %vm779 = vcmp.eq.s32.totalorder %v774, 2
    %v780 = vxor.u32 %v764, 2147483648
    %v781 = vsel %vm779, %v780, %v772
    %v782 = vsel %vm775, %v778, %v781
    %v783 = vsel %vm773, nan, %v782
    %v784 = vand.u32 2147483647, %v146
    %vm785 = vcmp.le.f32.partialorder %v784, 0.7853982
    %vm786 = vcmp.lt.s32.totalorder %v146, 0
    %v787 = vand.u32 %v146, 2139095040
    %v788 = vshrl.u32 %v787, 23
    %v789 = vsub.s32 %v788, 127
    %v790 = vand.u32 2147483647, %v146
    %v791 = vand.u32 %v790, 8388607
    %v792 = vor.u32 %v791, 8388608
    %v793 = vsub.s32 0, %v792
    %v794 = vadd.s32 %v789, 1
    %vm795 = vcmp.gt.s32.totalorder %v794, 0
    %v796 = vsel %vm795, %v794, 0
    %v797 = vshrl.u32 %v796, 5
    %v798 = vand.u32 %v796, 31
    %v799 = vsub.s32 32, %v798
    %v800 = vshrl.u32 683565275, %v799
    %v801 = vshll.u32 683565275, %v798
    %v802 = vshrl.u32 2475754826, %v799
    %v803 = vor.u32 %v801, %v802
    %v804 = vshll.u32 2475754826, %v798
    %v805 = vshrl.u32 2131351028, %v799
    %v806 = vor.u32 %v804, %v805
    %v807 = vshll.u32 2131351028, %v798
    %v808 = vshrl.u32 2102212464, %v799
    %v809 = vor.u32 %v807, %v808
    %v810 = vshll.u32 2102212464, %v798
    %v811 = vshrl.u32 920167782, %v799
    %v812 = vor.u32 %v810, %v811
    %v813 = vshll.u32 920167782, %v798
    %v814 = vshrl.u32 1326507024, %v799
    %v815 = vor.u32 %v813, %v814
    %vm816 = vcmp.lt.s32.totalorder %v797, 1
    %vm817 = vcmp.lt.s32.totalorder %v797, 2
    %vm818 = vcmp.lt.s32.totalorder %v797, 3
    %vm819 = vcmp.lt.s32.totalorder %v797, 4
    %v820 = vsel %vm816, %v800, %v803
    %v821 = vsel %vm819, %v809, 2102212464
    %v822 = vsel %vm818, %v806, %v821
    %v823 = vsel %vm817, %v820, %v822
    %v824 = vsel %vm816, %v803, %v806
    %v825 = vsel %vm819, %v812, 920167782
    %v826 = vsel %vm818, %v809, %v825
    %v827 = vsel %vm817, %v824, %v826
    %v828 = vsel %vm816, %v806, %v809
    %v829 = vsel %vm819, %v815, 1326507024
    %v830 = vsel %vm818, %v812, %v829
    %v831 = vsel %vm817, %v828, %v830
    %v832 = vshll.u32 %v792, 8
    %v833 = vand.u32 %v832, 65535
    %v834 = vshrl.u32 %v832, 16
    %v835 = vand.u32 %v831, 65535
    %v836 = vshrl.u32 %v831, 16
    %v837 = vmul.u32 %v833, %v835
    %v838 = vmul.u32 %v833, %v836
    %v839 = vmul.u32 %v834, %v835
    %v840 = vmul.u32 %v834, %v836
    %v841 = vshll.u32 %v838, 16
    %v842 = vshrl.u32 %v838, 16
    %v843 = vshll.u32 %v839, 16
    %v844 = vshrl.u32 %v839, 16
    %vm845 = vc.u32 %v837, %v841
    %v846 = vsel %vm845, 1, 0
    %v847 = vadd.s32 %v837, %v841
    %v848 = vadd.s32 %v840, %v846
    %vm849 = vc.u32 %v847, %v843
    %v850 = vsel %vm849, 1, 0
    %v851 = vadd.s32 %v847, %v843
    %v852 = vadd.s32 %v848, %v850
    %v853 = vadd.s32 %v852, %v842
    %v854 = vadd.s32 %v853, %v844
    %v855 = vand.u32 %v832, 65535
    %v856 = vshrl.u32 %v832, 16
    %v857 = vand.u32 %v827, 65535
    %v858 = vshrl.u32 %v827, 16
    %v859 = vmul.u32 %v855, %v857
    %v860 = vmul.u32 %v855, %v858
    %v861 = vmul.u32 %v856, %v857
    %v862 = vmul.u32 %v856, %v858
    %v863 = vshll.u32 %v860, 16
    %v864 = vshrl.u32 %v860, 16
    %v865 = vshll.u32 %v861, 16
    %v866 = vshrl.u32 %v861, 16
    %vm867 = vc.u32 %v859, %v863
    %v868 = vsel %vm867, 1, 0
    %v869 = vadd.s32 %v859, %v863
    %v870 = vadd.s32 %v862, %v868
    %vm871 = vc.u32 %v869, %v865
    %v872 = vsel %vm871, 1, 0
    %v873 = vadd.s32 %v869, %v865
    %v874 = vadd.s32 %v870, %v872
    %v875 = vadd.s32 %v874, %v864
    %v876 = vadd.s32 %v875, %v866
    %v877 = vmul.u32 %v832, %v823
    %v878 = vadd.s32 %v854, %v873
    %vm879 = vc.u32 %v854, %v873
    %v880 = vadd.s32 %v876, 1
    %v881 = vsel %vm879, %v880, %v876
    %v882 = vadd.s32 %v877, %v881
    %v883 = vadd.s32 %v882, 536870912
    %v884 = vshrl.u32 %v883, 30
    %v885 = vshll.u32 %v884, 30
    %v886 = vsub.s32 %v882, %v885
    %vm887 = vcmp.lt.s32.totalorder %v886, 0
    %v888 = vsub.s32 0, %v886
    %v889 = vsel %vm887, %v888, %v886
    %v890 = vclz %v889
    %v891 = vsub.s32 %v890, 2
    %vm892 = vcmp.gt.s32.totalorder 0, %v891
    %v893 = vsel %vm892, 0, %v891
    %v894 = vsub.s32 32, %v893
    %v895 = vshll.u32 %v886, %v893
    %v896 = vshrl.u32 %v878, %v894
    %v897 = vor.u32 %v895, %v896
    %v898 = vsub.s32 4294967266, %v893
    %v899 = vadd.s32 %v898, 127
    %v900 = vshll.u32 %v899, 23
    %v901 = vor.u32 4788187, %v900
    %v902 = vand.u32 2147483647, %v901
    %v904 = vcvt.s32.f32 %v897
    %v905 = vmul.f32 %v904, %v902
    %v906 = vxor.u32 %v905, 2147483648
    %v907 = vsel %vm786, %v906, %v905
    %v908 = vsub.s32 4, %v884
    %v909 = vsel %vm786, %v908, %v884
    %v910 = vsel %vm785, %v146, %v907
    %v911 = vsel %vm785, 0, %v909
    %v912 = vmul.f32 %v910, %v910
    %v913 = vmul.f32 %v912, -0.001358992
    %v914 = vadd.f32 %v913, 0.041655596
    %v915 = vmul.f32 %v912, %v914
    %v916 = vadd.f32 %v915, -0.4999988
    %v917 = vmul.f32 %v912, %v916
    %v918 = vadd.f32 1.0, %v917
    %v919 = vmul.f32 %v910, %v910
    %v920 = vmul.f32 %v919, -0.00019511016
    %v921 = vadd.f32 %v920, 0.008332121
    %v922 = vmul.f32 %v919, %v921
    %v923 = vadd.f32 %v922, -0.16666654
    %v924 = vmul.f32 %v919, %v923
    %v925 = vadd.f32 %v924, 1.0
    %v926 = vmul.f32 %v925, %v910
    %vm927 = vweird.f32 %v146
    %v928 = vand.u32 %v911, 3
    %vm929 = vcmp.lt.s32.totalorder %v928, 2
    %vm930 = vcmp.eq.s32.totalorder %v928, 0
    %v931 = vxor.u32 %v926, 2147483648
    %v932 = vsel %vm930, %v918, %v931
    %vm933 = vcmp.eq.s32.totalorder %v928, 2
    %v934 = vxor.u32 %v918, 2147483648
    %v935 = vsel %vm933, %v934, %v926
    %v936 = vsel %vm929, %v932, %v935
    %v937 = vsel %vm927, nan, %v936
    %v938 = vand.u32 2147483647, %v147
    %vm939 = vcmp.le.f32.partialorder %v938, 0.7853982
    %vm940 = vcmp.lt.s32.totalorder %v147, 0
    %v941 = vand.u32 %v147, 2139095040
    %v942 = vshrl.u32 %v941, 23
    %v943 = vsub.s32 %v942, 127
    %v944 = vand.u32 2147483647, %v147
    %v945 = vand.u32 %v944, 8388607
    %v946 = vor.u32 %v945, 8388608
    %v947 = vsub.s32 0, %v946
    %v948 = vadd.s32 %v943, 1
    %vm949 = vcmp.gt.s32.totalorder %v948, 0
    %v950 = vsel %vm949, %v948, 0
    %v951 = vshrl.u32 %v950, 5
    %v952 = vand.u32 %v950, 31
    %v953 = vsub.s32 32, %v952
    %v954 = vshrl.u32 683565275, %v953
    %v955 = vshll.u32 683565275, %v952
    %v956 = vshrl.u32 2475754826, %v953
    %v957 = vor.u32 %v955, %v956
    %v958 = vshll.u32 2475754826, %v952
    %v959 = vshrl.u32 2131351028, %v953
    %v960 = vor.u32 %v958, %v959
    %v961 = vshll.u32 2131351028, %v952
    %v962 = vshrl.u32 2102212464, %v953
    %v963 = vor.u32 %v961, %v962
    %v964 = vshll.u32 2102212464, %v952
    %v965 = vshrl.u32 920167782, %v953
    %v966 = vor.u32 %v964, %v965
    %v967 = vshll.u32 920167782, %v952
    %v968 = vshrl.u32 1326507024, %v953
    %v969 = vor.u32 %v967, %v968
    %vm970 = vcmp.lt.s32.totalorder %v951, 1
    %vm971 = vcmp.lt.s32.totalorder %v951, 2
    %vm972 = vcmp.lt.s32.totalorder %v951, 3
    %vm973 = vcmp.lt.s32.totalorder %v951, 4
    %v974 = vsel %vm970, %v954, %v957
    %v975 = vsel %vm973, %v963, 2102212464
    %v976 = vsel %vm972, %v960, %v975
    %v977 = vsel %vm971, %v974, %v976
    %v978 = vsel %vm970, %v957, %v960
    %v979 = vsel %vm973, %v966, 920167782
    %v980 = vsel %vm972, %v963, %v979
    %v981 = vsel %vm971, %v978, %v980
    %v982 = vsel %vm970, %v960, %v963
    %v983 = vsel %vm973, %v969, 1326507024
    %v984 = vsel %vm972, %v966, %v983
    %v985 = vsel %vm971, %v982, %v984
    %v986 = vshll.u32 %v946, 8
    %v987 = vand.u32 %v986, 65535
    %v988 = vshrl.u32 %v986, 16
    %v989 = vand.u32 %v985, 65535
    %v990 = vshrl.u32 %v985, 16
    %v991 = vmul.u32 %v987, %v989
    %v992 = vmul.u32 %v987, %v990
    %v993 = vmul.u32 %v988, %v989
    %v994 = vmul.u32 %v988, %v990
    %v995 = vshll.u32 %v992, 16
    %v996 = vshrl.u32 %v992, 16
    %v997 = vshll.u32 %v993, 16
    %v998 = vshrl.u32 %v993, 16
    %vm999 = vc.u32 %v991, %v995
    %v1000 = vsel %vm999, 1, 0
    %v1001 = vadd.s32 %v991, %v995
    %v1002 = vadd.s32 %v994, %v1000
    %vm1003 = vc.u32 %v1001, %v997
    %v1004 = vsel %vm1003, 1, 0
    %v1005 = vadd.s32 %v1001, %v997
    %v1006 = vadd.s32 %v1002, %v1004
    %v1007 = vadd.s32 %v1006, %v996
    %v1008 = vadd.s32 %v1007, %v998
    %v1009 = vand.u32 %v986, 65535
    %v1010 = vshrl.u32 %v986, 16
    %v1011 = vand.u32 %v981, 65535
    %v1012 = vshrl.u32 %v981, 16
    %v1013 = vmul.u32 %v1009, %v1011
    %v1014 = vmul.u32 %v1009, %v1012
    %v1015 = vmul.u32 %v1010, %v1011
    %v1016 = vmul.u32 %v1010, %v1012
    %v1017 = vshll.u32 %v1014, 16
    %v1018 = vshrl.u32 %v1014, 16
    %v1019 = vshll.u32 %v1015, 16
    %v1020 = vshrl.u32 %v1015, 16
    %vm1021 = vc.u32 %v1013, %v1017
    %v1022 = vsel %vm1021, 1, 0
    %v1023 = vadd.s32 %v1013, %v1017
    %v1024 = vadd.s32 %v1016, %v1022
    %vm1025 = vc.u32 %v1023, %v1019
    %v1026 = vsel %vm1025, 1, 0
    %v1027 = vadd.s32 %v1023, %v1019
    %v1028 = vadd.s32 %v1024, %v1026
    %v1029 = vadd.s32 %v1028, %v1018
    %v1030 = vadd.s32 %v1029, %v1020
    %v1031 = vmul.u32 %v986, %v977
    %v1032 = vadd.s32 %v1008, %v1027
    %vm1033 = vc.u32 %v1008, %v1027
    %v1034 = vadd.s32 %v1030, 1
    %v1035 = vsel %vm1033, %v1034, %v1030
    %v1036 = vadd.s32 %v1031, %v1035
    %v1037 = vadd.s32 %v1036, 536870912
    %v1038 = vshrl.u32 %v1037, 30
    %v1039 = vshll.u32 %v1038, 30
    %v1040 = vsub.s32 %v1036, %v1039
    %vm1041 = vcmp.lt.s32.totalorder %v1040, 0
    %v1042 = vsub.s32 0, %v1040
    %v1043 = vsel %vm1041, %v1042, %v1040
    %v1044 = vclz %v1043
    %v1045 = vsub.s32 %v1044, 2
    %vm1046 = vcmp.gt.s32.totalorder 0, %v1045
    %v1047 = vsel %vm1046, 0, %v1045
    %v1048 = vsub.s32 32, %v1047
    %v1049 = vshll.u32 %v1040, %v1047
    %v1050 = vshrl.u32 %v1032, %v1048
    %v1051 = vor.u32 %v1049, %v1050
    %v1052 = vsub.s32 4294967266, %v1047
    %v1053 = vadd.s32 %v1052, 127
    %v1054 = vshll.u32 %v1053, 23
    %v1055 = vor.u32 4788187, %v1054
    %v1056 = vand.u32 2147483647, %v1055
    %v1058 = vcvt.s32.f32 %v1051
    %v1059 = vmul.f32 %v1058, %v1056
    %v1060 = vxor.u32 %v1059, 2147483648
    %v1061 = vsel %vm940, %v1060, %v1059
    %v1062 = vsub.s32 4, %v1038
    %v1063 = vsel %vm940, %v1062, %v1038
    %v1064 = vsel %vm939, %v147, %v1061
    %v1065 = vsel %vm939, 0, %v1063
    %v1066 = vmul.f32 %v1064, %v1064
    %v1067 = vmul.f32 %v1066, -0.001358992
    %v1068 = vadd.f32 %v1067, 0.041655596
    %v1069 = vmul.f32 %v1066, %v1068
    %v1070 = vadd.f32 %v1069, -0.4999988
    %v1071 = vmul.f32 %v1066, %v1070
    %v1072 = vadd.f32 1.0, %v1071
    %v1073 = vmul.f32 %v1064, %v1064
    %v1074 = vmul.f32 %v1073, -0.00019511016
    %v1075 = vadd.f32 %v1074, 0.008332121
    %v1076 = vmul.f32 %v1073, %v1075
    %v1077 = vadd.f32 %v1076, -0.16666654
    %v1078 = vmul.f32 %v1073, %v1077
    %v1079 = vadd.f32 %v1078, 1.0
    %v1080 = vmul.f32 %v1079, %v1064
    %vm1081 = vweird.f32 %v147
    %v1082 = vand.u32 %v1065, 3
    %vm1083 = vcmp.lt.s32.totalorder %v1082, 2
    %vm1084 = vcmp.eq.s32.totalorder %v1082, 0
    %v1085 = vxor.u32 %v1080, 2147483648
    %v1086 = vsel %vm1084, %v1072, %v1085
    %vm1087 = vcmp.eq.s32.totalorder %v1082, 2
    %v1088 = vxor.u32 %v1072, 2147483648
    %v1089 = vsel %vm1087, %v1088, %v1080
    %v1090 = vsel %vm1083, %v1086, %v1089
    %v1091 = vsel %vm1081, nan, %v1090
    %v1092 = vand.u32 2147483647, %v148
    %vm1093 = vcmp.le.f32.partialorder %v1092, 0.7853982
    %vm1094 = vcmp.lt.s32.totalorder %v148, 0
    %v1095 = vand.u32 %v148, 2139095040
    %v1096 = vshrl.u32 %v1095, 23
    %v1097 = vsub.s32 %v1096, 127
    %v1098 = vand.u32 2147483647, %v148
    %v1099 = vand.u32 %v1098, 8388607
    %v1100 = vor.u32 %v1099, 8388608
    %v1101 = vsub.s32 0, %v1100
    %v1102 = vadd.s32 %v1097, 1
    %vm1103 = vcmp.gt.s32.totalorder %v1102, 0
    %v1104 = vsel %vm1103, %v1102, 0
    %v1105 = vshrl.u32 %v1104, 5
    %v1106 = vand.u32 %v1104, 31
    %v1107 = vsub.s32 32, %v1106
    %v1108 = vshrl.u32 683565275, %v1107
    %v1109 = vshll.u32 683565275, %v1106
    %v1110 = vshrl.u32 2475754826, %v1107
    %v1111 = vor.u32 %v1109, %v1110
    %v1112 = vshll.u32 2475754826, %v1106
    %v1113 = vshrl.u32 2131351028, %v1107
    %v1114 = vor.u32 %v1112, %v1113
    %v1115 = vshll.u32 2131351028, %v1106
    %v1116 = vshrl.u32 2102212464, %v1107
    %v1117 = vor.u32 %v1115, %v1116
    %v1118 = vshll.u32 2102212464, %v1106
    %v1119 = vshrl.u32 920167782, %v1107
    %v1120 = vor.u32 %v1118, %v1119
    %v1121 = vshll.u32 920167782, %v1106
    %v1122 = vshrl.u32 1326507024, %v1107
    %v1123 = vor.u32 %v1121, %v1122
    %vm1124 = vcmp.lt.s32.totalorder %v1105, 1
    %vm1125 = vcmp.lt.s32.totalorder %v1105, 2
    %vm1126 = vcmp.lt.s32.totalorder %v1105, 3
    %vm1127 = vcmp.lt.s32.totalorder %v1105, 4
    %v1128 = vsel %vm1124, %v1108, %v1111
    %v1129 = vsel %vm1127, %v1117, 2102212464
    %v1130 = vsel %vm1126, %v1114, %v1129
    %v1131 = vsel %vm1125, %v1128, %v1130
    %v1132 = vsel %vm1124, %v1111, %v1114
    %v1133 = vsel %vm1127, %v1120, 920167782
    %v1134 = vsel %vm1126, %v1117, %v1133
    %v1135 = vsel %vm1125, %v1132, %v1134
    %v1136 = vsel %vm1124, %v1114, %v1117
    %v1137 = vsel %vm1127, %v1123, 1326507024
    %v1138 = vsel %vm1126, %v1120, %v1137
    %v1139 = vsel %vm1125, %v1136, %v1138
    %v1140 = vshll.u32 %v1100, 8
    %v1141 = vand.u32 %v1140, 65535
    %v1142 = vshrl.u32 %v1140, 16
    %v1143 = vand.u32 %v1139, 65535
    %v1144 = vshrl.u32 %v1139, 16
    %v1145 = vmul.u32 %v1141, %v1143
    %v1146 = vmul.u32 %v1141, %v1144
    %v1147 = vmul.u32 %v1142, %v1143
    %v1148 = vmul.u32 %v1142, %v1144
    %v1149 = vshll.u32 %v1146, 16
    %v1150 = vshrl.u32 %v1146, 16
    %v1151 = vshll.u32 %v1147, 16
    %v1152 = vshrl.u32 %v1147, 16
    %vm1153 = vc.u32 %v1145, %v1149
    %v1154 = vsel %vm1153, 1, 0
    %v1155 = vadd.s32 %v1145, %v1149
    %v1156 = vadd.s32 %v1148, %v1154
    %vm1157 = vc.u32 %v1155, %v1151
    %v1158 = vsel %vm1157, 1, 0
    %v1159 = vadd.s32 %v1155, %v1151
    %v1160 = vadd.s32 %v1156, %v1158
    %v1161 = vadd.s32 %v1160, %v1150
    %v1162 = vadd.s32 %v1161, %v1152
    %v1163 = vand.u32 %v1140, 65535
    %v1164 = vshrl.u32 %v1140, 16
    %v1165 = vand.u32 %v1135, 65535
    %v1166 = vshrl.u32 %v1135, 16
    %v1167 = vmul.u32 %v1163, %v1165
    %v1168 = vmul.u32 %v1163, %v1166
    %v1169 = vmul.u32 %v1164, %v1165
    %v1170 = vmul.u32 %v1164, %v1166
    %v1171 = vshll.u32 %v1168, 16
    %v1172 = vshrl.u32 %v1168, 16
    %v1173 = vshll.u32 %v1169, 16
    %v1174 = vshrl.u32 %v1169, 16
    %vm1175 = vc.u32 %v1167, %v1171
    %v1176 = vsel %vm1175, 1, 0
    %v1177 = vadd.s32 %v1167, %v1171
    %v1178 = vadd.s32 %v1170, %v1176
    %vm1179 = vc.u32 %v1177, %v1173
    %v1180 = vsel %vm1179, 1, 0
    %v1181 = vadd.s32 %v1177, %v1173
    %v1182 = vadd.s32 %v1178, %v1180
    %v1183 = vadd.s32 %v1182, %v1172
    %v1184 = vadd.s32 %v1183, %v1174
    %v1185 = vmul.u32 %v1140, %v1131
    %v1186 = vadd.s32 %v1162, %v1181
    %vm1187 = vc.u32 %v1162, %v1181
    %v1188 = vadd.s32 %v1184, 1
    %v1189 = vsel %vm1187, %v1188, %v1184
    %v1190 = vadd.s32 %v1185, %v1189
    %v1191 = vadd.s32 %v1190, 536870912
    %v1192 = vshrl.u32 %v1191, 30
    %v1193 = vshll.u32 %v1192, 30
    %v1194 = vsub.s32 %v1190, %v1193
    %vm1195 = vcmp.lt.s32.totalorder %v1194, 0
    %v1196 = vsub.s32 0, %v1194
    %v1197 = vsel %vm1195, %v1196, %v1194
    %v1198 = vclz %v1197
    %v1199 = vsub.s32 %v1198, 2
    %vm1200 = vcmp.gt.s32.totalorder 0, %v1199
    %v1201 = vsel %vm1200, 0, %v1199
    %v1202 = vsub.s32 32, %v1201
    %v1203 = vshll.u32 %v1194, %v1201
    %v1204 = vshrl.u32 %v1186, %v1202
    %v1205 = vor.u32 %v1203, %v1204
    %v1206 = vsub.s32 4294967266, %v1201
    %v1207 = vadd.s32 %v1206, 127
    %v1208 = vshll.u32 %v1207, 23
    %v1209 = vor.u32 4788187, %v1208
    %v1210 = vand.u32 2147483647, %v1209
    %v1212 = vcvt.s32.f32 %v1205
    %v1213 = vmul.f32 %v1212, %v1210
    %v1214 = vxor.u32 %v1213, 2147483648
    %v1215 = vsel %vm1094, %v1214, %v1213
    %v1216 = vsub.s32 4, %v1192
    %v1217 = vsel %vm1094, %v1216, %v1192
    %v1218 = vsel %vm1093, %v148, %v1215
    %v1219 = vsel %vm1093, 0, %v1217
    %v1220 = vmul.f32 %v1218, %v1218
    %v1221 = vmul.f32 %v1220, -0.001358992
    %v1222 = vadd.f32 %v1221, 0.041655596
    %v1223 = vmul.f32 %v1220, %v1222
    %v1224 = vadd.f32 %v1223, -0.4999988
    %v1225 = vmul.f32 %v1220, %v1224
    %v1226 = vadd.f32 1.0, %v1225
    %v1227 = vmul.f32 %v1218, %v1218
    %v1228 = vmul.f32 %v1227, -0.00019511016
    %v1229 = vadd.f32 %v1228, 0.008332121
    %v1230 = vmul.f32 %v1227, %v1229
    %v1231 = vadd.f32 %v1230, -0.16666654
    %v1232 = vmul.f32 %v1227, %v1231
    %v1233 = vadd.f32 %v1232, 1.0
    %v1234 = vmul.f32 %v1233, %v1218
    %vm1235 = vweird.f32 %v148
    %v1236 = vand.u32 %v1219, 3
    %vm1237 = vcmp.lt.s32.totalorder %v1236, 2
    %vm1238 = vcmp.eq.s32.totalorder %v1236, 0
    %v1239 = vxor.u32 %v1234, 2147483648
    %v1240 = vsel %vm1238, %v1226, %v1239
    %vm1241 = vcmp.eq.s32.totalorder %v1236, 2
    %v1242 = vxor.u32 %v1226, 2147483648
    %v1243 = vsel %vm1241, %v1242, %v1234
    %v1244 = vsel %vm1237, %v1240, %v1243
    %v1245 = vsel %vm1235, nan, %v1244
    %v1246 = vand.u32 2147483647, %v149
    %vm1247 = vcmp.le.f32.partialorder %v1246, 0.7853982
    %vm1248 = vcmp.lt.s32.totalorder %v149, 0
    %v1249 = vand.u32 %v149, 2139095040
    %v1250 = vshrl.u32 %v1249, 23
    %v1251 = vsub.s32 %v1250, 127
    %v1252 = vand.u32 2147483647, %v149
    %v1253 = vand.u32 %v1252, 8388607
    %v1254 = vor.u32 %v1253, 8388608
    %v1255 = vsub.s32 0, %v1254
    %v1256 = vadd.s32 %v1251, 1
    %vm1257 = vcmp.gt.s32.totalorder %v1256, 0
    %v1258 = vsel %vm1257, %v1256, 0
    %v1259 = vshrl.u32 %v1258, 5
    %v1260 = vand.u32 %v1258, 31
    %v1261 = vsub.s32 32, %v1260
    %v1262 = vshrl.u32 683565275, %v1261
    %v1263 = vshll.u32 683565275, %v1260
    %v1264 = vshrl.u32 2475754826, %v1261
    %v1265 = vor.u32 %v1263, %v1264
    %v1266 = vshll.u32 2475754826, %v1260
    %v1267 = vshrl.u32 2131351028, %v1261
    %v1268 = vor.u32 %v1266, %v1267
    %v1269 = vshll.u32 2131351028, %v1260
    %v1270 = vshrl.u32 2102212464, %v1261
    %v1271 = vor.u32 %v1269, %v1270
    %v1272 = vshll.u32 2102212464, %v1260
    %v1273 = vshrl.u32 920167782, %v1261
    %v1274 = vor.u32 %v1272, %v1273
    %v1275 = vshll.u32 920167782, %v1260
    %v1276 = vshrl.u32 1326507024, %v1261
    %v1277 = vor.u32 %v1275, %v1276
    %vm1278 = vcmp.lt.s32.totalorder %v1259, 1
    %vm1279 = vcmp.lt.s32.totalorder %v1259, 2
    %vm1280 = vcmp.lt.s32.totalorder %v1259, 3
    %vm1281 = vcmp.lt.s32.totalorder %v1259, 4
    %v1282 = vsel %vm1278, %v1262, %v1265
    %v1283 = vsel %vm1281, %v1271, 2102212464
    %v1284 = vsel %vm1280, %v1268, %v1283
    %v1285 = vsel %vm1279, %v1282, %v1284
    %v1286 = vsel %vm1278, %v1265, %v1268
    %v1287 = vsel %vm1281, %v1274, 920167782
    %v1288 = vsel %vm1280, %v1271, %v1287
    %v1289 = vsel %vm1279, %v1286, %v1288
    %v1290 = vsel %vm1278, %v1268, %v1271
    %v1291 = vsel %vm1281, %v1277, 1326507024
    %v1292 = vsel %vm1280, %v1274, %v1291
    %v1293 = vsel %vm1279, %v1290, %v1292
    %v1294 = vshll.u32 %v1254, 8
    %v1295 = vand.u32 %v1294, 65535
    %v1296 = vshrl.u32 %v1294, 16
    %v1297 = vand.u32 %v1293, 65535
    %v1298 = vshrl.u32 %v1293, 16
    %v1299 = vmul.u32 %v1295, %v1297
    %v1300 = vmul.u32 %v1295, %v1298
    %v1301 = vmul.u32 %v1296, %v1297
    %v1302 = vmul.u32 %v1296, %v1298
    %v1303 = vshll.u32 %v1300, 16
    %v1304 = vshrl.u32 %v1300, 16
    %v1305 = vshll.u32 %v1301, 16
    %v1306 = vshrl.u32 %v1301, 16
    %vm1307 = vc.u32 %v1299, %v1303
    %v1308 = vsel %vm1307, 1, 0
    %v1309 = vadd.s32 %v1299, %v1303
    %v1310 = vadd.s32 %v1302, %v1308
    %vm1311 = vc.u32 %v1309, %v1305
    %v1312 = vsel %vm1311, 1, 0
    %v1313 = vadd.s32 %v1309, %v1305
    %v1314 = vadd.s32 %v1310, %v1312
    %v1315 = vadd.s32 %v1314, %v1304
    %v1316 = vadd.s32 %v1315, %v1306
    %v1317 = vand.u32 %v1294, 65535
    %v1318 = vshrl.u32 %v1294, 16
    %v1319 = vand.u32 %v1289, 65535
    %v1320 = vshrl.u32 %v1289, 16
    %v1321 = vmul.u32 %v1317, %v1319
    %v1322 = vmul.u32 %v1317, %v1320
    %v1323 = vmul.u32 %v1318, %v1319
    %v1324 = vmul.u32 %v1318, %v1320
    %v1325 = vshll.u32 %v1322, 16
    %v1326 = vshrl.u32 %v1322, 16
    %v1327 = vshll.u32 %v1323, 16
    %v1328 = vshrl.u32 %v1323, 16
    %vm1329 = vc.u32 %v1321, %v1325
    %v1330 = vsel %vm1329, 1, 0
    %v1331 = vadd.s32 %v1321, %v1325
    %v1332 = vadd.s32 %v1324, %v1330
    %vm1333 = vc.u32 %v1331, %v1327
    %v1334 = vsel %vm1333, 1, 0
    %v1335 = vadd.s32 %v1331, %v1327
    %v1336 = vadd.s32 %v1332, %v1334
    %v1337 = vadd.s32 %v1336, %v1326
    %v1338 = vadd.s32 %v1337, %v1328
    %v1339 = vmul.u32 %v1294, %v1285
    %v1340 = vadd.s32 %v1316, %v1335
    %vm1341 = vc.u32 %v1316, %v1335
    %v1342 = vadd.s32 %v1338, 1
    %v1343 = vsel %vm1341, %v1342, %v1338
    %v1344 = vadd.s32 %v1339, %v1343
    %v1345 = vadd.s32 %v1344, 536870912
    %v1346 = vshrl.u32 %v1345, 30
    %v1347 = vshll.u32 %v1346, 30
    %v1348 = vsub.s32 %v1344, %v1347
    %vm1349 = vcmp.lt.s32.totalorder %v1348, 0
    %v1350 = vsub.s32 0, %v1348
    %v1351 = vsel %vm1349, %v1350, %v1348
    %v1352 = vclz %v1351
    %v1353 = vsub.s32 %v1352, 2
    %vm1354 = vcmp.gt.s32.totalorder 0, %v1353
    %v1355 = vsel %vm1354, 0, %v1353
    %v1356 = vsub.s32 32, %v1355
    %v1357 = vshll.u32 %v1348, %v1355
    %v1358 = vshrl.u32 %v1340, %v1356
    %v1359 = vor.u32 %v1357, %v1358
    %v1360 = vsub.s32 4294967266, %v1355
    %v1361 = vadd.s32 %v1360, 127
    %v1362 = vshll.u32 %v1361, 23
    %v1363 = vor.u32 4788187, %v1362
    %v1364 = vand.u32 2147483647, %v1363
    %v1366 = vcvt.s32.f32 %v1359
    %v1367 = vmul.f32 %v1366, %v1364
    %v1368 = vxor.u32 %v1367, 2147483648
    %v1369 = vsel %vm1248, %v1368, %v1367
    %v1370 = vsub.s32 4, %v1346
    %v1371 = vsel %vm1248, %v1370, %v1346
    %v1372 = vsel %vm1247, %v149, %v1369
    %v1373 = vsel %vm1247, 0, %v1371
    %v1374 = vmul.f32 %v1372, %v1372
    %v1375 = vmul.f32 %v1374, -0.001358992
    %v1376 = vadd.f32 %v1375, 0.041655596
    %v1377 = vmul.f32 %v1374, %v1376
    %v1378 = vadd.f32 %v1377, -0.4999988
    %v1379 = vmul.f32 %v1374, %v1378
    %v1380 = vadd.f32 1.0, %v1379
    %v1381 = vmul.f32 %v1372, %v1372
    %v1382 = vmul.f32 %v1381, -0.00019511016
    %v1383 = vadd.f32 %v1382, 0.008332121
    %v1384 = vmul.f32 %v1381, %v1383
    %v1385 = vadd.f32 %v1384, -0.16666654
    %v1386 = vmul.f32 %v1381, %v1385
    %v1387 = vadd.f32 %v1386, 1.0
    %v1388 = vmul.f32 %v1387, %v1372
    %vm1389 = vweird.f32 %v149
    %v1390 = vand.u32 %v1373, 3
    %vm1391 = vcmp.lt.s32.totalorder %v1390, 2
    %vm1392 = vcmp.eq.s32.totalorder %v1390, 0
    %v1393 = vxor.u32 %v1388, 2147483648
    %v1394 = vsel %vm1392, %v1380, %v1393
    %vm1395 = vcmp.eq.s32.totalorder %v1390, 2
    %v1396 = vxor.u32 %v1380, 2147483648
    %v1397 = vsel %vm1395, %v1396, %v1388
    %v1398 = vsel %vm1391, %v1394, %v1397
    %v1399 = vsel %vm1389, nan, %v1398
    %v1400 = vand.u32 2147483647, %v150
    %vm1401 = vcmp.le.f32.partialorder %v1400, 0.7853982
    %vm1402 = vcmp.lt.s32.totalorder %v150, 0
    %v1403 = vand.u32 %v150, 2139095040
    %v1404 = vshrl.u32 %v1403, 23
    %v1405 = vsub.s32 %v1404, 127
    %v1406 = vand.u32 2147483647, %v150
    %v1407 = vand.u32 %v1406, 8388607
    %v1408 = vor.u32 %v1407, 8388608
    %v1409 = vsub.s32 0, %v1408
    %v1410 = vadd.s32 %v1405, 1
    %vm1411 = vcmp.gt.s32.totalorder %v1410, 0
    %v1412 = vsel %vm1411, %v1410, 0
    %v1413 = vshrl.u32 %v1412, 5
    %v1414 = vand.u32 %v1412, 31
    %v1415 = vsub.s32 32, %v1414
    %v1416 = vshrl.u32 683565275, %v1415
    %v1417 = vshll.u32 683565275, %v1414
    %v1418 = vshrl.u32 2475754826, %v1415
    %v1419 = vor.u32 %v1417, %v1418
    %v1420 = vshll.u32 2475754826, %v1414
    %v1421 = vshrl.u32 2131351028, %v1415
    %v1422 = vor.u32 %v1420, %v1421
    %v1423 = vshll.u32 2131351028, %v1414
    %v1424 = vshrl.u32 2102212464, %v1415
    %v1425 = vor.u32 %v1423, %v1424
    %v1426 = vshll.u32 2102212464, %v1414
    %v1427 = vshrl.u32 920167782, %v1415
    %v1428 = vor.u32 %v1426, %v1427
    %v1429 = vshll.u32 920167782, %v1414
    %v1430 = vshrl.u32 1326507024, %v1415
    %v1431 = vor.u32 %v1429, %v1430
    %vm1432 = vcmp.lt.s32.totalorder %v1413, 1
    %vm1433 = vcmp.lt.s32.totalorder %v1413, 2
    %vm1434 = vcmp.lt.s32.totalorder %v1413, 3
    %vm1435 = vcmp.lt.s32.totalorder %v1413, 4
    %v1436 = vsel %vm1432, %v1416, %v1419
    %v1437 = vsel %vm1435, %v1425, 2102212464
    %v1438 = vsel %vm1434, %v1422, %v1437
    %v1439 = vsel %vm1433, %v1436, %v1438
    %v1440 = vsel %vm1432, %v1419, %v1422
    %v1441 = vsel %vm1435, %v1428, 920167782
    %v1442 = vsel %vm1434, %v1425, %v1441
    %v1443 = vsel %vm1433, %v1440, %v1442
    %v1444 = vsel %vm1432, %v1422, %v1425
    %v1445 = vsel %vm1435, %v1431, 1326507024
    %v1446 = vsel %vm1434, %v1428, %v1445
    %v1447 = vsel %vm1433, %v1444, %v1446
    %v1448 = vshll.u32 %v1408, 8
    %v1449 = vand.u32 %v1448, 65535
    %v1450 = vshrl.u32 %v1448, 16
    %v1451 = vand.u32 %v1447, 65535
    %v1452 = vshrl.u32 %v1447, 16
    %v1453 = vmul.u32 %v1449, %v1451
    %v1454 = vmul.u32 %v1449, %v1452
    %v1455 = vmul.u32 %v1450, %v1451
    %v1456 = vmul.u32 %v1450, %v1452
    %v1457 = vshll.u32 %v1454, 16
    %v1458 = vshrl.u32 %v1454, 16
    %v1459 = vshll.u32 %v1455, 16
    %v1460 = vshrl.u32 %v1455, 16
    %vm1461 = vc.u32 %v1453, %v1457
    %v1462 = vsel %vm1461, 1, 0
    %v1463 = vadd.s32 %v1453, %v1457
    %v1464 = vadd.s32 %v1456, %v1462
    %vm1465 = vc.u32 %v1463, %v1459
    %v1466 = vsel %vm1465, 1, 0
    %v1467 = vadd.s32 %v1463, %v1459
    %v1468 = vadd.s32 %v1464, %v1466
    %v1469 = vadd.s32 %v1468, %v1458
    %v1470 = vadd.s32 %v1469, %v1460
    %v1471 = vand.u32 %v1448, 65535
    %v1472 = vshrl.u32 %v1448, 16
    %v1473 = vand.u32 %v1443, 65535
    %v1474 = vshrl.u32 %v1443, 16
    %v1475 = vmul.u32 %v1471, %v1473
    %v1476 = vmul.u32 %v1471, %v1474
    %v1477 = vmul.u32 %v1472, %v1473
    %v1478 = vmul.u32 %v1472, %v1474
    %v1479 = vshll.u32 %v1476, 16
    %v1480 = vshrl.u32 %v1476, 16
    %v1481 = vshll.u32 %v1477, 16
    %v1482 = vshrl.u32 %v1477, 16
    %vm1483 = vc.u32 %v1475, %v1479
    %v1484 = vsel %vm1483, 1, 0
    %v1485 = vadd.s32 %v1475, %v1479
    %v1486 = vadd.s32 %v1478, %v1484
    %vm1487 = vc.u32 %v1485, %v1481
    %v1488 = vsel %vm1487, 1, 0
    %v1489 = vadd.s32 %v1485, %v1481
    %v1490 = vadd.s32 %v1486, %v1488
    %v1491 = vadd.s32 %v1490, %v1480
    %v1492 = vadd.s32 %v1491, %v1482
    %v1493 = vmul.u32 %v1448, %v1439
    %v1494 = vadd.s32 %v1470, %v1489
    %vm1495 = vc.u32 %v1470, %v1489
    %v1496 = vadd.s32 %v1492, 1
    %v1497 = vsel %vm1495, %v1496, %v1492
    %v1498 = vadd.s32 %v1493, %v1497
    %v1499 = vadd.s32 %v1498, 536870912
    %v1500 = vshrl.u32 %v1499, 30
    %v1501 = vshll.u32 %v1500, 30
    %v1502 = vsub.s32 %v1498, %v1501
    %vm1503 = vcmp.lt.s32.totalorder %v1502, 0
    %v1504 = vsub.s32 0, %v1502
    %v1505 = vsel %vm1503, %v1504, %v1502
    %v1506 = vclz %v1505
    %v1507 = vsub.s32 %v1506, 2
    %vm1508 = vcmp.gt.s32.totalorder 0, %v1507
    %v1509 = vsel %vm1508, 0, %v1507
    %v1510 = vsub.s32 32, %v1509
    %v1511 = vshll.u32 %v1502, %v1509
    %v1512 = vshrl.u32 %v1494, %v1510
    %v1513 = vor.u32 %v1511, %v1512
    %v1514 = vsub.s32 4294967266, %v1509
    %v1515 = vadd.s32 %v1514, 127
    %v1516 = vshll.u32 %v1515, 23
    %v1517 = vor.u32 4788187, %v1516
    %v1518 = vand.u32 2147483647, %v1517
    %v1520 = vcvt.s32.f32 %v1513
    %v1521 = vmul.f32 %v1520, %v1518
    %v1522 = vxor.u32 %v1521, 2147483648
    %v1523 = vsel %vm1402, %v1522, %v1521
    %v1524 = vsub.s32 4, %v1500
    %v1525 = vsel %vm1402, %v1524, %v1500
    %v1526 = vsel %vm1401, %v150, %v1523
    %v1527 = vsel %vm1401, 0, %v1525
    %v1528 = vmul.f32 %v1526, %v1526
    %v1529 = vmul.f32 %v1528, -0.001358992
    %v1530 = vadd.f32 %v1529, 0.041655596
    %v1531 = vmul.f32 %v1528, %v1530
    %v1532 = vadd.f32 %v1531, -0.4999988
    %v1533 = vmul.f32 %v1528, %v1532
    %v1534 = vadd.f32 1.0, %v1533
    %v1535 = vmul.f32 %v1526, %v1526
    %v1536 = vmul.f32 %v1535, -0.00019511016
    %v1537 = vadd.f32 %v1536, 0.008332121
    %v1538 = vmul.f32 %v1535, %v1537
    %v1539 = vadd.f32 %v1538, -0.16666654
    %v1540 = vmul.f32 %v1535, %v1539
    %v1541 = vadd.f32 %v1540, 1.0
    %v1542 = vmul.f32 %v1541, %v1526
    %vm1543 = vweird.f32 %v150
    %v1544 = vand.u32 %v1527, 3
    %vm1545 = vcmp.lt.s32.totalorder %v1544, 2
    %vm1546 = vcmp.eq.s32.totalorder %v1544, 0
    %v1547 = vxor.u32 %v1542, 2147483648
    %v1548 = vsel %vm1546, %v1534, %v1547
    %vm1549 = vcmp.eq.s32.totalorder %v1544, 2
    %v1550 = vxor.u32 %v1534, 2147483648
    %v1551 = vsel %vm1549, %v1550, %v1542
    %v1552 = vsel %vm1545, %v1548, %v1551
    %v1553 = vsel %vm1543, nan, %v1552
    %v1554 = vand.u32 2147483647, %v151
    %vm1555 = vcmp.le.f32.partialorder %v1554, 0.7853982
    %vm1556 = vcmp.lt.s32.totalorder %v151, 0
    %v1557 = vand.u32 %v151, 2139095040
    %v1558 = vshrl.u32 %v1557, 23
    %v1559 = vsub.s32 %v1558, 127
    %v1560 = vand.u32 2147483647, %v151
    %v1561 = vand.u32 %v1560, 8388607
    %v1562 = vor.u32 %v1561, 8388608
    %v1563 = vsub.s32 0, %v1562
    %v1564 = vadd.s32 %v1559, 1
    %vm1565 = vcmp.gt.s32.totalorder %v1564, 0
    %v1566 = vsel %vm1565, %v1564, 0
    %v1567 = vshrl.u32 %v1566, 5
    %v1568 = vand.u32 %v1566, 31
    %v1569 = vsub.s32 32, %v1568
    %v1570 = vshrl.u32 683565275, %v1569
    %v1571 = vshll.u32 683565275, %v1568
    %v1572 = vshrl.u32 2475754826, %v1569
    %v1573 = vor.u32 %v1571, %v1572
    %v1574 = vshll.u32 2475754826, %v1568
    %v1575 = vshrl.u32 2131351028, %v1569
    %v1576 = vor.u32 %v1574, %v1575
    %v1577 = vshll.u32 2131351028, %v1568
    %v1578 = vshrl.u32 2102212464, %v1569
    %v1579 = vor.u32 %v1577, %v1578
    %v1580 = vshll.u32 2102212464, %v1568
    %v1581 = vshrl.u32 920167782, %v1569
    %v1582 = vor.u32 %v1580, %v1581
    %v1583 = vshll.u32 920167782, %v1568
    %v1584 = vshrl.u32 1326507024, %v1569
    %v1585 = vor.u32 %v1583, %v1584
    %vm1586 = vcmp.lt.s32.totalorder %v1567, 1
    %vm1587 = vcmp.lt.s32.totalorder %v1567, 2
    %vm1588 = vcmp.lt.s32.totalorder %v1567, 3
    %vm1589 = vcmp.lt.s32.totalorder %v1567, 4
    %v1590 = vsel %vm1586, %v1570, %v1573
    %v1591 = vsel %vm1589, %v1579, 2102212464
    %v1592 = vsel %vm1588, %v1576, %v1591
    %v1593 = vsel %vm1587, %v1590, %v1592
    %v1594 = vsel %vm1586, %v1573, %v1576
    %v1595 = vsel %vm1589, %v1582, 920167782
    %v1596 = vsel %vm1588, %v1579, %v1595
    %v1597 = vsel %vm1587, %v1594, %v1596
    %v1598 = vsel %vm1586, %v1576, %v1579
    %v1599 = vsel %vm1589, %v1585, 1326507024
    %v1600 = vsel %vm1588, %v1582, %v1599
    %v1601 = vsel %vm1587, %v1598, %v1600
    %v1602 = vshll.u32 %v1562, 8
    %v1603 = vand.u32 %v1602, 65535
    %v1604 = vshrl.u32 %v1602, 16
    %v1605 = vand.u32 %v1601, 65535
    %v1606 = vshrl.u32 %v1601, 16
    %v1607 = vmul.u32 %v1603, %v1605
    %v1608 = vmul.u32 %v1603, %v1606
    %v1609 = vmul.u32 %v1604, %v1605
    %v1610 = vmul.u32 %v1604, %v1606
    %v1611 = vshll.u32 %v1608, 16
    %v1612 = vshrl.u32 %v1608, 16
    %v1613 = vshll.u32 %v1609, 16
    %v1614 = vshrl.u32 %v1609, 16
    %vm1615 = vc.u32 %v1607, %v1611
    %v1616 = vsel %vm1615, 1, 0
    %v1617 = vadd.s32 %v1607, %v1611
    %v1618 = vadd.s32 %v1610, %v1616
    %vm1619 = vc.u32 %v1617, %v1613
    %v1620 = vsel %vm1619, 1, 0
    %v1621 = vadd.s32 %v1617, %v1613
    %v1622 = vadd.s32 %v1618, %v1620
    %v1623 = vadd.s32 %v1622, %v1612
    %v1624 = vadd.s32 %v1623, %v1614
    %v1625 = vand.u32 %v1602, 65535
    %v1626 = vshrl.u32 %v1602, 16
    %v1627 = vand.u32 %v1597, 65535
    %v1628 = vshrl.u32 %v1597, 16
    %v1629 = vmul.u32 %v1625, %v1627
    %v1630 = vmul.u32 %v1625, %v1628
    %v1631 = vmul.u32 %v1626, %v1627
    %v1632 = vmul.u32 %v1626, %v1628
    %v1633 = vshll.u32 %v1630, 16
    %v1634 = vshrl.u32 %v1630, 16
    %v1635 = vshll.u32 %v1631, 16
    %v1636 = vshrl.u32 %v1631, 16
    %vm1637 = vc.u32 %v1629, %v1633
    %v1638 = vsel %vm1637, 1, 0
    %v1639 = vadd.s32 %v1629, %v1633
    %v1640 = vadd.s32 %v1632, %v1638
    %vm1641 = vc.u32 %v1639, %v1635
    %v1642 = vsel %vm1641, 1, 0
    %v1643 = vadd.s32 %v1639, %v1635
    %v1644 = vadd.s32 %v1640, %v1642
    %v1645 = vadd.s32 %v1644, %v1634
    %v1646 = vadd.s32 %v1645, %v1636
    %v1647 = vmul.u32 %v1602, %v1593
    %v1648 = vadd.s32 %v1624, %v1643
    %vm1649 = vc.u32 %v1624, %v1643
    %v1650 = vadd.s32 %v1646, 1
    %v1651 = vsel %vm1649, %v1650, %v1646
    %v1652 = vadd.s32 %v1647, %v1651
    %v1653 = vadd.s32 %v1652, 536870912
    %v1654 = vshrl.u32 %v1653, 30
    %v1655 = vshll.u32 %v1654, 30
    %v1656 = vsub.s32 %v1652, %v1655
    %vm1657 = vcmp.lt.s32.totalorder %v1656, 0
    %v1658 = vsub.s32 0, %v1656
    %v1659 = vsel %vm1657, %v1658, %v1656
    %v1660 = vclz %v1659
    %v1661 = vsub.s32 %v1660, 2
    %vm1662 = vcmp.gt.s32.totalorder 0, %v1661
    %v1663 = vsel %vm1662, 0, %v1661
    %v1664 = vsub.s32 32, %v1663
    %v1665 = vshll.u32 %v1656, %v1663
    %v1666 = vshrl.u32 %v1648, %v1664
    %v1667 = vor.u32 %v1665, %v1666
    %v1668 = vsub.s32 4294967266, %v1663
    %v1669 = vadd.s32 %v1668, 127
    %v1670 = vshll.u32 %v1669, 23
    %v1671 = vor.u32 4788187, %v1670
    %v1672 = vand.u32 2147483647, %v1671
    %v1674 = vcvt.s32.f32 %v1667
    %v1675 = vmul.f32 %v1674, %v1672
    %v1676 = vxor.u32 %v1675, 2147483648
    %v1677 = vsel %vm1556, %v1676, %v1675
    %v1678 = vsub.s32 4, %v1654
    %v1679 = vsel %vm1556, %v1678, %v1654
    %v1680 = vsel %vm1555, %v151, %v1677
    %v1681 = vsel %vm1555, 0, %v1679
    %v1682 = vmul.f32 %v1680, %v1680
    %v1683 = vmul.f32 %v1682, -0.001358992
    %v1684 = vadd.f32 %v1683, 0.041655596
    %v1685 = vmul.f32 %v1682, %v1684
    %v1686 = vadd.f32 %v1685, -0.4999988
    %v1687 = vmul.f32 %v1682, %v1686
    %v1688 = vadd.f32 1.0, %v1687
    %v1689 = vmul.f32 %v1680, %v1680
    %v1690 = vmul.f32 %v1689, -0.00019511016
    %v1691 = vadd.f32 %v1690, 0.008332121
    %v1692 = vmul.f32 %v1689, %v1691
    %v1693 = vadd.f32 %v1692, -0.16666654
    %v1694 = vmul.f32 %v1689, %v1693
    %v1695 = vadd.f32 %v1694, 1.0
    %v1696 = vmul.f32 %v1695, %v1680
    %vm1697 = vweird.f32 %v151
    %v1698 = vand.u32 %v1681, 3
    %vm1699 = vcmp.lt.s32.totalorder %v1698, 2
    %vm1700 = vcmp.eq.s32.totalorder %v1698, 0
    %v1701 = vxor.u32 %v1696, 2147483648
    %v1702 = vsel %vm1700, %v1688, %v1701
    %vm1703 = vcmp.eq.s32.totalorder %v1698, 2
    %v1704 = vxor.u32 %v1688, 2147483648
    %v1705 = vsel %vm1703, %v1704, %v1696
    %v1706 = vsel %vm1699, %v1702, %v1705
    %v1707 = vsel %vm1697, nan, %v1706
    %v1708 = vand.u32 2147483647, %v152
    %vm1709 = vcmp.le.f32.partialorder %v1708, 0.7853982
    %vm1710 = vcmp.lt.s32.totalorder %v152, 0
    %v1711 = vand.u32 %v152, 2139095040
    %v1712 = vshrl.u32 %v1711, 23
    %v1713 = vsub.s32 %v1712, 127
    %v1714 = vand.u32 2147483647, %v152
    %v1715 = vand.u32 %v1714, 8388607
    %v1716 = vor.u32 %v1715, 8388608
    %v1717 = vsub.s32 0, %v1716
    %v1718 = vadd.s32 %v1713, 1
    %vm1719 = vcmp.gt.s32.totalorder %v1718, 0
    %v1720 = vsel %vm1719, %v1718, 0
    %v1721 = vshrl.u32 %v1720, 5
    %v1722 = vand.u32 %v1720, 31
    %v1723 = vsub.s32 32, %v1722
    %v1724 = vshrl.u32 683565275, %v1723
    %v1725 = vshll.u32 683565275, %v1722
    %v1726 = vshrl.u32 2475754826, %v1723
    %v1727 = vor.u32 %v1725, %v1726
    %v1728 = vshll.u32 2475754826, %v1722
    %v1729 = vshrl.u32 2131351028, %v1723
    %v1730 = vor.u32 %v1728, %v1729
    %v1731 = vshll.u32 2131351028, %v1722
    %v1732 = vshrl.u32 2102212464, %v1723
    %v1733 = vor.u32 %v1731, %v1732
    %v1734 = vshll.u32 2102212464, %v1722
    %v1735 = vshrl.u32 920167782, %v1723
    %v1736 = vor.u32 %v1734, %v1735
    %v1737 = vshll.u32 920167782, %v1722
    %v1738 = vshrl.u32 1326507024, %v1723
    %v1739 = vor.u32 %v1737, %v1738
    %vm1740 = vcmp.lt.s32.totalorder %v1721, 1
    %vm1741 = vcmp.lt.s32.totalorder %v1721, 2
    %vm1742 = vcmp.lt.s32.totalorder %v1721, 3
    %vm1743 = vcmp.lt.s32.totalorder %v1721, 4
    %v1744 = vsel %vm1740, %v1724, %v1727
    %v1745 = vsel %vm1743, %v1733, 2102212464
    %v1746 = vsel %vm1742, %v1730, %v1745
    %v1747 = vsel %vm1741, %v1744, %v1746
    %v1748 = vsel %vm1740, %v1727, %v1730
    %v1749 = vsel %vm1743, %v1736, 920167782
    %v1750 = vsel %vm1742, %v1733, %v1749
    %v1751 = vsel %vm1741, %v1748, %v1750
    %v1752 = vsel %vm1740, %v1730, %v1733
    %v1753 = vsel %vm1743, %v1739, 1326507024
    %v1754 = vsel %vm1742, %v1736, %v1753
    %v1755 = vsel %vm1741, %v1752, %v1754
    %v1756 = vshll.u32 %v1716, 8
    %v1757 = vand.u32 %v1756, 65535
    %v1758 = vshrl.u32 %v1756, 16
    %v1759 = vand.u32 %v1755, 65535
    %v1760 = vshrl.u32 %v1755, 16
    %v1761 = vmul.u32 %v1757, %v1759
    %v1762 = vmul.u32 %v1757, %v1760
    %v1763 = vmul.u32 %v1758, %v1759
    %v1764 = vmul.u32 %v1758, %v1760
    %v1765 = vshll.u32 %v1762, 16
    %v1766 = vshrl.u32 %v1762, 16
    %v1767 = vshll.u32 %v1763, 16
    %v1768 = vshrl.u32 %v1763, 16
    %vm1769 = vc.u32 %v1761, %v1765
    %v1770 = vsel %vm1769, 1, 0
    %v1771 = vadd.s32 %v1761, %v1765
    %v1772 = vadd.s32 %v1764, %v1770
    %vm1773 = vc.u32 %v1771, %v1767
    %v1774 = vsel %vm1773, 1, 0
    %v1775 = vadd.s32 %v1771, %v1767
    %v1776 = vadd.s32 %v1772, %v1774
    %v1777 = vadd.s32 %v1776, %v1766
    %v1778 = vadd.s32 %v1777, %v1768
    %v1779 = vand.u32 %v1756, 65535
    %v1780 = vshrl.u32 %v1756, 16
    %v1781 = vand.u32 %v1751, 65535
    %v1782 = vshrl.u32 %v1751, 16
    %v1783 = vmul.u32 %v1779, %v1781
    %v1784 = vmul.u32 %v1779, %v1782
    %v1785 = vmul.u32 %v1780, %v1781
    %v1786 = vmul.u32 %v1780, %v1782
    %v1787 = vshll.u32 %v1784, 16
    %v1788 = vshrl.u32 %v1784, 16
    %v1789 = vshll.u32 %v1785, 16
    %v1790 = vshrl.u32 %v1785, 16
    %vm1791 = vc.u32 %v1783, %v1787
    %v1792 = vsel %vm1791, 1, 0
    %v1793 = vadd.s32 %v1783, %v1787
    %v1794 = vadd.s32 %v1786, %v1792
    %vm1795 = vc.u32 %v1793, %v1789
    %v1796 = vsel %vm1795, 1, 0
    %v1797 = vadd.s32 %v1793, %v1789
    %v1798 = vadd.s32 %v1794, %v1796
    %v1799 = vadd.s32 %v1798, %v1788
    %v1800 = vadd.s32 %v1799, %v1790
    %v1801 = vmul.u32 %v1756, %v1747
    %v1802 = vadd.s32 %v1778, %v1797
    %vm1803 = vc.u32 %v1778, %v1797
    %v1804 = vadd.s32 %v1800, 1
    %v1805 = vsel %vm1803, %v1804, %v1800
    %v1806 = vadd.s32 %v1801, %v1805
    %v1807 = vadd.s32 %v1806, 536870912
    %v1808 = vshrl.u32 %v1807, 30
    %v1809 = vshll.u32 %v1808, 30
    %v1810 = vsub.s32 %v1806, %v1809
    %vm1811 = vcmp.lt.s32.totalorder %v1810, 0
    %v1812 = vsub.s32 0, %v1810
    %v1813 = vsel %vm1811, %v1812, %v1810
    %v1814 = vclz %v1813
    %v1815 = vsub.s32 %v1814, 2
    %vm1816 = vcmp.gt.s32.totalorder 0, %v1815
    %v1817 = vsel %vm1816, 0, %v1815
    %v1818 = vsub.s32 32, %v1817
    %v1819 = vshll.u32 %v1810, %v1817
    %v1820 = vshrl.u32 %v1802, %v1818
    %v1821 = vor.u32 %v1819, %v1820
    %v1822 = vsub.s32 4294967266, %v1817
    %v1823 = vadd.s32 %v1822, 127
    %v1824 = vshll.u32 %v1823, 23
    %v1825 = vor.u32 4788187, %v1824
    %v1826 = vand.u32 2147483647, %v1825
    %v1828 = vcvt.s32.f32 %v1821
    %v1829 = vmul.f32 %v1828, %v1826
    %v1830 = vxor.u32 %v1829, 2147483648
    %v1831 = vsel %vm1710, %v1830, %v1829
    %v1832 = vsub.s32 4, %v1808
    %v1833 = vsel %vm1710, %v1832, %v1808
    %v1834 = vsel %vm1709, %v152, %v1831
    %v1835 = vsel %vm1709, 0, %v1833
    %v1836 = vmul.f32 %v1834, %v1834
    %v1837 = vmul.f32 %v1836, -0.001358992
    %v1838 = vadd.f32 %v1837, 0.041655596
    %v1839 = vmul.f32 %v1836, %v1838
    %v1840 = vadd.f32 %v1839, -0.4999988
    %v1841 = vmul.f32 %v1836, %v1840
    %v1842 = vadd.f32 1.0, %v1841
    %v1843 = vmul.f32 %v1834, %v1834
    %v1844 = vmul.f32 %v1843, -0.00019511016
    %v1845 = vadd.f32 %v1844, 0.008332121
    %v1846 = vmul.f32 %v1843, %v1845
    %v1847 = vadd.f32 %v1846, -0.16666654
    %v1848 = vmul.f32 %v1843, %v1847
    %v1849 = vadd.f32 %v1848, 1.0
    %v1850 = vmul.f32 %v1849, %v1834
    %vm1851 = vweird.f32 %v152
    %v1852 = vand.u32 %v1835, 3
    %vm1853 = vcmp.lt.s32.totalorder %v1852, 2
    %vm1854 = vcmp.eq.s32.totalorder %v1852, 0
    %v1855 = vxor.u32 %v1850, 2147483648
    %v1856 = vsel %vm1854, %v1842, %v1855
    %vm1857 = vcmp.eq.s32.totalorder %v1852, 2
    %v1858 = vxor.u32 %v1842, 2147483648
    %v1859 = vsel %vm1857, %v1858, %v1850
    %v1860 = vsel %vm1853, %v1856, %v1859
    %v1861 = vsel %vm1851, nan, %v1860
    %v1862 = vand.u32 2147483647, %v153
    %vm1863 = vcmp.le.f32.partialorder %v1862, 0.7853982
    %vm1864 = vcmp.lt.s32.totalorder %v153, 0
    %v1865 = vand.u32 %v153, 2139095040
    %v1866 = vshrl.u32 %v1865, 23
    %v1867 = vsub.s32 %v1866, 127
    %v1868 = vand.u32 2147483647, %v153
    %v1869 = vand.u32 %v1868, 8388607
    %v1870 = vor.u32 %v1869, 8388608
    %v1871 = vsub.s32 0, %v1870
    %v1872 = vadd.s32 %v1867, 1
    %vm1873 = vcmp.gt.s32.totalorder %v1872, 0
    %v1874 = vsel %vm1873, %v1872, 0
    %v1875 = vshrl.u32 %v1874, 5
    %v1876 = vand.u32 %v1874, 31
    %v1877 = vsub.s32 32, %v1876
    %v1878 = vshrl.u32 683565275, %v1877
    %v1879 = vshll.u32 683565275, %v1876
    %v1880 = vshrl.u32 2475754826, %v1877
    %v1881 = vor.u32 %v1879, %v1880
    %v1882 = vshll.u32 2475754826, %v1876
    %v1883 = vshrl.u32 2131351028, %v1877
    %v1884 = vor.u32 %v1882, %v1883
    %v1885 = vshll.u32 2131351028, %v1876
    %v1886 = vshrl.u32 2102212464, %v1877
    %v1887 = vor.u32 %v1885, %v1886
    %v1888 = vshll.u32 2102212464, %v1876
    %v1889 = vshrl.u32 920167782, %v1877
    %v1890 = vor.u32 %v1888, %v1889
    %v1891 = vshll.u32 920167782, %v1876
    %v1892 = vshrl.u32 1326507024, %v1877
    %v1893 = vor.u32 %v1891, %v1892
    %vm1894 = vcmp.lt.s32.totalorder %v1875, 1
    %vm1895 = vcmp.lt.s32.totalorder %v1875, 2
    %vm1896 = vcmp.lt.s32.totalorder %v1875, 3
    %vm1897 = vcmp.lt.s32.totalorder %v1875, 4
    %v1898 = vsel %vm1894, %v1878, %v1881
    %v1899 = vsel %vm1897, %v1887, 2102212464
    %v1900 = vsel %vm1896, %v1884, %v1899
    %v1901 = vsel %vm1895, %v1898, %v1900
    %v1902 = vsel %vm1894, %v1881, %v1884
    %v1903 = vsel %vm1897, %v1890, 920167782
    %v1904 = vsel %vm1896, %v1887, %v1903
    %v1905 = vsel %vm1895, %v1902, %v1904
    %v1906 = vsel %vm1894, %v1884, %v1887
    %v1907 = vsel %vm1897, %v1893, 1326507024
    %v1908 = vsel %vm1896, %v1890, %v1907
    %v1909 = vsel %vm1895, %v1906, %v1908
    %v1910 = vshll.u32 %v1870, 8
    %v1911 = vand.u32 %v1910, 65535
    %v1912 = vshrl.u32 %v1910, 16
    %v1913 = vand.u32 %v1909, 65535
    %v1914 = vshrl.u32 %v1909, 16
    %v1915 = vmul.u32 %v1911, %v1913
    %v1916 = vmul.u32 %v1911, %v1914
    %v1917 = vmul.u32 %v1912, %v1913
    %v1918 = vmul.u32 %v1912, %v1914
    %v1919 = vshll.u32 %v1916, 16
    %v1920 = vshrl.u32 %v1916, 16
    %v1921 = vshll.u32 %v1917, 16
    %v1922 = vshrl.u32 %v1917, 16
    %vm1923 = vc.u32 %v1915, %v1919
    %v1924 = vsel %vm1923, 1, 0
    %v1925 = vadd.s32 %v1915, %v1919
    %v1926 = vadd.s32 %v1918, %v1924
    %vm1927 = vc.u32 %v1925, %v1921
    %v1928 = vsel %vm1927, 1, 0
    %v1929 = vadd.s32 %v1925, %v1921
    %v1930 = vadd.s32 %v1926, %v1928
    %v1931 = vadd.s32 %v1930, %v1920
    %v1932 = vadd.s32 %v1931, %v1922
    %v1933 = vand.u32 %v1910, 65535
    %v1934 = vshrl.u32 %v1910, 16
    %v1935 = vand.u32 %v1905, 65535
    %v1936 = vshrl.u32 %v1905, 16
    %v1937 = vmul.u32 %v1933, %v1935
    %v1938 = vmul.u32 %v1933, %v1936
    %v1939 = vmul.u32 %v1934, %v1935
    %v1940 = vmul.u32 %v1934, %v1936
    %v1941 = vshll.u32 %v1938, 16
    %v1942 = vshrl.u32 %v1938, 16
    %v1943 = vshll.u32 %v1939, 16
    %v1944 = vshrl.u32 %v1939, 16
    %vm1945 = vc.u32 %v1937, %v1941
    %v1946 = vsel %vm1945, 1, 0
    %v1947 = vadd.s32 %v1937, %v1941
    %v1948 = vadd.s32 %v1940, %v1946
    %vm1949 = vc.u32 %v1947, %v1943
    %v1950 = vsel %vm1949, 1, 0
    %v1951 = vadd.s32 %v1947, %v1943
    %v1952 = vadd.s32 %v1948, %v1950
    %v1953 = vadd.s32 %v1952, %v1942
    %v1954 = vadd.s32 %v1953, %v1944
    %v1955 = vmul.u32 %v1910, %v1901
    %v1956 = vadd.s32 %v1932, %v1951
    %vm1957 = vc.u32 %v1932, %v1951
    %v1958 = vadd.s32 %v1954, 1
    %v1959 = vsel %vm1957, %v1958, %v1954
    %v1960 = vadd.s32 %v1955, %v1959
    %v1961 = vadd.s32 %v1960, 536870912
    %v1962 = vshrl.u32 %v1961, 30
    %v1963 = vshll.u32 %v1962, 30
    %v1964 = vsub.s32 %v1960, %v1963
    %vm1965 = vcmp.lt.s32.totalorder %v1964, 0
    %v1966 = vsub.s32 0, %v1964
    %v1967 = vsel %vm1965, %v1966, %v1964
    %v1968 = vclz %v1967
    %v1969 = vsub.s32 %v1968, 2
    %vm1970 = vcmp.gt.s32.totalorder 0, %v1969
    %v1971 = vsel %vm1970, 0, %v1969
    %v1972 = vsub.s32 32, %v1971
    %v1973 = vshll.u32 %v1964, %v1971
    %v1974 = vshrl.u32 %v1956, %v1972
    %v1975 = vor.u32 %v1973, %v1974
    %v1976 = vsub.s32 4294967266, %v1971
    %v1977 = vadd.s32 %v1976, 127
    %v1978 = vshll.u32 %v1977, 23
    %v1979 = vor.u32 4788187, %v1978
    %v1980 = vand.u32 2147483647, %v1979
    %v1982 = vcvt.s32.f32 %v1975
    %v1983 = vmul.f32 %v1982, %v1980
    %v1984 = vxor.u32 %v1983, 2147483648
    %v1985 = vsel %vm1864, %v1984, %v1983
    %v1986 = vsub.s32 4, %v1962
    %v1987 = vsel %vm1864, %v1986, %v1962
    %v1988 = vsel %vm1863, %v153, %v1985
    %v1989 = vsel %vm1863, 0, %v1987
    %v1990 = vmul.f32 %v1988, %v1988
    %v1991 = vmul.f32 %v1990, -0.001358992
    %v1992 = vadd.f32 %v1991, 0.041655596
    %v1993 = vmul.f32 %v1990, %v1992
    %v1994 = vadd.f32 %v1993, -0.4999988
    %v1995 = vmul.f32 %v1990, %v1994
    %v1996 = vadd.f32 1.0, %v1995
    %v1997 = vmul.f32 %v1988, %v1988
    %v1998 = vmul.f32 %v1997, -0.00019511016
    %v1999 = vadd.f32 %v1998, 0.008332121
    %v2000 = vmul.f32 %v1997, %v1999
    %v2001 = vadd.f32 %v2000, -0.16666654
    %v2002 = vmul.f32 %v1997, %v2001
    %v2003 = vadd.f32 %v2002, 1.0
    %v2004 = vmul.f32 %v2003, %v1988
    %vm2005 = vweird.f32 %v153
    %v2006 = vand.u32 %v1989, 3
    %vm2007 = vcmp.lt.s32.totalorder %v2006, 2
    %vm2008 = vcmp.eq.s32.totalorder %v2006, 0
    %v2009 = vxor.u32 %v2004, 2147483648
    %v2010 = vsel %vm2008, %v1996, %v2009
    %vm2011 = vcmp.eq.s32.totalorder %v2006, 2
    %v2012 = vxor.u32 %v1996, 2147483648
    %v2013 = vsel %vm2011, %v2012, %v2004
    %v2014 = vsel %vm2007, %v2010, %v2013
    %v2015 = vsel %vm2005, nan, %v2014
    %v2016 = vand.u32 2147483647, %v154
    %vm2017 = vcmp.le.f32.partialorder %v2016, 0.7853982
    %vm2018 = vcmp.lt.s32.totalorder %v154, 0
    %v2019 = vand.u32 %v154, 2139095040
    %v2020 = vshrl.u32 %v2019, 23
    %v2021 = vsub.s32 %v2020, 127
    %v2022 = vand.u32 2147483647, %v154
    %v2023 = vand.u32 %v2022, 8388607
    %v2024 = vor.u32 %v2023, 8388608
    %v2025 = vsub.s32 0, %v2024
    %v2026 = vadd.s32 %v2021, 1
    %vm2027 = vcmp.gt.s32.totalorder %v2026, 0
    %v2028 = vsel %vm2027, %v2026, 0
    %v2029 = vshrl.u32 %v2028, 5
    %v2030 = vand.u32 %v2028, 31
    %v2031 = vsub.s32 32, %v2030
    %v2032 = vshrl.u32 683565275, %v2031
    %v2033 = vshll.u32 683565275, %v2030
    %v2034 = vshrl.u32 2475754826, %v2031
    %v2035 = vor.u32 %v2033, %v2034
    %v2036 = vshll.u32 2475754826, %v2030
    %v2037 = vshrl.u32 2131351028, %v2031
    %v2038 = vor.u32 %v2036, %v2037
    %v2039 = vshll.u32 2131351028, %v2030
    %v2040 = vshrl.u32 2102212464, %v2031
    %v2041 = vor.u32 %v2039, %v2040
    %v2042 = vshll.u32 2102212464, %v2030
    %v2043 = vshrl.u32 920167782, %v2031
    %v2044 = vor.u32 %v2042, %v2043
    %v2045 = vshll.u32 920167782, %v2030
    %v2046 = vshrl.u32 1326507024, %v2031
    %v2047 = vor.u32 %v2045, %v2046
    %vm2048 = vcmp.lt.s32.totalorder %v2029, 1
    %vm2049 = vcmp.lt.s32.totalorder %v2029, 2
    %vm2050 = vcmp.lt.s32.totalorder %v2029, 3
    %vm2051 = vcmp.lt.s32.totalorder %v2029, 4
    %v2052 = vsel %vm2048, %v2032, %v2035
    %v2053 = vsel %vm2051, %v2041, 2102212464
    %v2054 = vsel %vm2050, %v2038, %v2053
    %v2055 = vsel %vm2049, %v2052, %v2054
    %v2056 = vsel %vm2048, %v2035, %v2038
    %v2057 = vsel %vm2051, %v2044, 920167782
    %v2058 = vsel %vm2050, %v2041, %v2057
    %v2059 = vsel %vm2049, %v2056, %v2058
    %v2060 = vsel %vm2048, %v2038, %v2041
    %v2061 = vsel %vm2051, %v2047, 1326507024
    %v2062 = vsel %vm2050, %v2044, %v2061
    %v2063 = vsel %vm2049, %v2060, %v2062
    %v2064 = vshll.u32 %v2024, 8
    %v2065 = vand.u32 %v2064, 65535
    %v2066 = vshrl.u32 %v2064, 16
    %v2067 = vand.u32 %v2063, 65535
    %v2068 = vshrl.u32 %v2063, 16
    %v2069 = vmul.u32 %v2065, %v2067
    %v2070 = vmul.u32 %v2065, %v2068
    %v2071 = vmul.u32 %v2066, %v2067
    %v2072 = vmul.u32 %v2066, %v2068
    %v2073 = vshll.u32 %v2070, 16
    %v2074 = vshrl.u32 %v2070, 16
    %v2075 = vshll.u32 %v2071, 16
    %v2076 = vshrl.u32 %v2071, 16
    %vm2077 = vc.u32 %v2069, %v2073
    %v2078 = vsel %vm2077, 1, 0
    %v2079 = vadd.s32 %v2069, %v2073
    %v2080 = vadd.s32 %v2072, %v2078
    %vm2081 = vc.u32 %v2079, %v2075
    %v2082 = vsel %vm2081, 1, 0
    %v2083 = vadd.s32 %v2079, %v2075
    %v2084 = vadd.s32 %v2080, %v2082
    %v2085 = vadd.s32 %v2084, %v2074
    %v2086 = vadd.s32 %v2085, %v2076
    %v2087 = vand.u32 %v2064, 65535
    %v2088 = vshrl.u32 %v2064, 16
    %v2089 = vand.u32 %v2059, 65535
    %v2090 = vshrl.u32 %v2059, 16
    %v2091 = vmul.u32 %v2087, %v2089
    %v2092 = vmul.u32 %v2087, %v2090
    %v2093 = vmul.u32 %v2088, %v2089
    %v2094 = vmul.u32 %v2088, %v2090
    %v2095 = vshll.u32 %v2092, 16
    %v2096 = vshrl.u32 %v2092, 16
    %v2097 = vshll.u32 %v2093, 16
    %v2098 = vshrl.u32 %v2093, 16
    %vm2099 = vc.u32 %v2091, %v2095
    %v2100 = vsel %vm2099, 1, 0
    %v2101 = vadd.s32 %v2091, %v2095
    %v2102 = vadd.s32 %v2094, %v2100
    %vm2103 = vc.u32 %v2101, %v2097
    %v2104 = vsel %vm2103, 1, 0
    %v2105 = vadd.s32 %v2101, %v2097
    %v2106 = vadd.s32 %v2102, %v2104
    %v2107 = vadd.s32 %v2106, %v2096
    %v2108 = vadd.s32 %v2107, %v2098
    %v2109 = vmul.u32 %v2064, %v2055
    %v2110 = vadd.s32 %v2086, %v2105
    %vm2111 = vc.u32 %v2086, %v2105
    %v2112 = vadd.s32 %v2108, 1
    %v2113 = vsel %vm2111, %v2112, %v2108
    %v2114 = vadd.s32 %v2109, %v2113
    %v2115 = vadd.s32 %v2114, 536870912
    %v2116 = vshrl.u32 %v2115, 30
    %v2117 = vshll.u32 %v2116, 30
    %v2118 = vsub.s32 %v2114, %v2117
    %vm2119 = vcmp.lt.s32.totalorder %v2118, 0
    %v2120 = vsub.s32 0, %v2118
    %v2121 = vsel %vm2119, %v2120, %v2118
    %v2122 = vclz %v2121
    %v2123 = vsub.s32 %v2122, 2
    %vm2124 = vcmp.gt.s32.totalorder 0, %v2123
    %v2125 = vsel %vm2124, 0, %v2123
    %v2126 = vsub.s32 32, %v2125
    %v2127 = vshll.u32 %v2118, %v2125
    %v2128 = vshrl.u32 %v2110, %v2126
    %v2129 = vor.u32 %v2127, %v2128
    %v2130 = vsub.s32 4294967266, %v2125
    %v2131 = vadd.s32 %v2130, 127
    %v2132 = vshll.u32 %v2131, 23
    %v2133 = vor.u32 4788187, %v2132
    %v2134 = vand.u32 2147483647, %v2133
    %v2136 = vcvt.s32.f32 %v2129
    %v2137 = vmul.f32 %v2136, %v2134
    %v2138 = vxor.u32 %v2137, 2147483648
    %v2139 = vsel %vm2018, %v2138, %v2137
    %v2140 = vsub.s32 4, %v2116
    %v2141 = vsel %vm2018, %v2140, %v2116
    %v2142 = vsel %vm2017, %v154, %v2139
    %v2143 = vsel %vm2017, 0, %v2141
    %v2144 = vmul.f32 %v2142, %v2142
    %v2145 = vmul.f32 %v2144, -0.001358992
    %v2146 = vadd.f32 %v2145, 0.041655596
    %v2147 = vmul.f32 %v2144, %v2146
    %v2148 = vadd.f32 %v2147, -0.4999988
    %v2149 = vmul.f32 %v2144, %v2148
    %v2150 = vadd.f32 1.0, %v2149
    %v2151 = vmul.f32 %v2142, %v2142
    %v2152 = vmul.f32 %v2151, -0.00019511016
    %v2153 = vadd.f32 %v2152, 0.008332121
    %v2154 = vmul.f32 %v2151, %v2153
    %v2155 = vadd.f32 %v2154, -0.16666654
    %v2156 = vmul.f32 %v2151, %v2155
    %v2157 = vadd.f32 %v2156, 1.0
    %v2158 = vmul.f32 %v2157, %v2142
    %vm2159 = vweird.f32 %v154
    %v2160 = vand.u32 %v2143, 3
    %vm2161 = vcmp.lt.s32.totalorder %v2160, 2
    %vm2162 = vcmp.eq.s32.totalorder %v2160, 0
    %v2163 = vxor.u32 %v2158, 2147483648
    %v2164 = vsel %vm2162, %v2150, %v2163
    %vm2165 = vcmp.eq.s32.totalorder %v2160, 2
    %v2166 = vxor.u32 %v2150, 2147483648
    %v2167 = vsel %vm2165, %v2166, %v2158
    %v2168 = vsel %vm2161, %v2164, %v2167
    %v2169 = vsel %vm2159, nan, %v2168
    %v2170 = vand.u32 2147483647, %v155
    %vm2171 = vcmp.le.f32.partialorder %v2170, 0.7853982
    %vm2172 = vcmp.lt.s32.totalorder %v155, 0
    %v2173 = vand.u32 %v155, 2139095040
    %v2174 = vshrl.u32 %v2173, 23
    %v2175 = vsub.s32 %v2174, 127
    %v2176 = vand.u32 2147483647, %v155
    %v2177 = vand.u32 %v2176, 8388607
    %v2178 = vor.u32 %v2177, 8388608
    %v2179 = vsub.s32 0, %v2178
    %v2180 = vadd.s32 %v2175, 1
    %vm2181 = vcmp.gt.s32.totalorder %v2180, 0
    %v2182 = vsel %vm2181, %v2180, 0
    %v2183 = vshrl.u32 %v2182, 5
    %v2184 = vand.u32 %v2182, 31
    %v2185 = vsub.s32 32, %v2184
    %v2186 = vshrl.u32 683565275, %v2185
    %v2187 = vshll.u32 683565275, %v2184
    %v2188 = vshrl.u32 2475754826, %v2185
    %v2189 = vor.u32 %v2187, %v2188
    %v2190 = vshll.u32 2475754826, %v2184
    %v2191 = vshrl.u32 2131351028, %v2185
    %v2192 = vor.u32 %v2190, %v2191
    %v2193 = vshll.u32 2131351028, %v2184
    %v2194 = vshrl.u32 2102212464, %v2185
    %v2195 = vor.u32 %v2193, %v2194
    %v2196 = vshll.u32 2102212464, %v2184
    %v2197 = vshrl.u32 920167782, %v2185
    %v2198 = vor.u32 %v2196, %v2197
    %v2199 = vshll.u32 920167782, %v2184
    %v2200 = vshrl.u32 1326507024, %v2185
    %v2201 = vor.u32 %v2199, %v2200
    %vm2202 = vcmp.lt.s32.totalorder %v2183, 1
    %vm2203 = vcmp.lt.s32.totalorder %v2183, 2
    %vm2204 = vcmp.lt.s32.totalorder %v2183, 3
    %vm2205 = vcmp.lt.s32.totalorder %v2183, 4
    %v2206 = vsel %vm2202, %v2186, %v2189
    %v2207 = vsel %vm2205, %v2195, 2102212464
    %v2208 = vsel %vm2204, %v2192, %v2207
    %v2209 = vsel %vm2203, %v2206, %v2208
    %v2210 = vsel %vm2202, %v2189, %v2192
    %v2211 = vsel %vm2205, %v2198, 920167782
    %v2212 = vsel %vm2204, %v2195, %v2211
    %v2213 = vsel %vm2203, %v2210, %v2212
    %v2214 = vsel %vm2202, %v2192, %v2195
    %v2215 = vsel %vm2205, %v2201, 1326507024
    %v2216 = vsel %vm2204, %v2198, %v2215
    %v2217 = vsel %vm2203, %v2214, %v2216
    %v2218 = vshll.u32 %v2178, 8
    %v2219 = vand.u32 %v2218, 65535
    %v2220 = vshrl.u32 %v2218, 16
    %v2221 = vand.u32 %v2217, 65535
    %v2222 = vshrl.u32 %v2217, 16
    %v2223 = vmul.u32 %v2219, %v2221
    %v2224 = vmul.u32 %v2219, %v2222
    %v2225 = vmul.u32 %v2220, %v2221
    %v2226 = vmul.u32 %v2220, %v2222
    %v2227 = vshll.u32 %v2224, 16
    %v2228 = vshrl.u32 %v2224, 16
    %v2229 = vshll.u32 %v2225, 16
    %v2230 = vshrl.u32 %v2225, 16
    %vm2231 = vc.u32 %v2223, %v2227
    %v2232 = vsel %vm2231, 1, 0
    %v2233 = vadd.s32 %v2223, %v2227
    %v2234 = vadd.s32 %v2226, %v2232
    %vm2235 = vc.u32 %v2233, %v2229
    %v2236 = vsel %vm2235, 1, 0
    %v2237 = vadd.s32 %v2233, %v2229
    %v2238 = vadd.s32 %v2234, %v2236
    %v2239 = vadd.s32 %v2238, %v2228
    %v2240 = vadd.s32 %v2239, %v2230
    %v2241 = vand.u32 %v2218, 65535
    %v2242 = vshrl.u32 %v2218, 16
    %v2243 = vand.u32 %v2213, 65535
    %v2244 = vshrl.u32 %v2213, 16
    %v2245 = vmul.u32 %v2241, %v2243
    %v2246 = vmul.u32 %v2241, %v2244
    %v2247 = vmul.u32 %v2242, %v2243
    %v2248 = vmul.u32 %v2242, %v2244
    %v2249 = vshll.u32 %v2246, 16
    %v2250 = vshrl.u32 %v2246, 16
    %v2251 = vshll.u32 %v2247, 16
    %v2252 = vshrl.u32 %v2247, 16
    %vm2253 = vc.u32 %v2245, %v2249
    %v2254 = vsel %vm2253, 1, 0
    %v2255 = vadd.s32 %v2245, %v2249
    %v2256 = vadd.s32 %v2248, %v2254
    %vm2257 = vc.u32 %v2255, %v2251
    %v2258 = vsel %vm2257, 1, 0
    %v2259 = vadd.s32 %v2255, %v2251
    %v2260 = vadd.s32 %v2256, %v2258
    %v2261 = vadd.s32 %v2260, %v2250
    %v2262 = vadd.s32 %v2261, %v2252
    %v2263 = vmul.u32 %v2218, %v2209
    %v2264 = vadd.s32 %v2240, %v2259
    %vm2265 = vc.u32 %v2240, %v2259
    %v2266 = vadd.s32 %v2262, 1
    %v2267 = vsel %vm2265, %v2266, %v2262
    %v2268 = vadd.s32 %v2263, %v2267
    %v2269 = vadd.s32 %v2268, 536870912
    %v2270 = vshrl.u32 %v2269, 30
    %v2271 = vshll.u32 %v2270, 30
    %v2272 = vsub.s32 %v2268, %v2271
    %vm2273 = vcmp.lt.s32.totalorder %v2272, 0
    %v2274 = vsub.s32 0, %v2272
    %v2275 = vsel %vm2273, %v2274, %v2272
    %v2276 = vclz %v2275
    %v2277 = vsub.s32 %v2276, 2
    %vm2278 = vcmp.gt.s32.totalorder 0, %v2277
    %v2279 = vsel %vm2278, 0, %v2277
    %v2280 = vsub.s32 32, %v2279
    %v2281 = vshll.u32 %v2272, %v2279
    %v2282 = vshrl.u32 %v2264, %v2280
    %v2283 = vor.u32 %v2281, %v2282
    %v2284 = vsub.s32 4294967266, %v2279
    %v2285 = vadd.s32 %v2284, 127
    %v2286 = vshll.u32 %v2285, 23
    %v2287 = vor.u32 4788187, %v2286
    %v2288 = vand.u32 2147483647, %v2287
    %v2290 = vcvt.s32.f32 %v2283
    %v2291 = vmul.f32 %v2290, %v2288
    %v2292 = vxor.u32 %v2291, 2147483648
    %v2293 = vsel %vm2172, %v2292, %v2291
    %v2294 = vsub.s32 4, %v2270
    %v2295 = vsel %vm2172, %v2294, %v2270
    %v2296 = vsel %vm2171, %v155, %v2293
    %v2297 = vsel %vm2171, 0, %v2295
    %v2298 = vmul.f32 %v2296, %v2296
    %v2299 = vmul.f32 %v2298, -0.001358992
    %v2300 = vadd.f32 %v2299, 0.041655596
    %v2301 = vmul.f32 %v2298, %v2300
    %v2302 = vadd.f32 %v2301, -0.4999988
    %v2303 = vmul.f32 %v2298, %v2302
    %v2304 = vadd.f32 1.0, %v2303
    %v2305 = vmul.f32 %v2296, %v2296
    %v2306 = vmul.f32 %v2305, -0.00019511016
    %v2307 = vadd.f32 %v2306, 0.008332121
    %v2308 = vmul.f32 %v2305, %v2307
    %v2309 = vadd.f32 %v2308, -0.16666654
    %v2310 = vmul.f32 %v2305, %v2309
    %v2311 = vadd.f32 %v2310, 1.0
    %v2312 = vmul.f32 %v2311, %v2296
    %vm2313 = vweird.f32 %v155
    %v2314 = vand.u32 %v2297, 3
    %vm2315 = vcmp.lt.s32.totalorder %v2314, 2
    %vm2316 = vcmp.eq.s32.totalorder %v2314, 0
    %v2317 = vxor.u32 %v2312, 2147483648
    %v2318 = vsel %vm2316, %v2304, %v2317
    %vm2319 = vcmp.eq.s32.totalorder %v2314, 2
    %v2320 = vxor.u32 %v2304, 2147483648
    %v2321 = vsel %vm2319, %v2320, %v2312
    %v2322 = vsel %vm2315, %v2318, %v2321
    %v2323 = vsel %vm2313, nan, %v2322
    %v2324 = vand.u32 2147483647, %v156
    %vm2325 = vcmp.le.f32.partialorder %v2324, 0.7853982
    %vm2326 = vcmp.lt.s32.totalorder %v156, 0
    %v2327 = vand.u32 %v156, 2139095040
    %v2328 = vshrl.u32 %v2327, 23
    %v2329 = vsub.s32 %v2328, 127
    %v2330 = vand.u32 2147483647, %v156
    %v2331 = vand.u32 %v2330, 8388607
    %v2332 = vor.u32 %v2331, 8388608
    %v2333 = vsub.s32 0, %v2332
    %v2334 = vadd.s32 %v2329, 1
    %vm2335 = vcmp.gt.s32.totalorder %v2334, 0
    %v2336 = vsel %vm2335, %v2334, 0
    %v2337 = vshrl.u32 %v2336, 5
    %v2338 = vand.u32 %v2336, 31
    %v2339 = vsub.s32 32, %v2338
    %v2340 = vshrl.u32 683565275, %v2339
    %v2341 = vshll.u32 683565275, %v2338
    %v2342 = vshrl.u32 2475754826, %v2339
    %v2343 = vor.u32 %v2341, %v2342
    %v2344 = vshll.u32 2475754826, %v2338
    %v2345 = vshrl.u32 2131351028, %v2339
    %v2346 = vor.u32 %v2344, %v2345
    %v2347 = vshll.u32 2131351028, %v2338
    %v2348 = vshrl.u32 2102212464, %v2339
    %v2349 = vor.u32 %v2347, %v2348
    %v2350 = vshll.u32 2102212464, %v2338
    %v2351 = vshrl.u32 920167782, %v2339
    %v2352 = vor.u32 %v2350, %v2351
    %v2353 = vshll.u32 920167782, %v2338
    %v2354 = vshrl.u32 1326507024, %v2339
    %v2355 = vor.u32 %v2353, %v2354
    %vm2356 = vcmp.lt.s32.totalorder %v2337, 1
    %vm2357 = vcmp.lt.s32.totalorder %v2337, 2
    %vm2358 = vcmp.lt.s32.totalorder %v2337, 3
    %vm2359 = vcmp.lt.s32.totalorder %v2337, 4
    %v2360 = vsel %vm2356, %v2340, %v2343
    %v2361 = vsel %vm2359, %v2349, 2102212464
    %v2362 = vsel %vm2358, %v2346, %v2361
    %v2363 = vsel %vm2357, %v2360, %v2362
    %v2364 = vsel %vm2356, %v2343, %v2346
    %v2365 = vsel %vm2359, %v2352, 920167782
    %v2366 = vsel %vm2358, %v2349, %v2365
    %v2367 = vsel %vm2357, %v2364, %v2366
    %v2368 = vsel %vm2356, %v2346, %v2349
    %v2369 = vsel %vm2359, %v2355, 1326507024
    %v2370 = vsel %vm2358, %v2352, %v2369
    %v2371 = vsel %vm2357, %v2368, %v2370
    %v2372 = vshll.u32 %v2332, 8
    %v2373 = vand.u32 %v2372, 65535
    %v2374 = vshrl.u32 %v2372, 16
    %v2375 = vand.u32 %v2371, 65535
    %v2376 = vshrl.u32 %v2371, 16
    %v2377 = vmul.u32 %v2373, %v2375
    %v2378 = vmul.u32 %v2373, %v2376
    %v2379 = vmul.u32 %v2374, %v2375
    %v2380 = vmul.u32 %v2374, %v2376
    %v2381 = vshll.u32 %v2378, 16
    %v2382 = vshrl.u32 %v2378, 16
    %v2383 = vshll.u32 %v2379, 16
    %v2384 = vshrl.u32 %v2379, 16
    %vm2385 = vc.u32 %v2377, %v2381
    %v2386 = vsel %vm2385, 1, 0
    %v2387 = vadd.s32 %v2377, %v2381
    %v2388 = vadd.s32 %v2380, %v2386
    %vm2389 = vc.u32 %v2387, %v2383
    %v2390 = vsel %vm2389, 1, 0
    %v2391 = vadd.s32 %v2387, %v2383
    %v2392 = vadd.s32 %v2388, %v2390
    %v2393 = vadd.s32 %v2392, %v2382
    %v2394 = vadd.s32 %v2393, %v2384
    %v2395 = vand.u32 %v2372, 65535
    %v2396 = vshrl.u32 %v2372, 16
    %v2397 = vand.u32 %v2367, 65535
    %v2398 = vshrl.u32 %v2367, 16
    %v2399 = vmul.u32 %v2395, %v2397
    %v2400 = vmul.u32 %v2395, %v2398
    %v2401 = vmul.u32 %v2396, %v2397
    %v2402 = vmul.u32 %v2396, %v2398
    %v2403 = vshll.u32 %v2400, 16
    %v2404 = vshrl.u32 %v2400, 16
    %v2405 = vshll.u32 %v2401, 16
    %v2406 = vshrl.u32 %v2401, 16
    %vm2407 = vc.u32 %v2399, %v2403
    %v2408 = vsel %vm2407, 1, 0
    %v2409 = vadd.s32 %v2399, %v2403
    %v2410 = vadd.s32 %v2402, %v2408
    %vm2411 = vc.u32 %v2409, %v2405
    %v2412 = vsel %vm2411, 1, 0
    %v2413 = vadd.s32 %v2409, %v2405
    %v2414 = vadd.s32 %v2410, %v2412
    %v2415 = vadd.s32 %v2414, %v2404
    %v2416 = vadd.s32 %v2415, %v2406
    %v2417 = vmul.u32 %v2372, %v2363
    %v2418 = vadd.s32 %v2394, %v2413
    %vm2419 = vc.u32 %v2394, %v2413
    %v2420 = vadd.s32 %v2416, 1
    %v2421 = vsel %vm2419, %v2420, %v2416
    %v2422 = vadd.s32 %v2417, %v2421
    %v2423 = vadd.s32 %v2422, 536870912
    %v2424 = vshrl.u32 %v2423, 30
    %v2425 = vshll.u32 %v2424, 30
    %v2426 = vsub.s32 %v2422, %v2425
    %vm2427 = vcmp.lt.s32.totalorder %v2426, 0
    %v2428 = vsub.s32 0, %v2426
    %v2429 = vsel %vm2427, %v2428, %v2426
    %v2430 = vclz %v2429
    %v2431 = vsub.s32 %v2430, 2
    %vm2432 = vcmp.gt.s32.totalorder 0, %v2431
    %v2433 = vsel %vm2432, 0, %v2431
    %v2434 = vsub.s32 32, %v2433
    %v2435 = vshll.u32 %v2426, %v2433
    %v2436 = vshrl.u32 %v2418, %v2434
    %v2437 = vor.u32 %v2435, %v2436
    %v2438 = vsub.s32 4294967266, %v2433
    %v2439 = vadd.s32 %v2438, 127
    %v2440 = vshll.u32 %v2439, 23
    %v2441 = vor.u32 4788187, %v2440
    %v2442 = vand.u32 2147483647, %v2441
    %v2444 = vcvt.s32.f32 %v2437
    %v2445 = vmul.f32 %v2444, %v2442
    %v2446 = vxor.u32 %v2445, 2147483648
    %v2447 = vsel %vm2326, %v2446, %v2445
    %v2448 = vsub.s32 4, %v2424
    %v2449 = vsel %vm2326, %v2448, %v2424
    %v2450 = vsel %vm2325, %v156, %v2447
    %v2451 = vsel %vm2325, 0, %v2449
    %v2452 = vmul.f32 %v2450, %v2450
    %v2453 = vmul.f32 %v2452, -0.001358992
    %v2454 = vadd.f32 %v2453, 0.041655596
    %v2455 = vmul.f32 %v2452, %v2454
    %v2456 = vadd.f32 %v2455, -0.4999988
    %v2457 = vmul.f32 %v2452, %v2456
    %v2458 = vadd.f32 1.0, %v2457
    %v2459 = vmul.f32 %v2450, %v2450
    %v2460 = vmul.f32 %v2459, -0.00019511016
    %v2461 = vadd.f32 %v2460, 0.008332121
    %v2462 = vmul.f32 %v2459, %v2461
    %v2463 = vadd.f32 %v2462, -0.16666654
    %v2464 = vmul.f32 %v2459, %v2463
    %v2465 = vadd.f32 %v2464, 1.0
    %v2466 = vmul.f32 %v2465, %v2450
    %vm2467 = vweird.f32 %v156
    %v2468 = vand.u32 %v2451, 3
    %vm2469 = vcmp.lt.s32.totalorder %v2468, 2
    %vm2470 = vcmp.eq.s32.totalorder %v2468, 0
    %v2471 = vxor.u32 %v2466, 2147483648
    %v2472 = vsel %vm2470, %v2458, %v2471
    %vm2473 = vcmp.eq.s32.totalorder %v2468, 2
    %v2474 = vxor.u32 %v2458, 2147483648
    %v2475 = vsel %vm2473, %v2474, %v2466
    %v2476 = vsel %vm2469, %v2472, %v2475
    %v2477 = vsel %vm2467, nan, %v2476
    %v2478 = vand.u32 2147483647, %v157
    %vm2479 = vcmp.le.f32.partialorder %v2478, 0.7853982
    %vm2480 = vcmp.lt.s32.totalorder %v157, 0
    %v2481 = vand.u32 %v157, 2139095040
    %v2482 = vshrl.u32 %v2481, 23
    %v2483 = vsub.s32 %v2482, 127
    %v2484 = vand.u32 2147483647, %v157
    %v2485 = vand.u32 %v2484, 8388607
    %v2486 = vor.u32 %v2485, 8388608
    %v2487 = vsub.s32 0, %v2486
    %v2488 = vadd.s32 %v2483, 1
    %vm2489 = vcmp.gt.s32.totalorder %v2488, 0
    %v2490 = vsel %vm2489, %v2488, 0
    %v2491 = vshrl.u32 %v2490, 5
    %v2492 = vand.u32 %v2490, 31
    %v2493 = vsub.s32 32, %v2492
    %v2494 = vshrl.u32 683565275, %v2493
    %v2495 = vshll.u32 683565275, %v2492
    %v2496 = vshrl.u32 2475754826, %v2493
    %v2497 = vor.u32 %v2495, %v2496
    %v2498 = vshll.u32 2475754826, %v2492
    %v2499 = vshrl.u32 2131351028, %v2493
    %v2500 = vor.u32 %v2498, %v2499
    %v2501 = vshll.u32 2131351028, %v2492
    %v2502 = vshrl.u32 2102212464, %v2493
    %v2503 = vor.u32 %v2501, %v2502
    %v2504 = vshll.u32 2102212464, %v2492
    %v2505 = vshrl.u32 920167782, %v2493
    %v2506 = vor.u32 %v2504, %v2505
    %v2507 = vshll.u32 920167782, %v2492
    %v2508 = vshrl.u32 1326507024, %v2493
    %v2509 = vor.u32 %v2507, %v2508
    %vm2510 = vcmp.lt.s32.totalorder %v2491, 1
    %vm2511 = vcmp.lt.s32.totalorder %v2491, 2
    %vm2512 = vcmp.lt.s32.totalorder %v2491, 3
    %vm2513 = vcmp.lt.s32.totalorder %v2491, 4
    %v2514 = vsel %vm2510, %v2494, %v2497
    %v2515 = vsel %vm2513, %v2503, 2102212464
    %v2516 = vsel %vm2512, %v2500, %v2515
    %v2517 = vsel %vm2511, %v2514, %v2516
    %v2518 = vsel %vm2510, %v2497, %v2500
    %v2519 = vsel %vm2513, %v2506, 920167782
    %v2520 = vsel %vm2512, %v2503, %v2519
    %v2521 = vsel %vm2511, %v2518, %v2520
    %v2522 = vsel %vm2510, %v2500, %v2503
    %v2523 = vsel %vm2513, %v2509, 1326507024
    %v2524 = vsel %vm2512, %v2506, %v2523
    %v2525 = vsel %vm2511, %v2522, %v2524
    %v2526 = vshll.u32 %v2486, 8
    %v2527 = vand.u32 %v2526, 65535
    %v2528 = vshrl.u32 %v2526, 16
    %v2529 = vand.u32 %v2525, 65535
    %v2530 = vshrl.u32 %v2525, 16
    %v2531 = vmul.u32 %v2527, %v2529
    %v2532 = vmul.u32 %v2527, %v2530
    %v2533 = vmul.u32 %v2528, %v2529
    %v2534 = vmul.u32 %v2528, %v2530
    %v2535 = vshll.u32 %v2532, 16
    %v2536 = vshrl.u32 %v2532, 16
    %v2537 = vshll.u32 %v2533, 16
    %v2538 = vshrl.u32 %v2533, 16
    %vm2539 = vc.u32 %v2531, %v2535
    %v2540 = vsel %vm2539, 1, 0
    %v2541 = vadd.s32 %v2531, %v2535
    %v2542 = vadd.s32 %v2534, %v2540
    %vm2543 = vc.u32 %v2541, %v2537
    %v2544 = vsel %vm2543, 1, 0
    %v2545 = vadd.s32 %v2541, %v2537
    %v2546 = vadd.s32 %v2542, %v2544
    %v2547 = vadd.s32 %v2546, %v2536
    %v2548 = vadd.s32 %v2547, %v2538
    %v2549 = vand.u32 %v2526, 65535
    %v2550 = vshrl.u32 %v2526, 16
    %v2551 = vand.u32 %v2521, 65535
    %v2552 = vshrl.u32 %v2521, 16
    %v2553 = vmul.u32 %v2549, %v2551
    %v2554 = vmul.u32 %v2549, %v2552
    %v2555 = vmul.u32 %v2550, %v2551
    %v2556 = vmul.u32 %v2550, %v2552
    %v2557 = vshll.u32 %v2554, 16
    %v2558 = vshrl.u32 %v2554, 16
    %v2559 = vshll.u32 %v2555, 16
    %v2560 = vshrl.u32 %v2555, 16
    %vm2561 = vc.u32 %v2553, %v2557
    %v2562 = vsel %vm2561, 1, 0
    %v2563 = vadd.s32 %v2553, %v2557
    %v2564 = vadd.s32 %v2556, %v2562
    %vm2565 = vc.u32 %v2563, %v2559
    %v2566 = vsel %vm2565, 1, 0
    %v2567 = vadd.s32 %v2563, %v2559
    %v2568 = vadd.s32 %v2564, %v2566
    %v2569 = vadd.s32 %v2568, %v2558
    %v2570 = vadd.s32 %v2569, %v2560
    %v2571 = vmul.u32 %v2526, %v2517
    %v2572 = vadd.s32 %v2548, %v2567
    %vm2573 = vc.u32 %v2548, %v2567
    %v2574 = vadd.s32 %v2570, 1
    %v2575 = vsel %vm2573, %v2574, %v2570
    %v2576 = vadd.s32 %v2571, %v2575
    %v2577 = vadd.s32 %v2576, 536870912
    %v2578 = vshrl.u32 %v2577, 30
    %v2579 = vshll.u32 %v2578, 30
    %v2580 = vsub.s32 %v2576, %v2579
    %vm2581 = vcmp.lt.s32.totalorder %v2580, 0
    %v2582 = vsub.s32 0, %v2580
    %v2583 = vsel %vm2581, %v2582, %v2580
    %v2584 = vclz %v2583
    %v2585 = vsub.s32 %v2584, 2
    %vm2586 = vcmp.gt.s32.totalorder 0, %v2585
    %v2587 = vsel %vm2586, 0, %v2585
    %v2588 = vsub.s32 32, %v2587
    %v2589 = vshll.u32 %v2580, %v2587
    %v2590 = vshrl.u32 %v2572, %v2588
    %v2591 = vor.u32 %v2589, %v2590
    %v2592 = vsub.s32 4294967266, %v2587
    %v2593 = vadd.s32 %v2592, 127
    %v2594 = vshll.u32 %v2593, 23
    %v2595 = vor.u32 4788187, %v2594
    %v2596 = vand.u32 2147483647, %v2595
    %v2598 = vcvt.s32.f32 %v2591
    %v2599 = vmul.f32 %v2598, %v2596
    %v2600 = vxor.u32 %v2599, 2147483648
    %v2601 = vsel %vm2480, %v2600, %v2599
    %v2602 = vsub.s32 4, %v2578
    %v2603 = vsel %vm2480, %v2602, %v2578
    %v2604 = vsel %vm2479, %v157, %v2601
    %v2605 = vsel %vm2479, 0, %v2603
    %v2606 = vmul.f32 %v2604, %v2604
    %v2607 = vmul.f32 %v2606, -0.001358992
    %v2608 = vadd.f32 %v2607, 0.041655596
    %v2609 = vmul.f32 %v2606, %v2608
    %v2610 = vadd.f32 %v2609, -0.4999988
    %v2611 = vmul.f32 %v2606, %v2610
    %v2612 = vadd.f32 1.0, %v2611
    %v2613 = vmul.f32 %v2604, %v2604
    %v2614 = vmul.f32 %v2613, -0.00019511016
    %v2615 = vadd.f32 %v2614, 0.008332121
    %v2616 = vmul.f32 %v2613, %v2615
    %v2617 = vadd.f32 %v2616, -0.16666654
    %v2618 = vmul.f32 %v2613, %v2617
    %v2619 = vadd.f32 %v2618, 1.0
    %v2620 = vmul.f32 %v2619, %v2604
    %vm2621 = vweird.f32 %v157
    %v2622 = vand.u32 %v2605, 3
    %vm2623 = vcmp.lt.s32.totalorder %v2622, 2
    %vm2624 = vcmp.eq.s32.totalorder %v2622, 0
    %v2625 = vxor.u32 %v2620, 2147483648
    %v2626 = vsel %vm2624, %v2612, %v2625
    %vm2627 = vcmp.eq.s32.totalorder %v2622, 2
    %v2628 = vxor.u32 %v2612, 2147483648
    %v2629 = vsel %vm2627, %v2628, %v2620
    %v2630 = vsel %vm2623, %v2626, %v2629
    %v2631 = vsel %vm2621, nan, %v2630
    %v2632 = vand.u32 2147483647, %v158
    %vm2633 = vcmp.le.f32.partialorder %v2632, 0.7853982
    %vm2634 = vcmp.lt.s32.totalorder %v158, 0
    %v2635 = vand.u32 %v158, 2139095040
    %v2636 = vshrl.u32 %v2635, 23
    %v2637 = vsub.s32 %v2636, 127
    %v2638 = vand.u32 2147483647, %v158
    %v2639 = vand.u32 %v2638, 8388607
    %v2640 = vor.u32 %v2639, 8388608
    %v2641 = vsub.s32 0, %v2640
    %v2642 = vadd.s32 %v2637, 1
    %vm2643 = vcmp.gt.s32.totalorder %v2642, 0
    %v2644 = vsel %vm2643, %v2642, 0
    %v2645 = vshrl.u32 %v2644, 5
    %v2646 = vand.u32 %v2644, 31
    %v2647 = vsub.s32 32, %v2646
    %v2648 = vshrl.u32 683565275, %v2647
    %v2649 = vshll.u32 683565275, %v2646
    %v2650 = vshrl.u32 2475754826, %v2647
    %v2651 = vor.u32 %v2649, %v2650
    %v2652 = vshll.u32 2475754826, %v2646
    %v2653 = vshrl.u32 2131351028, %v2647
    %v2654 = vor.u32 %v2652, %v2653
    %v2655 = vshll.u32 2131351028, %v2646
    %v2656 = vshrl.u32 2102212464, %v2647
    %v2657 = vor.u32 %v2655, %v2656
    %v2658 = vshll.u32 2102212464, %v2646
    %v2659 = vshrl.u32 920167782, %v2647
    %v2660 = vor.u32 %v2658, %v2659
    %v2661 = vshll.u32 920167782, %v2646
    %v2662 = vshrl.u32 1326507024, %v2647
    %v2663 = vor.u32 %v2661, %v2662
    %vm2664 = vcmp.lt.s32.totalorder %v2645, 1
    %vm2665 = vcmp.lt.s32.totalorder %v2645, 2
    %vm2666 = vcmp.lt.s32.totalorder %v2645, 3
    %vm2667 = vcmp.lt.s32.totalorder %v2645, 4
    %v2668 = vsel %vm2664, %v2648, %v2651
    %v2669 = vsel %vm2667, %v2657, 2102212464
    %v2670 = vsel %vm2666, %v2654, %v2669
    %v2671 = vsel %vm2665, %v2668, %v2670
    %v2672 = vsel %vm2664, %v2651, %v2654
    %v2673 = vsel %vm2667, %v2660, 920167782
    %v2674 = vsel %vm2666, %v2657, %v2673
    %v2675 = vsel %vm2665, %v2672, %v2674
    %v2676 = vsel %vm2664, %v2654, %v2657
    %v2677 = vsel %vm2667, %v2663, 1326507024
    %v2678 = vsel %vm2666, %v2660, %v2677
    %v2679 = vsel %vm2665, %v2676, %v2678
    %v2680 = vshll.u32 %v2640, 8
    %v2681 = vand.u32 %v2680, 65535
    %v2682 = vshrl.u32 %v2680, 16
    %v2683 = vand.u32 %v2679, 65535
    %v2684 = vshrl.u32 %v2679, 16
    %v2685 = vmul.u32 %v2681, %v2683
    %v2686 = vmul.u32 %v2681, %v2684
    %v2687 = vmul.u32 %v2682, %v2683
    %v2688 = vmul.u32 %v2682, %v2684
    %v2689 = vshll.u32 %v2686, 16
    %v2690 = vshrl.u32 %v2686, 16
    %v2691 = vshll.u32 %v2687, 16
    %v2692 = vshrl.u32 %v2687, 16
    %vm2693 = vc.u32 %v2685, %v2689
    %v2694 = vsel %vm2693, 1, 0
    %v2695 = vadd.s32 %v2685, %v2689
    %v2696 = vadd.s32 %v2688, %v2694
    %vm2697 = vc.u32 %v2695, %v2691
    %v2698 = vsel %vm2697, 1, 0
    %v2699 = vadd.s32 %v2695, %v2691
    %v2700 = vadd.s32 %v2696, %v2698
    %v2701 = vadd.s32 %v2700, %v2690
    %v2702 = vadd.s32 %v2701, %v2692
    %v2703 = vand.u32 %v2680, 65535
    %v2704 = vshrl.u32 %v2680, 16
    %v2705 = vand.u32 %v2675, 65535
    %v2706 = vshrl.u32 %v2675, 16
    %v2707 = vmul.u32 %v2703, %v2705
    %v2708 = vmul.u32 %v2703, %v2706
    %v2709 = vmul.u32 %v2704, %v2705
    %v2710 = vmul.u32 %v2704, %v2706
    %v2711 = vshll.u32 %v2708, 16
    %v2712 = vshrl.u32 %v2708, 16
    %v2713 = vshll.u32 %v2709, 16
    %v2714 = vshrl.u32 %v2709, 16
    %vm2715 = vc.u32 %v2707, %v2711
    %v2716 = vsel %vm2715, 1, 0
    %v2717 = vadd.s32 %v2707, %v2711
    %v2718 = vadd.s32 %v2710, %v2716
    %vm2719 = vc.u32 %v2717, %v2713
    %v2720 = vsel %vm2719, 1, 0
    %v2721 = vadd.s32 %v2717, %v2713
    %v2722 = vadd.s32 %v2718, %v2720
    %v2723 = vadd.s32 %v2722, %v2712
    %v2724 = vadd.s32 %v2723, %v2714
    %v2725 = vmul.u32 %v2680, %v2671
    %v2726 = vadd.s32 %v2702, %v2721
    %vm2727 = vc.u32 %v2702, %v2721
    %v2728 = vadd.s32 %v2724, 1
    %v2729 = vsel %vm2727, %v2728, %v2724
    %v2730 = vadd.s32 %v2725, %v2729
    %v2731 = vadd.s32 %v2730, 536870912
    %v2732 = vshrl.u32 %v2731, 30
    %v2733 = vshll.u32 %v2732, 30
    %v2734 = vsub.s32 %v2730, %v2733
    %vm2735 = vcmp.lt.s32.totalorder %v2734, 0
    %v2736 = vsub.s32 0, %v2734
    %v2737 = vsel %vm2735, %v2736, %v2734
    %v2738 = vclz %v2737
    %v2739 = vsub.s32 %v2738, 2
    %vm2740 = vcmp.gt.s32.totalorder 0, %v2739
    %v2741 = vsel %vm2740, 0, %v2739
    %v2742 = vsub.s32 32, %v2741
    %v2743 = vshll.u32 %v2734, %v2741
    %v2744 = vshrl.u32 %v2726, %v2742
    %v2745 = vor.u32 %v2743, %v2744
    %v2746 = vsub.s32 4294967266, %v2741
    %v2747 = vadd.s32 %v2746, 127
    %v2748 = vshll.u32 %v2747, 23
    %v2749 = vor.u32 4788187, %v2748
    %v2750 = vand.u32 2147483647, %v2749
    %v2752 = vcvt.s32.f32 %v2745
    %v2753 = vmul.f32 %v2752, %v2750
    %v2754 = vxor.u32 %v2753, 2147483648
    %v2755 = vsel %vm2634, %v2754, %v2753
    %v2756 = vsub.s32 4, %v2732
    %v2757 = vsel %vm2634, %v2756, %v2732
    %v2758 = vsel %vm2633, %v158, %v2755
    %v2759 = vsel %vm2633, 0, %v2757
    %v2760 = vmul.f32 %v2758, %v2758
    %v2761 = vmul.f32 %v2760, -0.001358992
    %v2762 = vadd.f32 %v2761, 0.041655596
    %v2763 = vmul.f32 %v2760, %v2762
    %v2764 = vadd.f32 %v2763, -0.4999988
    %v2765 = vmul.f32 %v2760, %v2764
    %v2766 = vadd.f32 1.0, %v2765
    %v2767 = vmul.f32 %v2758, %v2758
    %v2768 = vmul.f32 %v2767, -0.00019511016
    %v2769 = vadd.f32 %v2768, 0.008332121
    %v2770 = vmul.f32 %v2767, %v2769
    %v2771 = vadd.f32 %v2770, -0.16666654
    %v2772 = vmul.f32 %v2767, %v2771
    %v2773 = vadd.f32 %v2772, 1.0
    %v2774 = vmul.f32 %v2773, %v2758
    %vm2775 = vweird.f32 %v158
    %v2776 = vand.u32 %v2759, 3
    %vm2777 = vcmp.lt.s32.totalorder %v2776, 2
    %vm2778 = vcmp.eq.s32.totalorder %v2776, 0
    %v2779 = vxor.u32 %v2774, 2147483648
    %v2780 = vsel %vm2778, %v2766, %v2779
    %vm2781 = vcmp.eq.s32.totalorder %v2776, 2
    %v2782 = vxor.u32 %v2766, 2147483648
    %v2783 = vsel %vm2781, %v2782, %v2774
    %v2784 = vsel %vm2777, %v2780, %v2783
    %v2785 = vsel %vm2775, nan, %v2784
    %v2786 = vand.u32 2147483647, %v159
    %vm2787 = vcmp.le.f32.partialorder %v2786, 0.7853982
    %vm2788 = vcmp.lt.s32.totalorder %v159, 0
    %v2789 = vand.u32 %v159, 2139095040
    %v2790 = vshrl.u32 %v2789, 23
    %v2791 = vsub.s32 %v2790, 127
    %v2792 = vand.u32 2147483647, %v159
    %v2793 = vand.u32 %v2792, 8388607
    %v2794 = vor.u32 %v2793, 8388608
    %v2795 = vsub.s32 0, %v2794
    %v2796 = vadd.s32 %v2791, 1
    %vm2797 = vcmp.gt.s32.totalorder %v2796, 0
    %v2798 = vsel %vm2797, %v2796, 0
    %v2799 = vshrl.u32 %v2798, 5
    %v2800 = vand.u32 %v2798, 31
    %v2801 = vsub.s32 32, %v2800
    %v2802 = vshrl.u32 683565275, %v2801
    %v2803 = vshll.u32 683565275, %v2800
    %v2804 = vshrl.u32 2475754826, %v2801
    %v2805 = vor.u32 %v2803, %v2804
    %v2806 = vshll.u32 2475754826, %v2800
    %v2807 = vshrl.u32 2131351028, %v2801
    %v2808 = vor.u32 %v2806, %v2807
    %v2809 = vshll.u32 2131351028, %v2800
    %v2810 = vshrl.u32 2102212464, %v2801
    %v2811 = vor.u32 %v2809, %v2810
    %v2812 = vshll.u32 2102212464, %v2800
    %v2813 = vshrl.u32 920167782, %v2801
    %v2814 = vor.u32 %v2812, %v2813
    %v2815 = vshll.u32 920167782, %v2800
    %v2816 = vshrl.u32 1326507024, %v2801
    %v2817 = vor.u32 %v2815, %v2816
    %vm2818 = vcmp.lt.s32.totalorder %v2799, 1
    %vm2819 = vcmp.lt.s32.totalorder %v2799, 2
    %vm2820 = vcmp.lt.s32.totalorder %v2799, 3
    %vm2821 = vcmp.lt.s32.totalorder %v2799, 4
    %v2822 = vsel %vm2818, %v2802, %v2805
    %v2823 = vsel %vm2821, %v2811, 2102212464
    %v2824 = vsel %vm2820, %v2808, %v2823
    %v2825 = vsel %vm2819, %v2822, %v2824
    %v2826 = vsel %vm2818, %v2805, %v2808
    %v2827 = vsel %vm2821, %v2814, 920167782
    %v2828 = vsel %vm2820, %v2811, %v2827
    %v2829 = vsel %vm2819, %v2826, %v2828
    %v2830 = vsel %vm2818, %v2808, %v2811
    %v2831 = vsel %vm2821, %v2817, 1326507024
    %v2832 = vsel %vm2820, %v2814, %v2831
    %v2833 = vsel %vm2819, %v2830, %v2832
    %v2834 = vshll.u32 %v2794, 8
    %v2835 = vand.u32 %v2834, 65535
    %v2836 = vshrl.u32 %v2834, 16
    %v2837 = vand.u32 %v2833, 65535
    %v2838 = vshrl.u32 %v2833, 16
    %v2839 = vmul.u32 %v2835, %v2837
    %v2840 = vmul.u32 %v2835, %v2838
    %v2841 = vmul.u32 %v2836, %v2837
    %v2842 = vmul.u32 %v2836, %v2838
    %v2843 = vshll.u32 %v2840, 16
    %v2844 = vshrl.u32 %v2840, 16
    %v2845 = vshll.u32 %v2841, 16
    %v2846 = vshrl.u32 %v2841, 16
    %vm2847 = vc.u32 %v2839, %v2843
    %v2848 = vsel %vm2847, 1, 0
    %v2849 = vadd.s32 %v2839, %v2843
    %v2850 = vadd.s32 %v2842, %v2848
    %vm2851 = vc.u32 %v2849, %v2845
    %v2852 = vsel %vm2851, 1, 0
    %v2853 = vadd.s32 %v2849, %v2845
    %v2854 = vadd.s32 %v2850, %v2852
    %v2855 = vadd.s32 %v2854, %v2844
    %v2856 = vadd.s32 %v2855, %v2846
    %v2857 = vand.u32 %v2834, 65535
    %v2858 = vshrl.u32 %v2834, 16
    %v2859 = vand.u32 %v2829, 65535
    %v2860 = vshrl.u32 %v2829, 16
    %v2861 = vmul.u32 %v2857, %v2859
    %v2862 = vmul.u32 %v2857, %v2860
    %v2863 = vmul.u32 %v2858, %v2859
    %v2864 = vmul.u32 %v2858, %v2860
    %v2865 = vshll.u32 %v2862, 16
    %v2866 = vshrl.u32 %v2862, 16
    %v2867 = vshll.u32 %v2863, 16
    %v2868 = vshrl.u32 %v2863, 16
    %vm2869 = vc.u32 %v2861, %v2865
    %v2870 = vsel %vm2869, 1, 0
    %v2871 = vadd.s32 %v2861, %v2865
    %v2872 = vadd.s32 %v2864, %v2870
    %vm2873 = vc.u32 %v2871, %v2867
    %v2874 = vsel %vm2873, 1, 0
    %v2875 = vadd.s32 %v2871, %v2867
    %v2876 = vadd.s32 %v2872, %v2874
    %v2877 = vadd.s32 %v2876, %v2866
    %v2878 = vadd.s32 %v2877, %v2868
    %v2879 = vmul.u32 %v2834, %v2825
    %v2880 = vadd.s32 %v2856, %v2875
    %vm2881 = vc.u32 %v2856, %v2875
    %v2882 = vadd.s32 %v2878, 1
    %v2883 = vsel %vm2881, %v2882, %v2878
    %v2884 = vadd.s32 %v2879, %v2883
    %v2885 = vadd.s32 %v2884, 536870912
    %v2886 = vshrl.u32 %v2885, 30
    %v2887 = vshll.u32 %v2886, 30
    %v2888 = vsub.s32 %v2884, %v2887
    %vm2889 = vcmp.lt.s32.totalorder %v2888, 0
    %v2890 = vsub.s32 0, %v2888
    %v2891 = vsel %vm2889, %v2890, %v2888
    %v2892 = vclz %v2891
    %v2893 = vsub.s32 %v2892, 2
    %vm2894 = vcmp.gt.s32.totalorder 0, %v2893
    %v2895 = vsel %vm2894, 0, %v2893
    %v2896 = vsub.s32 32, %v2895
    %v2897 = vshll.u32 %v2888, %v2895
    %v2898 = vshrl.u32 %v2880, %v2896
    %v2899 = vor.u32 %v2897, %v2898
    %v2900 = vsub.s32 4294967266, %v2895
    %v2901 = vadd.s32 %v2900, 127
    %v2902 = vshll.u32 %v2901, 23
    %v2903 = vor.u32 4788187, %v2902
    %v2904 = vand.u32 2147483647, %v2903
    %v2906 = vcvt.s32.f32 %v2899
    %v2907 = vmul.f32 %v2906, %v2904
    %v2908 = vxor.u32 %v2907, 2147483648
    %v2909 = vsel %vm2788, %v2908, %v2907
    %v2910 = vsub.s32 4, %v2886
    %v2911 = vsel %vm2788, %v2910, %v2886
    %v2912 = vsel %vm2787, %v159, %v2909
    %v2913 = vsel %vm2787, 0, %v2911
    %v2914 = vmul.f32 %v2912, %v2912
    %v2915 = vmul.f32 %v2914, -0.001358992
    %v2916 = vadd.f32 %v2915, 0.041655596
    %v2917 = vmul.f32 %v2914, %v2916
    %v2918 = vadd.f32 %v2917, -0.4999988
    %v2919 = vmul.f32 %v2914, %v2918
    %v2920 = vadd.f32 1.0, %v2919
    %v2921 = vmul.f32 %v2912, %v2912
    %v2922 = vmul.f32 %v2921, -0.00019511016
    %v2923 = vadd.f32 %v2922, 0.008332121
    %v2924 = vmul.f32 %v2921, %v2923
    %v2925 = vadd.f32 %v2924, -0.16666654
    %v2926 = vmul.f32 %v2921, %v2925
    %v2927 = vadd.f32 %v2926, 1.0
    %v2928 = vmul.f32 %v2927, %v2912
    %vm2929 = vweird.f32 %v159
    %v2930 = vand.u32 %v2913, 3
    %vm2931 = vcmp.lt.s32.totalorder %v2930, 2
    %vm2932 = vcmp.eq.s32.totalorder %v2930, 0
    %v2933 = vxor.u32 %v2928, 2147483648
    %v2934 = vsel %vm2932, %v2920, %v2933
    %vm2935 = vcmp.eq.s32.totalorder %v2930, 2
    %v2936 = vxor.u32 %v2920, 2147483648
    %v2937 = vsel %vm2935, %v2936, %v2928
    %v2938 = vsel %vm2931, %v2934, %v2937
    %v2939 = vsel %vm2929, nan, %v2938
    %v2940 = vand.u32 2147483647, %v160
    %vm2941 = vcmp.le.f32.partialorder %v2940, 0.7853982
    %vm2942 = vcmp.lt.s32.totalorder %v160, 0
    %v2943 = vand.u32 %v160, 2139095040
    %v2944 = vshrl.u32 %v2943, 23
    %v2945 = vsub.s32 %v2944, 127
    %v2946 = vand.u32 2147483647, %v160
    %v2947 = vand.u32 %v2946, 8388607
    %v2948 = vor.u32 %v2947, 8388608
    %v2949 = vsub.s32 0, %v2948
    %v2950 = vadd.s32 %v2945, 1
    %vm2951 = vcmp.gt.s32.totalorder %v2950, 0
    %v2952 = vsel %vm2951, %v2950, 0
    %v2953 = vshrl.u32 %v2952, 5
    %v2954 = vand.u32 %v2952, 31
    %v2955 = vsub.s32 32, %v2954
    %v2956 = vshrl.u32 683565275, %v2955
    %v2957 = vshll.u32 683565275, %v2954
    %v2958 = vshrl.u32 2475754826, %v2955
    %v2959 = vor.u32 %v2957, %v2958
    %v2960 = vshll.u32 2475754826, %v2954
    %v2961 = vshrl.u32 2131351028, %v2955
    %v2962 = vor.u32 %v2960, %v2961
    %v2963 = vshll.u32 2131351028, %v2954
    %v2964 = vshrl.u32 2102212464, %v2955
    %v2965 = vor.u32 %v2963, %v2964
    %v2966 = vshll.u32 2102212464, %v2954
    %v2967 = vshrl.u32 920167782, %v2955
    %v2968 = vor.u32 %v2966, %v2967
    %v2969 = vshll.u32 920167782, %v2954
    %v2970 = vshrl.u32 1326507024, %v2955
    %v2971 = vor.u32 %v2969, %v2970
    %vm2972 = vcmp.lt.s32.totalorder %v2953, 1
    %vm2973 = vcmp.lt.s32.totalorder %v2953, 2
    %vm2974 = vcmp.lt.s32.totalorder %v2953, 3
    %vm2975 = vcmp.lt.s32.totalorder %v2953, 4
    %v2976 = vsel %vm2972, %v2956, %v2959
    %v2977 = vsel %vm2975, %v2965, 2102212464
    %v2978 = vsel %vm2974, %v2962, %v2977
    %v2979 = vsel %vm2973, %v2976, %v2978
    %v2980 = vsel %vm2972, %v2959, %v2962
    %v2981 = vsel %vm2975, %v2968, 920167782
    %v2982 = vsel %vm2974, %v2965, %v2981
    %v2983 = vsel %vm2973, %v2980, %v2982
    %v2984 = vsel %vm2972, %v2962, %v2965
    %v2985 = vsel %vm2975, %v2971, 1326507024
    %v2986 = vsel %vm2974, %v2968, %v2985
    %v2987 = vsel %vm2973, %v2984, %v2986
    %v2988 = vshll.u32 %v2948, 8
    %v2989 = vand.u32 %v2988, 65535
    %v2990 = vshrl.u32 %v2988, 16
    %v2991 = vand.u32 %v2987, 65535
    %v2992 = vshrl.u32 %v2987, 16
    %v2993 = vmul.u32 %v2989, %v2991
    %v2994 = vmul.u32 %v2989, %v2992
    %v2995 = vmul.u32 %v2990, %v2991
    %v2996 = vmul.u32 %v2990, %v2992
    %v2997 = vshll.u32 %v2994, 16
    %v2998 = vshrl.u32 %v2994, 16
    %v2999 = vshll.u32 %v2995, 16
    %v3000 = vshrl.u32 %v2995, 16
    %vm3001 = vc.u32 %v2993, %v2997
    %v3002 = vsel %vm3001, 1, 0
    %v3003 = vadd.s32 %v2993, %v2997
    %v3004 = vadd.s32 %v2996, %v3002
    %vm3005 = vc.u32 %v3003, %v2999
    %v3006 = vsel %vm3005, 1, 0
    %v3007 = vadd.s32 %v3003, %v2999
    %v3008 = vadd.s32 %v3004, %v3006
    %v3009 = vadd.s32 %v3008, %v2998
    %v3010 = vadd.s32 %v3009, %v3000
    %v3011 = vand.u32 %v2988, 65535
    %v3012 = vshrl.u32 %v2988, 16
    %v3013 = vand.u32 %v2983, 65535
    %v3014 = vshrl.u32 %v2983, 16
    %v3015 = vmul.u32 %v3011, %v3013
    %v3016 = vmul.u32 %v3011, %v3014
    %v3017 = vmul.u32 %v3012, %v3013
    %v3018 = vmul.u32 %v3012, %v3014
    %v3019 = vshll.u32 %v3016, 16
    %v3020 = vshrl.u32 %v3016, 16
    %v3021 = vshll.u32 %v3017, 16
    %v3022 = vshrl.u32 %v3017, 16
    %vm3023 = vc.u32 %v3015, %v3019
    %v3024 = vsel %vm3023, 1, 0
    %v3025 = vadd.s32 %v3015, %v3019
    %v3026 = vadd.s32 %v3018, %v3024
    %vm3027 = vc.u32 %v3025, %v3021
    %v3028 = vsel %vm3027, 1, 0
    %v3029 = vadd.s32 %v3025, %v3021
    %v3030 = vadd.s32 %v3026, %v3028
    %v3031 = vadd.s32 %v3030, %v3020
    %v3032 = vadd.s32 %v3031, %v3022
    %v3033 = vmul.u32 %v2988, %v2979
    %v3034 = vadd.s32 %v3010, %v3029
    %vm3035 = vc.u32 %v3010, %v3029
    %v3036 = vadd.s32 %v3032, 1
    %v3037 = vsel %vm3035, %v3036, %v3032
    %v3038 = vadd.s32 %v3033, %v3037
    %v3039 = vadd.s32 %v3038, 536870912
    %v3040 = vshrl.u32 %v3039, 30
    %v3041 = vshll.u32 %v3040, 30
    %v3042 = vsub.s32 %v3038, %v3041
    %vm3043 = vcmp.lt.s32.totalorder %v3042, 0
    %v3044 = vsub.s32 0, %v3042
    %v3045 = vsel %vm3043, %v3044, %v3042
    %v3046 = vclz %v3045
    %v3047 = vsub.s32 %v3046, 2
    %vm3048 = vcmp.gt.s32.totalorder 0, %v3047
    %v3049 = vsel %vm3048, 0, %v3047
    %v3050 = vsub.s32 32, %v3049
    %v3051 = vshll.u32 %v3042, %v3049
    %v3052 = vshrl.u32 %v3034, %v3050
    %v3053 = vor.u32 %v3051, %v3052
    %v3054 = vsub.s32 4294967266, %v3049
    %v3055 = vadd.s32 %v3054, 127
    %v3056 = vshll.u32 %v3055, 23
    %v3057 = vor.u32 4788187, %v3056
    %v3058 = vand.u32 2147483647, %v3057
    %v3060 = vcvt.s32.f32 %v3053
    %v3061 = vmul.f32 %v3060, %v3058
    %v3062 = vxor.u32 %v3061, 2147483648
    %v3063 = vsel %vm2942, %v3062, %v3061
    %v3064 = vsub.s32 4, %v3040
    %v3065 = vsel %vm2942, %v3064, %v3040
    %v3066 = vsel %vm2941, %v160, %v3063
    %v3067 = vsel %vm2941, 0, %v3065
    %v3068 = vmul.f32 %v3066, %v3066
    %v3069 = vmul.f32 %v3068, -0.001358992
    %v3070 = vadd.f32 %v3069, 0.041655596
    %v3071 = vmul.f32 %v3068, %v3070
    %v3072 = vadd.f32 %v3071, -0.4999988
    %v3073 = vmul.f32 %v3068, %v3072
    %v3074 = vadd.f32 1.0, %v3073
    %v3075 = vmul.f32 %v3066, %v3066
    %v3076 = vmul.f32 %v3075, -0.00019511016
    %v3077 = vadd.f32 %v3076, 0.008332121
    %v3078 = vmul.f32 %v3075, %v3077
    %v3079 = vadd.f32 %v3078, -0.16666654
    %v3080 = vmul.f32 %v3075, %v3079
    %v3081 = vadd.f32 %v3080, 1.0
    %v3082 = vmul.f32 %v3081, %v3066
    %vm3083 = vweird.f32 %v160
    %v3084 = vand.u32 %v3067, 3
    %vm3085 = vcmp.lt.s32.totalorder %v3084, 2
    %vm3086 = vcmp.eq.s32.totalorder %v3084, 0
    %v3087 = vxor.u32 %v3082, 2147483648
    %v3088 = vsel %vm3086, %v3074, %v3087
    %vm3089 = vcmp.eq.s32.totalorder %v3084, 2
    %v3090 = vxor.u32 %v3074, 2147483648
    %v3091 = vsel %vm3089, %v3090, %v3082
    %v3092 = vsel %vm3085, %v3088, %v3091
    %v3093 = vsel %vm3083, nan, %v3092
    %v3094 = vand.u32 2147483647, %v161
    %vm3095 = vcmp.le.f32.partialorder %v3094, 0.7853982
    %vm3096 = vcmp.lt.s32.totalorder %v161, 0
    %v3097 = vand.u32 %v161, 2139095040
    %v3098 = vshrl.u32 %v3097, 23
    %v3099 = vsub.s32 %v3098, 127
    %v3100 = vand.u32 2147483647, %v161
    %v3101 = vand.u32 %v3100, 8388607
    %v3102 = vor.u32 %v3101, 8388608
    %v3103 = vsub.s32 0, %v3102
    %v3104 = vadd.s32 %v3099, 1
    %vm3105 = vcmp.gt.s32.totalorder %v3104, 0
    %v3106 = vsel %vm3105, %v3104, 0
    %v3107 = vshrl.u32 %v3106, 5
    %v3108 = vand.u32 %v3106, 31
    %v3109 = vsub.s32 32, %v3108
    %v3110 = vshrl.u32 683565275, %v3109
    %v3111 = vshll.u32 683565275, %v3108
    %v3112 = vshrl.u32 2475754826, %v3109
    %v3113 = vor.u32 %v3111, %v3112
    %v3114 = vshll.u32 2475754826, %v3108
    %v3115 = vshrl.u32 2131351028, %v3109
    %v3116 = vor.u32 %v3114, %v3115
    %v3117 = vshll.u32 2131351028, %v3108
    %v3118 = vshrl.u32 2102212464, %v3109
    %v3119 = vor.u32 %v3117, %v3118
    %v3120 = vshll.u32 2102212464, %v3108
    %v3121 = vshrl.u32 920167782, %v3109
    %v3122 = vor.u32 %v3120, %v3121
    %v3123 = vshll.u32 920167782, %v3108
    %v3124 = vshrl.u32 1326507024, %v3109
    %v3125 = vor.u32 %v3123, %v3124
    %vm3126 = vcmp.lt.s32.totalorder %v3107, 1
    %vm3127 = vcmp.lt.s32.totalorder %v3107, 2
    %vm3128 = vcmp.lt.s32.totalorder %v3107, 3
    %vm3129 = vcmp.lt.s32.totalorder %v3107, 4
    %v3130 = vsel %vm3126, %v3110, %v3113
    %v3131 = vsel %vm3129, %v3119, 2102212464
    %v3132 = vsel %vm3128, %v3116, %v3131
    %v3133 = vsel %vm3127, %v3130, %v3132
    %v3134 = vsel %vm3126, %v3113, %v3116
    %v3135 = vsel %vm3129, %v3122, 920167782
    %v3136 = vsel %vm3128, %v3119, %v3135
    %v3137 = vsel %vm3127, %v3134, %v3136
    %v3138 = vsel %vm3126, %v3116, %v3119
    %v3139 = vsel %vm3129, %v3125, 1326507024
    %v3140 = vsel %vm3128, %v3122, %v3139
    %v3141 = vsel %vm3127, %v3138, %v3140
    %v3142 = vshll.u32 %v3102, 8
    %v3143 = vand.u32 %v3142, 65535
    %v3144 = vshrl.u32 %v3142, 16
    %v3145 = vand.u32 %v3141, 65535
    %v3146 = vshrl.u32 %v3141, 16
    %v3147 = vmul.u32 %v3143, %v3145
    %v3148 = vmul.u32 %v3143, %v3146
    %v3149 = vmul.u32 %v3144, %v3145
    %v3150 = vmul.u32 %v3144, %v3146
    %v3151 = vshll.u32 %v3148, 16
    %v3152 = vshrl.u32 %v3148, 16
    %v3153 = vshll.u32 %v3149, 16
    %v3154 = vshrl.u32 %v3149, 16
    %vm3155 = vc.u32 %v3147, %v3151
    %v3156 = vsel %vm3155, 1, 0
    %v3157 = vadd.s32 %v3147, %v3151
    %v3158 = vadd.s32 %v3150, %v3156
    %vm3159 = vc.u32 %v3157, %v3153
    %v3160 = vsel %vm3159, 1, 0
    %v3161 = vadd.s32 %v3157, %v3153
    %v3162 = vadd.s32 %v3158, %v3160
    %v3163 = vadd.s32 %v3162, %v3152
    %v3164 = vadd.s32 %v3163, %v3154
    %v3165 = vand.u32 %v3142, 65535
    %v3166 = vshrl.u32 %v3142, 16
    %v3167 = vand.u32 %v3137, 65535
    %v3168 = vshrl.u32 %v3137, 16
    %v3169 = vmul.u32 %v3165, %v3167
    %v3170 = vmul.u32 %v3165, %v3168
    %v3171 = vmul.u32 %v3166, %v3167
    %v3172 = vmul.u32 %v3166, %v3168
    %v3173 = vshll.u32 %v3170, 16
    %v3174 = vshrl.u32 %v3170, 16
    %v3175 = vshll.u32 %v3171, 16
    %v3176 = vshrl.u32 %v3171, 16
    %vm3177 = vc.u32 %v3169, %v3173
    %v3178 = vsel %vm3177, 1, 0
    %v3179 = vadd.s32 %v3169, %v3173
    %v3180 = vadd.s32 %v3172, %v3178
    %vm3181 = vc.u32 %v3179, %v3175
    %v3182 = vsel %vm3181, 1, 0
    %v3183 = vadd.s32 %v3179, %v3175
    %v3184 = vadd.s32 %v3180, %v3182
    %v3185 = vadd.s32 %v3184, %v3174
    %v3186 = vadd.s32 %v3185, %v3176
    %v3187 = vmul.u32 %v3142, %v3133
    %v3188 = vadd.s32 %v3164, %v3183
    %vm3189 = vc.u32 %v3164, %v3183
    %v3190 = vadd.s32 %v3186, 1
    %v3191 = vsel %vm3189, %v3190, %v3186
    %v3192 = vadd.s32 %v3187, %v3191
    %v3193 = vadd.s32 %v3192, 536870912
    %v3194 = vshrl.u32 %v3193, 30
    %v3195 = vshll.u32 %v3194, 30
    %v3196 = vsub.s32 %v3192, %v3195
    %vm3197 = vcmp.lt.s32.totalorder %v3196, 0
    %v3198 = vsub.s32 0, %v3196
    %v3199 = vsel %vm3197, %v3198, %v3196
    %v3200 = vclz %v3199
    %v3201 = vsub.s32 %v3200, 2
    %vm3202 = vcmp.gt.s32.totalorder 0, %v3201
    %v3203 = vsel %vm3202, 0, %v3201
    %v3204 = vsub.s32 32, %v3203
    %v3205 = vshll.u32 %v3196, %v3203
    %v3206 = vshrl.u32 %v3188, %v3204
    %v3207 = vor.u32 %v3205, %v3206
    %v3208 = vsub.s32 4294967266, %v3203
    %v3209 = vadd.s32 %v3208, 127
    %v3210 = vshll.u32 %v3209, 23
    %v3211 = vor.u32 4788187, %v3210
    %v3212 = vand.u32 2147483647, %v3211
    %v3214 = vcvt.s32.f32 %v3207
    %v3215 = vmul.f32 %v3214, %v3212
    %v3216 = vxor.u32 %v3215, 2147483648
    %v3217 = vsel %vm3096, %v3216, %v3215
    %v3218 = vsub.s32 4, %v3194
    %v3219 = vsel %vm3096, %v3218, %v3194
    %v3220 = vsel %vm3095, %v161, %v3217
    %v3221 = vsel %vm3095, 0, %v3219
    %v3222 = vmul.f32 %v3220, %v3220
    %v3223 = vmul.f32 %v3222, -0.001358992
    %v3224 = vadd.f32 %v3223, 0.041655596
    %v3225 = vmul.f32 %v3222, %v3224
    %v3226 = vadd.f32 %v3225, -0.4999988
    %v3227 = vmul.f32 %v3222, %v3226
    %v3228 = vadd.f32 1.0, %v3227
    %v3229 = vmul.f32 %v3220, %v3220
    %v3230 = vmul.f32 %v3229, -0.00019511016
    %v3231 = vadd.f32 %v3230, 0.008332121
    %v3232 = vmul.f32 %v3229, %v3231
    %v3233 = vadd.f32 %v3232, -0.16666654
    %v3234 = vmul.f32 %v3229, %v3233
    %v3235 = vadd.f32 %v3234, 1.0
    %v3236 = vmul.f32 %v3235, %v3220
    %vm3237 = vweird.f32 %v161
    %v3238 = vand.u32 %v3221, 3
    %vm3239 = vcmp.lt.s32.totalorder %v3238, 2
    %vm3240 = vcmp.eq.s32.totalorder %v3238, 0
    %v3241 = vxor.u32 %v3236, 2147483648
    %v3242 = vsel %vm3240, %v3228, %v3241
    %vm3243 = vcmp.eq.s32.totalorder %v3238, 2
    %v3244 = vxor.u32 %v3228, 2147483648
    %v3245 = vsel %vm3243, %v3244, %v3236
    %v3246 = vsel %vm3239, %v3242, %v3245
    %v3247 = vsel %vm3237, nan, %v3246
    %v3248 = vand.u32 2147483647, %v162
    %vm3249 = vcmp.le.f32.partialorder %v3248, 0.7853982
    %vm3250 = vcmp.lt.s32.totalorder %v162, 0
    %v3251 = vand.u32 %v162, 2139095040
    %v3252 = vshrl.u32 %v3251, 23
    %v3253 = vsub.s32 %v3252, 127
    %v3254 = vand.u32 2147483647, %v162
    %v3255 = vand.u32 %v3254, 8388607
    %v3256 = vor.u32 %v3255, 8388608
    %v3257 = vsub.s32 0, %v3256
    %v3258 = vadd.s32 %v3253, 1
    %vm3259 = vcmp.gt.s32.totalorder %v3258, 0
    %v3260 = vsel %vm3259, %v3258, 0
    %v3261 = vshrl.u32 %v3260, 5
    %v3262 = vand.u32 %v3260, 31
    %v3263 = vsub.s32 32, %v3262
    %v3264 = vshrl.u32 683565275, %v3263
    %v3265 = vshll.u32 683565275, %v3262
    %v3266 = vshrl.u32 2475754826, %v3263
    %v3267 = vor.u32 %v3265, %v3266
    %v3268 = vshll.u32 2475754826, %v3262
    %v3269 = vshrl.u32 2131351028, %v3263
    %v3270 = vor.u32 %v3268, %v3269
    %v3271 = vshll.u32 2131351028, %v3262
    %v3272 = vshrl.u32 2102212464, %v3263
    %v3273 = vor.u32 %v3271, %v3272
    %v3274 = vshll.u32 2102212464, %v3262
    %v3275 = vshrl.u32 920167782, %v3263
    %v3276 = vor.u32 %v3274, %v3275
    %v3277 = vshll.u32 920167782, %v3262
    %v3278 = vshrl.u32 1326507024, %v3263
    %v3279 = vor.u32 %v3277, %v3278
    %vm3280 = vcmp.lt.s32.totalorder %v3261, 1
    %vm3281 = vcmp.lt.s32.totalorder %v3261, 2
    %vm3282 = vcmp.lt.s32.totalorder %v3261, 3
    %vm3283 = vcmp.lt.s32.totalorder %v3261, 4
    %v3284 = vsel %vm3280, %v3264, %v3267
    %v3285 = vsel %vm3283, %v3273, 2102212464
    %v3286 = vsel %vm3282, %v3270, %v3285
    %v3287 = vsel %vm3281, %v3284, %v3286
    %v3288 = vsel %vm3280, %v3267, %v3270
    %v3289 = vsel %vm3283, %v3276, 920167782
    %v3290 = vsel %vm3282, %v3273, %v3289
    %v3291 = vsel %vm3281, %v3288, %v3290
    %v3292 = vsel %vm3280, %v3270, %v3273
    %v3293 = vsel %vm3283, %v3279, 1326507024
    %v3294 = vsel %vm3282, %v3276, %v3293
    %v3295 = vsel %vm3281, %v3292, %v3294
    %v3296 = vshll.u32 %v3256, 8
    %v3297 = vand.u32 %v3296, 65535
    %v3298 = vshrl.u32 %v3296, 16
    %v3299 = vand.u32 %v3295, 65535
    %v3300 = vshrl.u32 %v3295, 16
    %v3301 = vmul.u32 %v3297, %v3299
    %v3302 = vmul.u32 %v3297, %v3300
    %v3303 = vmul.u32 %v3298, %v3299
    %v3304 = vmul.u32 %v3298, %v3300
    %v3305 = vshll.u32 %v3302, 16
    %v3306 = vshrl.u32 %v3302, 16
    %v3307 = vshll.u32 %v3303, 16
    %v3308 = vshrl.u32 %v3303, 16
    %vm3309 = vc.u32 %v3301, %v3305
    %v3310 = vsel %vm3309, 1, 0
    %v3311 = vadd.s32 %v3301, %v3305
    %v3312 = vadd.s32 %v3304, %v3310
    %vm3313 = vc.u32 %v3311, %v3307
    %v3314 = vsel %vm3313, 1, 0
    %v3315 = vadd.s32 %v3311, %v3307
    %v3316 = vadd.s32 %v3312, %v3314
    %v3317 = vadd.s32 %v3316, %v3306
    %v3318 = vadd.s32 %v3317, %v3308
    %v3319 = vand.u32 %v3296, 65535
    %v3320 = vshrl.u32 %v3296, 16
    %v3321 = vand.u32 %v3291, 65535
    %v3322 = vshrl.u32 %v3291, 16
    %v3323 = vmul.u32 %v3319, %v3321
    %v3324 = vmul.u32 %v3319, %v3322
    %v3325 = vmul.u32 %v3320, %v3321
    %v3326 = vmul.u32 %v3320, %v3322
    %v3327 = vshll.u32 %v3324, 16
    %v3328 = vshrl.u32 %v3324, 16
    %v3329 = vshll.u32 %v3325, 16
    %v3330 = vshrl.u32 %v3325, 16
    %vm3331 = vc.u32 %v3323, %v3327
    %v3332 = vsel %vm3331, 1, 0
    %v3333 = vadd.s32 %v3323, %v3327
    %v3334 = vadd.s32 %v3326, %v3332
    %vm3335 = vc.u32 %v3333, %v3329
    %v3336 = vsel %vm3335, 1, 0
    %v3337 = vadd.s32 %v3333, %v3329
    %v3338 = vadd.s32 %v3334, %v3336
    %v3339 = vadd.s32 %v3338, %v3328
    %v3340 = vadd.s32 %v3339, %v3330
    %v3341 = vmul.u32 %v3296, %v3287
    %v3342 = vadd.s32 %v3318, %v3337
    %vm3343 = vc.u32 %v3318, %v3337
    %v3344 = vadd.s32 %v3340, 1
    %v3345 = vsel %vm3343, %v3344, %v3340
    %v3346 = vadd.s32 %v3341, %v3345
    %v3347 = vadd.s32 %v3346, 536870912
    %v3348 = vshrl.u32 %v3347, 30
    %v3349 = vshll.u32 %v3348, 30
    %v3350 = vsub.s32 %v3346, %v3349
    %vm3351 = vcmp.lt.s32.totalorder %v3350, 0
    %v3352 = vsub.s32 0, %v3350
    %v3353 = vsel %vm3351, %v3352, %v3350
    %v3354 = vclz %v3353
    %v3355 = vsub.s32 %v3354, 2
    %vm3356 = vcmp.gt.s32.totalorder 0, %v3355
    %v3357 = vsel %vm3356, 0, %v3355
    %v3358 = vsub.s32 32, %v3357
    %v3359 = vshll.u32 %v3350, %v3357
    %v3360 = vshrl.u32 %v3342, %v3358
    %v3361 = vor.u32 %v3359, %v3360
    %v3362 = vsub.s32 4294967266, %v3357
    %v3363 = vadd.s32 %v3362, 127
    %v3364 = vshll.u32 %v3363, 23
    %v3365 = vor.u32 4788187, %v3364
    %v3366 = vand.u32 2147483647, %v3365
    %v3368 = vcvt.s32.f32 %v3361
    %v3369 = vmul.f32 %v3368, %v3366
    %v3370 = vxor.u32 %v3369, 2147483648
    %v3371 = vsel %vm3250, %v3370, %v3369
    %v3372 = vsub.s32 4, %v3348
    %v3373 = vsel %vm3250, %v3372, %v3348
    %v3374 = vsel %vm3249, %v162, %v3371
    %v3375 = vsel %vm3249, 0, %v3373
    %v3376 = vmul.f32 %v3374, %v3374
    %v3377 = vmul.f32 %v3376, -0.001358992
    %v3378 = vadd.f32 %v3377, 0.041655596
    %v3379 = vmul.f32 %v3376, %v3378
    %v3380 = vadd.f32 %v3379, -0.4999988
    %v3381 = vmul.f32 %v3376, %v3380
    %v3382 = vadd.f32 1.0, %v3381
    %v3383 = vmul.f32 %v3374, %v3374
    %v3384 = vmul.f32 %v3383, -0.00019511016
    %v3385 = vadd.f32 %v3384, 0.008332121
    %v3386 = vmul.f32 %v3383, %v3385
    %v3387 = vadd.f32 %v3386, -0.16666654
    %v3388 = vmul.f32 %v3383, %v3387
    %v3389 = vadd.f32 %v3388, 1.0
    %v3390 = vmul.f32 %v3389, %v3374
    %vm3391 = vweird.f32 %v162
    %v3392 = vand.u32 %v3375, 3
    %vm3393 = vcmp.lt.s32.totalorder %v3392, 2
    %vm3394 = vcmp.eq.s32.totalorder %v3392, 0
    %v3395 = vxor.u32 %v3390, 2147483648
    %v3396 = vsel %vm3394, %v3382, %v3395
    %vm3397 = vcmp.eq.s32.totalorder %v3392, 2
    %v3398 = vxor.u32 %v3382, 2147483648
    %v3399 = vsel %vm3397, %v3398, %v3390
    %v3400 = vsel %vm3393, %v3396, %v3399
    %v3401 = vsel %vm3391, nan, %v3400
    %v3402 = vand.u32 2147483647, %v163
    %vm3403 = vcmp.le.f32.partialorder %v3402, 0.7853982
    %vm3404 = vcmp.lt.s32.totalorder %v163, 0
    %v3405 = vand.u32 %v163, 2139095040
    %v3406 = vshrl.u32 %v3405, 23
    %v3407 = vsub.s32 %v3406, 127
    %v3408 = vand.u32 2147483647, %v163
    %v3409 = vand.u32 %v3408, 8388607
    %v3410 = vor.u32 %v3409, 8388608
    %v3411 = vsub.s32 0, %v3410
    %v3412 = vadd.s32 %v3407, 1
    %vm3413 = vcmp.gt.s32.totalorder %v3412, 0
    %v3414 = vsel %vm3413, %v3412, 0
    %v3415 = vshrl.u32 %v3414, 5
    %v3416 = vand.u32 %v3414, 31
    %v3417 = vsub.s32 32, %v3416
    %v3418 = vshrl.u32 683565275, %v3417
    %v3419 = vshll.u32 683565275, %v3416
    %v3420 = vshrl.u32 2475754826, %v3417
    %v3421 = vor.u32 %v3419, %v3420
    %v3422 = vshll.u32 2475754826, %v3416
    %v3423 = vshrl.u32 2131351028, %v3417
    %v3424 = vor.u32 %v3422, %v3423
    %v3425 = vshll.u32 2131351028, %v3416
    %v3426 = vshrl.u32 2102212464, %v3417
    %v3427 = vor.u32 %v3425, %v3426
    %v3428 = vshll.u32 2102212464, %v3416
    %v3429 = vshrl.u32 920167782, %v3417
    %v3430 = vor.u32 %v3428, %v3429
    %v3431 = vshll.u32 920167782, %v3416
    %v3432 = vshrl.u32 1326507024, %v3417
    %v3433 = vor.u32 %v3431, %v3432
    %vm3434 = vcmp.lt.s32.totalorder %v3415, 1
    %vm3435 = vcmp.lt.s32.totalorder %v3415, 2
    %vm3436 = vcmp.lt.s32.totalorder %v3415, 3
    %vm3437 = vcmp.lt.s32.totalorder %v3415, 4
    %v3438 = vsel %vm3434, %v3418, %v3421
    %v3439 = vsel %vm3437, %v3427, 2102212464
    %v3440 = vsel %vm3436, %v3424, %v3439
    %v3441 = vsel %vm3435, %v3438, %v3440
    %v3442 = vsel %vm3434, %v3421, %v3424
    %v3443 = vsel %vm3437, %v3430, 920167782
    %v3444 = vsel %vm3436, %v3427, %v3443
    %v3445 = vsel %vm3435, %v3442, %v3444
    %v3446 = vsel %vm3434, %v3424, %v3427
    %v3447 = vsel %vm3437, %v3433, 1326507024
    %v3448 = vsel %vm3436, %v3430, %v3447
    %v3449 = vsel %vm3435, %v3446, %v3448
    %v3450 = vshll.u32 %v3410, 8
    %v3451 = vand.u32 %v3450, 65535
    %v3452 = vshrl.u32 %v3450, 16
    %v3453 = vand.u32 %v3449, 65535
    %v3454 = vshrl.u32 %v3449, 16
    %v3455 = vmul.u32 %v3451, %v3453
    %v3456 = vmul.u32 %v3451, %v3454
    %v3457 = vmul.u32 %v3452, %v3453
    %v3458 = vmul.u32 %v3452, %v3454
    %v3459 = vshll.u32 %v3456, 16
    %v3460 = vshrl.u32 %v3456, 16
    %v3461 = vshll.u32 %v3457, 16
    %v3462 = vshrl.u32 %v3457, 16
    %vm3463 = vc.u32 %v3455, %v3459
    %v3464 = vsel %vm3463, 1, 0
    %v3465 = vadd.s32 %v3455, %v3459
    %v3466 = vadd.s32 %v3458, %v3464
    %vm3467 = vc.u32 %v3465, %v3461
    %v3468 = vsel %vm3467, 1, 0
    %v3469 = vadd.s32 %v3465, %v3461
    %v3470 = vadd.s32 %v3466, %v3468
    %v3471 = vadd.s32 %v3470, %v3460
    %v3472 = vadd.s32 %v3471, %v3462
    %v3473 = vand.u32 %v3450, 65535
    %v3474 = vshrl.u32 %v3450, 16
    %v3475 = vand.u32 %v3445, 65535
    %v3476 = vshrl.u32 %v3445, 16
    %v3477 = vmul.u32 %v3473, %v3475
    %v3478 = vmul.u32 %v3473, %v3476
    %v3479 = vmul.u32 %v3474, %v3475
    %v3480 = vmul.u32 %v3474, %v3476
    %v3481 = vshll.u32 %v3478, 16
    %v3482 = vshrl.u32 %v3478, 16
    %v3483 = vshll.u32 %v3479, 16
    %v3484 = vshrl.u32 %v3479, 16
    %vm3485 = vc.u32 %v3477, %v3481
    %v3486 = vsel %vm3485, 1, 0
    %v3487 = vadd.s32 %v3477, %v3481
    %v3488 = vadd.s32 %v3480, %v3486
    %vm3489 = vc.u32 %v3487, %v3483
    %v3490 = vsel %vm3489, 1, 0
    %v3491 = vadd.s32 %v3487, %v3483
    %v3492 = vadd.s32 %v3488, %v3490
    %v3493 = vadd.s32 %v3492, %v3482
    %v3494 = vadd.s32 %v3493, %v3484
    %v3495 = vmul.u32 %v3450, %v3441
    %v3496 = vadd.s32 %v3472, %v3491
    %vm3497 = vc.u32 %v3472, %v3491
    %v3498 = vadd.s32 %v3494, 1
    %v3499 = vsel %vm3497, %v3498, %v3494
    %v3500 = vadd.s32 %v3495, %v3499
    %v3501 = vadd.s32 %v3500, 536870912
    %v3502 = vshrl.u32 %v3501, 30
    %v3503 = vshll.u32 %v3502, 30
    %v3504 = vsub.s32 %v3500, %v3503
    %vm3505 = vcmp.lt.s32.totalorder %v3504, 0
    %v3506 = vsub.s32 0, %v3504
    %v3507 = vsel %vm3505, %v3506, %v3504
    %v3508 = vclz %v3507
    %v3509 = vsub.s32 %v3508, 2
    %vm3510 = vcmp.gt.s32.totalorder 0, %v3509
    %v3511 = vsel %vm3510, 0, %v3509
    %v3512 = vsub.s32 32, %v3511
    %v3513 = vshll.u32 %v3504, %v3511
    %v3514 = vshrl.u32 %v3496, %v3512
    %v3515 = vor.u32 %v3513, %v3514
    %v3516 = vsub.s32 4294967266, %v3511
    %v3517 = vadd.s32 %v3516, 127
    %v3518 = vshll.u32 %v3517, 23
    %v3519 = vor.u32 4788187, %v3518
    %v3520 = vand.u32 2147483647, %v3519
    %v3522 = vcvt.s32.f32 %v3515
    %v3523 = vmul.f32 %v3522, %v3520
    %v3524 = vxor.u32 %v3523, 2147483648
    %v3525 = vsel %vm3404, %v3524, %v3523
    %v3526 = vsub.s32 4, %v3502
    %v3527 = vsel %vm3404, %v3526, %v3502
    %v3528 = vsel %vm3403, %v163, %v3525
    %v3529 = vsel %vm3403, 0, %v3527
    %v3530 = vmul.f32 %v3528, %v3528
    %v3531 = vmul.f32 %v3530, -0.001358992
    %v3532 = vadd.f32 %v3531, 0.041655596
    %v3533 = vmul.f32 %v3530, %v3532
    %v3534 = vadd.f32 %v3533, -0.4999988
    %v3535 = vmul.f32 %v3530, %v3534
    %v3536 = vadd.f32 1.0, %v3535
    %v3537 = vmul.f32 %v3528, %v3528
    %v3538 = vmul.f32 %v3537, -0.00019511016
    %v3539 = vadd.f32 %v3538, 0.008332121
    %v3540 = vmul.f32 %v3537, %v3539
    %v3541 = vadd.f32 %v3540, -0.16666654
    %v3542 = vmul.f32 %v3537, %v3541
    %v3543 = vadd.f32 %v3542, 1.0
    %v3544 = vmul.f32 %v3543, %v3528
    %vm3545 = vweird.f32 %v163
    %v3546 = vand.u32 %v3529, 3
    %vm3547 = vcmp.lt.s32.totalorder %v3546, 2
    %vm3548 = vcmp.eq.s32.totalorder %v3546, 0
    %v3549 = vxor.u32 %v3544, 2147483648
    %v3550 = vsel %vm3548, %v3536, %v3549
    %vm3551 = vcmp.eq.s32.totalorder %v3546, 2
    %v3552 = vxor.u32 %v3536, 2147483648
    %v3553 = vsel %vm3551, %v3552, %v3544
    %v3554 = vsel %vm3547, %v3550, %v3553
    %v3555 = vsel %vm3545, nan, %v3554
    %v3556 = vand.u32 2147483647, %v164
    %vm3557 = vcmp.le.f32.partialorder %v3556, 0.7853982
    %vm3558 = vcmp.lt.s32.totalorder %v164, 0
    %v3559 = vand.u32 %v164, 2139095040
    %v3560 = vshrl.u32 %v3559, 23
    %v3561 = vsub.s32 %v3560, 127
    %v3562 = vand.u32 2147483647, %v164
    %v3563 = vand.u32 %v3562, 8388607
    %v3564 = vor.u32 %v3563, 8388608
    %v3565 = vsub.s32 0, %v3564
    %v3566 = vadd.s32 %v3561, 1
    %vm3567 = vcmp.gt.s32.totalorder %v3566, 0
    %v3568 = vsel %vm3567, %v3566, 0
    %v3569 = vshrl.u32 %v3568, 5
    %v3570 = vand.u32 %v3568, 31
    %v3571 = vsub.s32 32, %v3570
    %v3572 = vshrl.u32 683565275, %v3571
    %v3573 = vshll.u32 683565275, %v3570
    %v3574 = vshrl.u32 2475754826, %v3571
    %v3575 = vor.u32 %v3573, %v3574
    %v3576 = vshll.u32 2475754826, %v3570
    %v3577 = vshrl.u32 2131351028, %v3571
    %v3578 = vor.u32 %v3576, %v3577
    %v3579 = vshll.u32 2131351028, %v3570
    %v3580 = vshrl.u32 2102212464, %v3571
    %v3581 = vor.u32 %v3579, %v3580
    %v3582 = vshll.u32 2102212464, %v3570
    %v3583 = vshrl.u32 920167782, %v3571
    %v3584 = vor.u32 %v3582, %v3583
    %v3585 = vshll.u32 920167782, %v3570
    %v3586 = vshrl.u32 1326507024, %v3571
    %v3587 = vor.u32 %v3585, %v3586
    %vm3588 = vcmp.lt.s32.totalorder %v3569, 1
    %vm3589 = vcmp.lt.s32.totalorder %v3569, 2
    %vm3590 = vcmp.lt.s32.totalorder %v3569, 3
    %vm3591 = vcmp.lt.s32.totalorder %v3569, 4
    %v3592 = vsel %vm3588, %v3572, %v3575
    %v3593 = vsel %vm3591, %v3581, 2102212464
    %v3594 = vsel %vm3590, %v3578, %v3593
    %v3595 = vsel %vm3589, %v3592, %v3594
    %v3596 = vsel %vm3588, %v3575, %v3578
    %v3597 = vsel %vm3591, %v3584, 920167782
    %v3598 = vsel %vm3590, %v3581, %v3597
    %v3599 = vsel %vm3589, %v3596, %v3598
    %v3600 = vsel %vm3588, %v3578, %v3581
    %v3601 = vsel %vm3591, %v3587, 1326507024
    %v3602 = vsel %vm3590, %v3584, %v3601
    %v3603 = vsel %vm3589, %v3600, %v3602
    %v3604 = vshll.u32 %v3564, 8
    %v3605 = vand.u32 %v3604, 65535
    %v3606 = vshrl.u32 %v3604, 16
    %v3607 = vand.u32 %v3603, 65535
    %v3608 = vshrl.u32 %v3603, 16
    %v3609 = vmul.u32 %v3605, %v3607
    %v3610 = vmul.u32 %v3605, %v3608
    %v3611 = vmul.u32 %v3606, %v3607
    %v3612 = vmul.u32 %v3606, %v3608
    %v3613 = vshll.u32 %v3610, 16
    %v3614 = vshrl.u32 %v3610, 16
    %v3615 = vshll.u32 %v3611, 16
    %v3616 = vshrl.u32 %v3611, 16
    %vm3617 = vc.u32 %v3609, %v3613
    %v3618 = vsel %vm3617, 1, 0
    %v3619 = vadd.s32 %v3609, %v3613
    %v3620 = vadd.s32 %v3612, %v3618
    %vm3621 = vc.u32 %v3619, %v3615
    %v3622 = vsel %vm3621, 1, 0
    %v3623 = vadd.s32 %v3619, %v3615
    %v3624 = vadd.s32 %v3620, %v3622
    %v3625 = vadd.s32 %v3624, %v3614
    %v3626 = vadd.s32 %v3625, %v3616
    %v3627 = vand.u32 %v3604, 65535
    %v3628 = vshrl.u32 %v3604, 16
    %v3629 = vand.u32 %v3599, 65535
    %v3630 = vshrl.u32 %v3599, 16
    %v3631 = vmul.u32 %v3627, %v3629
    %v3632 = vmul.u32 %v3627, %v3630
    %v3633 = vmul.u32 %v3628, %v3629
    %v3634 = vmul.u32 %v3628, %v3630
    %v3635 = vshll.u32 %v3632, 16
    %v3636 = vshrl.u32 %v3632, 16
    %v3637 = vshll.u32 %v3633, 16
    %v3638 = vshrl.u32 %v3633, 16
    %vm3639 = vc.u32 %v3631, %v3635
    %v3640 = vsel %vm3639, 1, 0
    %v3641 = vadd.s32 %v3631, %v3635
    %v3642 = vadd.s32 %v3634, %v3640
    %vm3643 = vc.u32 %v3641, %v3637
    %v3644 = vsel %vm3643, 1, 0
    %v3645 = vadd.s32 %v3641, %v3637
    %v3646 = vadd.s32 %v3642, %v3644
    %v3647 = vadd.s32 %v3646, %v3636
    %v3648 = vadd.s32 %v3647, %v3638
    %v3649 = vmul.u32 %v3604, %v3595
    %v3650 = vadd.s32 %v3626, %v3645
    %vm3651 = vc.u32 %v3626, %v3645
    %v3652 = vadd.s32 %v3648, 1
    %v3653 = vsel %vm3651, %v3652, %v3648
    %v3654 = vadd.s32 %v3649, %v3653
    %v3655 = vadd.s32 %v3654, 536870912
    %v3656 = vshrl.u32 %v3655, 30
    %v3657 = vshll.u32 %v3656, 30
    %v3658 = vsub.s32 %v3654, %v3657
    %vm3659 = vcmp.lt.s32.totalorder %v3658, 0
    %v3660 = vsub.s32 0, %v3658
    %v3661 = vsel %vm3659, %v3660, %v3658
    %v3662 = vclz %v3661
    %v3663 = vsub.s32 %v3662, 2
    %vm3664 = vcmp.gt.s32.totalorder 0, %v3663
    %v3665 = vsel %vm3664, 0, %v3663
    %v3666 = vsub.s32 32, %v3665
    %v3667 = vshll.u32 %v3658, %v3665
    %v3668 = vshrl.u32 %v3650, %v3666
    %v3669 = vor.u32 %v3667, %v3668
    %v3670 = vsub.s32 4294967266, %v3665
    %v3671 = vadd.s32 %v3670, 127
    %v3672 = vshll.u32 %v3671, 23
    %v3673 = vor.u32 4788187, %v3672
    %v3674 = vand.u32 2147483647, %v3673
    %v3676 = vcvt.s32.f32 %v3669
    %v3677 = vmul.f32 %v3676, %v3674
    %v3678 = vxor.u32 %v3677, 2147483648
    %v3679 = vsel %vm3558, %v3678, %v3677
    %v3680 = vsub.s32 4, %v3656
    %v3681 = vsel %vm3558, %v3680, %v3656
    %v3682 = vsel %vm3557, %v164, %v3679
    %v3683 = vsel %vm3557, 0, %v3681
    %v3684 = vmul.f32 %v3682, %v3682
    %v3685 = vmul.f32 %v3684, -0.001358992
    %v3686 = vadd.f32 %v3685, 0.041655596
    %v3687 = vmul.f32 %v3684, %v3686
    %v3688 = vadd.f32 %v3687, -0.4999988
    %v3689 = vmul.f32 %v3684, %v3688
    %v3690 = vadd.f32 1.0, %v3689
    %v3691 = vmul.f32 %v3682, %v3682
    %v3692 = vmul.f32 %v3691, -0.00019511016
    %v3693 = vadd.f32 %v3692, 0.008332121
    %v3694 = vmul.f32 %v3691, %v3693
    %v3695 = vadd.f32 %v3694, -0.16666654
    %v3696 = vmul.f32 %v3691, %v3695
    %v3697 = vadd.f32 %v3696, 1.0
    %v3698 = vmul.f32 %v3697, %v3682
    %vm3699 = vweird.f32 %v164
    %v3700 = vand.u32 %v3683, 3
    %vm3701 = vcmp.lt.s32.totalorder %v3700, 2
    %vm3702 = vcmp.eq.s32.totalorder %v3700, 0
    %v3703 = vxor.u32 %v3698, 2147483648
    %v3704 = vsel %vm3702, %v3690, %v3703
    %vm3705 = vcmp.eq.s32.totalorder %v3700, 2
    %v3706 = vxor.u32 %v3690, 2147483648
    %v3707 = vsel %vm3705, %v3706, %v3698
    %v3708 = vsel %vm3701, %v3704, %v3707
    %v3709 = vsel %vm3699, nan, %v3708
    %v3710 = vand.u32 2147483647, %v165
    %vm3711 = vcmp.le.f32.partialorder %v3710, 0.7853982
    %vm3712 = vcmp.lt.s32.totalorder %v165, 0
    %v3713 = vand.u32 %v165, 2139095040
    %v3714 = vshrl.u32 %v3713, 23
    %v3715 = vsub.s32 %v3714, 127
    %v3716 = vand.u32 2147483647, %v165
    %v3717 = vand.u32 %v3716, 8388607
    %v3718 = vor.u32 %v3717, 8388608
    %v3719 = vsub.s32 0, %v3718
    %v3720 = vadd.s32 %v3715, 1
    %vm3721 = vcmp.gt.s32.totalorder %v3720, 0
    %v3722 = vsel %vm3721, %v3720, 0
    %v3723 = vshrl.u32 %v3722, 5
    %v3724 = vand.u32 %v3722, 31
    %v3725 = vsub.s32 32, %v3724
    %v3726 = vshrl.u32 683565275, %v3725
    %v3727 = vshll.u32 683565275, %v3724
    %v3728 = vshrl.u32 2475754826, %v3725
    %v3729 = vor.u32 %v3727, %v3728
    %v3730 = vshll.u32 2475754826, %v3724
    %v3731 = vshrl.u32 2131351028, %v3725
    %v3732 = vor.u32 %v3730, %v3731
    %v3733 = vshll.u32 2131351028, %v3724
    %v3734 = vshrl.u32 2102212464, %v3725
    %v3735 = vor.u32 %v3733, %v3734
    %v3736 = vshll.u32 2102212464, %v3724
    %v3737 = vshrl.u32 920167782, %v3725
    %v3738 = vor.u32 %v3736, %v3737
    %v3739 = vshll.u32 920167782, %v3724
    %v3740 = vshrl.u32 1326507024, %v3725
    %v3741 = vor.u32 %v3739, %v3740
    %vm3742 = vcmp.lt.s32.totalorder %v3723, 1
    %vm3743 = vcmp.lt.s32.totalorder %v3723, 2
    %vm3744 = vcmp.lt.s32.totalorder %v3723, 3
    %vm3745 = vcmp.lt.s32.totalorder %v3723, 4
    %v3746 = vsel %vm3742, %v3726, %v3729
    %v3747 = vsel %vm3745, %v3735, 2102212464
    %v3748 = vsel %vm3744, %v3732, %v3747
    %v3749 = vsel %vm3743, %v3746, %v3748
    %v3750 = vsel %vm3742, %v3729, %v3732
    %v3751 = vsel %vm3745, %v3738, 920167782
    %v3752 = vsel %vm3744, %v3735, %v3751
    %v3753 = vsel %vm3743, %v3750, %v3752
    %v3754 = vsel %vm3742, %v3732, %v3735
    %v3755 = vsel %vm3745, %v3741, 1326507024
    %v3756 = vsel %vm3744, %v3738, %v3755
    %v3757 = vsel %vm3743, %v3754, %v3756
    %v3758 = vshll.u32 %v3718, 8
    %v3759 = vand.u32 %v3758, 65535
    %v3760 = vshrl.u32 %v3758, 16
    %v3761 = vand.u32 %v3757, 65535
    %v3762 = vshrl.u32 %v3757, 16
    %v3763 = vmul.u32 %v3759, %v3761
    %v3764 = vmul.u32 %v3759, %v3762
    %v3765 = vmul.u32 %v3760, %v3761
    %v3766 = vmul.u32 %v3760, %v3762
    %v3767 = vshll.u32 %v3764, 16
    %v3768 = vshrl.u32 %v3764, 16
    %v3769 = vshll.u32 %v3765, 16
    %v3770 = vshrl.u32 %v3765, 16
    %vm3771 = vc.u32 %v3763, %v3767
    %v3772 = vsel %vm3771, 1, 0
    %v3773 = vadd.s32 %v3763, %v3767
    %v3774 = vadd.s32 %v3766, %v3772
    %vm3775 = vc.u32 %v3773, %v3769
    %v3776 = vsel %vm3775, 1, 0
    %v3777 = vadd.s32 %v3773, %v3769
    %v3778 = vadd.s32 %v3774, %v3776
    %v3779 = vadd.s32 %v3778, %v3768
    %v3780 = vadd.s32 %v3779, %v3770
    %v3781 = vand.u32 %v3758, 65535
    %v3782 = vshrl.u32 %v3758, 16
    %v3783 = vand.u32 %v3753, 65535
    %v3784 = vshrl.u32 %v3753, 16
    %v3785 = vmul.u32 %v3781, %v3783
    %v3786 = vmul.u32 %v3781, %v3784
    %v3787 = vmul.u32 %v3782, %v3783
    %v3788 = vmul.u32 %v3782, %v3784
    %v3789 = vshll.u32 %v3786, 16
    %v3790 = vshrl.u32 %v3786, 16
    %v3791 = vshll.u32 %v3787, 16
    %v3792 = vshrl.u32 %v3787, 16
    %vm3793 = vc.u32 %v3785, %v3789
    %v3794 = vsel %vm3793, 1, 0
    %v3795 = vadd.s32 %v3785, %v3789
    %v3796 = vadd.s32 %v3788, %v3794
    %vm3797 = vc.u32 %v3795, %v3791
    %v3798 = vsel %vm3797, 1, 0
    %v3799 = vadd.s32 %v3795, %v3791
    %v3800 = vadd.s32 %v3796, %v3798
    %v3801 = vadd.s32 %v3800, %v3790
    %v3802 = vadd.s32 %v3801, %v3792
    %v3803 = vmul.u32 %v3758, %v3749
    %v3804 = vadd.s32 %v3780, %v3799
    %vm3805 = vc.u32 %v3780, %v3799
    %v3806 = vadd.s32 %v3802, 1
    %v3807 = vsel %vm3805, %v3806, %v3802
    %v3808 = vadd.s32 %v3803, %v3807
    %v3809 = vadd.s32 %v3808, 536870912
    %v3810 = vshrl.u32 %v3809, 30
    %v3811 = vshll.u32 %v3810, 30
    %v3812 = vsub.s32 %v3808, %v3811
    %vm3813 = vcmp.lt.s32.totalorder %v3812, 0
    %v3814 = vsub.s32 0, %v3812
    %v3815 = vsel %vm3813, %v3814, %v3812
    %v3816 = vclz %v3815
    %v3817 = vsub.s32 %v3816, 2
    %vm3818 = vcmp.gt.s32.totalorder 0, %v3817
    %v3819 = vsel %vm3818, 0, %v3817
    %v3820 = vsub.s32 32, %v3819
    %v3821 = vshll.u32 %v3812, %v3819
    %v3822 = vshrl.u32 %v3804, %v3820
    %v3823 = vor.u32 %v3821, %v3822
    %v3824 = vsub.s32 4294967266, %v3819
    %v3825 = vadd.s32 %v3824, 127
    %v3826 = vshll.u32 %v3825, 23
    %v3827 = vor.u32 4788187, %v3826
    %v3828 = vand.u32 2147483647, %v3827
    %v3830 = vcvt.s32.f32 %v3823
    %v3831 = vmul.f32 %v3830, %v3828
    %v3832 = vxor.u32 %v3831, 2147483648
    %v3833 = vsel %vm3712, %v3832, %v3831
    %v3834 = vsub.s32 4, %v3810
    %v3835 = vsel %vm3712, %v3834, %v3810
    %v3836 = vsel %vm3711, %v165, %v3833
    %v3837 = vsel %vm3711, 0, %v3835
    %v3838 = vmul.f32 %v3836, %v3836
    %v3839 = vmul.f32 %v3838, -0.001358992
    %v3840 = vadd.f32 %v3839, 0.041655596
    %v3841 = vmul.f32 %v3838, %v3840
    %v3842 = vadd.f32 %v3841, -0.4999988
    %v3843 = vmul.f32 %v3838, %v3842
    %v3844 = vadd.f32 1.0, %v3843
    %v3845 = vmul.f32 %v3836, %v3836
    %v3846 = vmul.f32 %v3845, -0.00019511016
    %v3847 = vadd.f32 %v3846, 0.008332121
    %v3848 = vmul.f32 %v3845, %v3847
    %v3849 = vadd.f32 %v3848, -0.16666654
    %v3850 = vmul.f32 %v3845, %v3849
    %v3851 = vadd.f32 %v3850, 1.0
    %v3852 = vmul.f32 %v3851, %v3836
    %vm3853 = vweird.f32 %v165
    %v3854 = vand.u32 %v3837, 3
    %vm3855 = vcmp.lt.s32.totalorder %v3854, 2
    %vm3856 = vcmp.eq.s32.totalorder %v3854, 0
    %v3857 = vxor.u32 %v3852, 2147483648
    %v3858 = vsel %vm3856, %v3844, %v3857
    %vm3859 = vcmp.eq.s32.totalorder %v3854, 2
    %v3860 = vxor.u32 %v3844, 2147483648
    %v3861 = vsel %vm3859, %v3860, %v3852
    %v3862 = vsel %vm3855, %v3858, %v3861
    %v3863 = vsel %vm3853, nan, %v3862
    %v3864 = vand.u32 2147483647, %v166
    %vm3865 = vcmp.le.f32.partialorder %v3864, 0.7853982
    %vm3866 = vcmp.lt.s32.totalorder %v166, 0
    %v3867 = vand.u32 %v166, 2139095040
    %v3868 = vshrl.u32 %v3867, 23
    %v3869 = vsub.s32 %v3868, 127
    %v3870 = vand.u32 2147483647, %v166
    %v3871 = vand.u32 %v3870, 8388607
    %v3872 = vor.u32 %v3871, 8388608
    %v3873 = vsub.s32 0, %v3872
    %v3874 = vadd.s32 %v3869, 1
    %vm3875 = vcmp.gt.s32.totalorder %v3874, 0
    %v3876 = vsel %vm3875, %v3874, 0
    %v3877 = vshrl.u32 %v3876, 5
    %v3878 = vand.u32 %v3876, 31
    %v3879 = vsub.s32 32, %v3878
    %v3880 = vshrl.u32 683565275, %v3879
    %v3881 = vshll.u32 683565275, %v3878
    %v3882 = vshrl.u32 2475754826, %v3879
    %v3883 = vor.u32 %v3881, %v3882
    %v3884 = vshll.u32 2475754826, %v3878
    %v3885 = vshrl.u32 2131351028, %v3879
    %v3886 = vor.u32 %v3884, %v3885
    %v3887 = vshll.u32 2131351028, %v3878
    %v3888 = vshrl.u32 2102212464, %v3879
    %v3889 = vor.u32 %v3887, %v3888
    %v3890 = vshll.u32 2102212464, %v3878
    %v3891 = vshrl.u32 920167782, %v3879
    %v3892 = vor.u32 %v3890, %v3891
    %v3893 = vshll.u32 920167782, %v3878
    %v3894 = vshrl.u32 1326507024, %v3879
    %v3895 = vor.u32 %v3893, %v3894
    %vm3896 = vcmp.lt.s32.totalorder %v3877, 1
    %vm3897 = vcmp.lt.s32.totalorder %v3877, 2
    %vm3898 = vcmp.lt.s32.totalorder %v3877, 3
    %vm3899 = vcmp.lt.s32.totalorder %v3877, 4
    %v3900 = vsel %vm3896, %v3880, %v3883
    %v3901 = vsel %vm3899, %v3889, 2102212464
    %v3902 = vsel %vm3898, %v3886, %v3901
    %v3903 = vsel %vm3897, %v3900, %v3902
    %v3904 = vsel %vm3896, %v3883, %v3886
    %v3905 = vsel %vm3899, %v3892, 920167782
    %v3906 = vsel %vm3898, %v3889, %v3905
    %v3907 = vsel %vm3897, %v3904, %v3906
    %v3908 = vsel %vm3896, %v3886, %v3889
    %v3909 = vsel %vm3899, %v3895, 1326507024
    %v3910 = vsel %vm3898, %v3892, %v3909
    %v3911 = vsel %vm3897, %v3908, %v3910
    %v3912 = vshll.u32 %v3872, 8
    %v3913 = vand.u32 %v3912, 65535
    %v3914 = vshrl.u32 %v3912, 16
    %v3915 = vand.u32 %v3911, 65535
    %v3916 = vshrl.u32 %v3911, 16
    %v3917 = vmul.u32 %v3913, %v3915
    %v3918 = vmul.u32 %v3913, %v3916
    %v3919 = vmul.u32 %v3914, %v3915
    %v3920 = vmul.u32 %v3914, %v3916
    %v3921 = vshll.u32 %v3918, 16
    %v3922 = vshrl.u32 %v3918, 16
    %v3923 = vshll.u32 %v3919, 16
    %v3924 = vshrl.u32 %v3919, 16
    %vm3925 = vc.u32 %v3917, %v3921
    %v3926 = vsel %vm3925, 1, 0
    %v3927 = vadd.s32 %v3917, %v3921
    %v3928 = vadd.s32 %v3920, %v3926
    %vm3929 = vc.u32 %v3927, %v3923
    %v3930 = vsel %vm3929, 1, 0
    %v3931 = vadd.s32 %v3927, %v3923
    %v3932 = vadd.s32 %v3928, %v3930
    %v3933 = vadd.s32 %v3932, %v3922
    %v3934 = vadd.s32 %v3933, %v3924
    %v3935 = vand.u32 %v3912, 65535
    %v3936 = vshrl.u32 %v3912, 16
    %v3937 = vand.u32 %v3907, 65535
    %v3938 = vshrl.u32 %v3907, 16
    %v3939 = vmul.u32 %v3935, %v3937
    %v3940 = vmul.u32 %v3935, %v3938
    %v3941 = vmul.u32 %v3936, %v3937
    %v3942 = vmul.u32 %v3936, %v3938
    %v3943 = vshll.u32 %v3940, 16
    %v3944 = vshrl.u32 %v3940, 16
    %v3945 = vshll.u32 %v3941, 16
    %v3946 = vshrl.u32 %v3941, 16
    %vm3947 = vc.u32 %v3939, %v3943
    %v3948 = vsel %vm3947, 1, 0
    %v3949 = vadd.s32 %v3939, %v3943
    %v3950 = vadd.s32 %v3942, %v3948
    %vm3951 = vc.u32 %v3949, %v3945
    %v3952 = vsel %vm3951, 1, 0
    %v3953 = vadd.s32 %v3949, %v3945
    %v3954 = vadd.s32 %v3950, %v3952
    %v3955 = vadd.s32 %v3954, %v3944
    %v3956 = vadd.s32 %v3955, %v3946
    %v3957 = vmul.u32 %v3912, %v3903
    %v3958 = vadd.s32 %v3934, %v3953
    %vm3959 = vc.u32 %v3934, %v3953
    %v3960 = vadd.s32 %v3956, 1
    %v3961 = vsel %vm3959, %v3960, %v3956
    %v3962 = vadd.s32 %v3957, %v3961
    %v3963 = vadd.s32 %v3962, 536870912
    %v3964 = vshrl.u32 %v3963, 30
    %v3965 = vshll.u32 %v3964, 30
    %v3966 = vsub.s32 %v3962, %v3965
    %vm3967 = vcmp.lt.s32.totalorder %v3966, 0
    %v3968 = vsub.s32 0, %v3966
    %v3969 = vsel %vm3967, %v3968, %v3966
    %v3970 = vclz %v3969
    %v3971 = vsub.s32 %v3970, 2
    %vm3972 = vcmp.gt.s32.totalorder 0, %v3971
    %v3973 = vsel %vm3972, 0, %v3971
    %v3974 = vsub.s32 32, %v3973
    %v3975 = vshll.u32 %v3966, %v3973
    %v3976 = vshrl.u32 %v3958, %v3974
    %v3977 = vor.u32 %v3975, %v3976
    %v3978 = vsub.s32 4294967266, %v3973
    %v3979 = vadd.s32 %v3978, 127
    %v3980 = vshll.u32 %v3979, 23
    %v3981 = vor.u32 4788187, %v3980
    %v3982 = vand.u32 2147483647, %v3981
    %v3984 = vcvt.s32.f32 %v3977
    %v3985 = vmul.f32 %v3984, %v3982
    %v3986 = vxor.u32 %v3985, 2147483648
    %v3987 = vsel %vm3866, %v3986, %v3985
    %v3988 = vsub.s32 4, %v3964
    %v3989 = vsel %vm3866, %v3988, %v3964
    %v3990 = vsel %vm3865, %v166, %v3987
    %v3991 = vsel %vm3865, 0, %v3989
    %v3992 = vmul.f32 %v3990, %v3990
    %v3993 = vmul.f32 %v3992, -0.001358992
    %v3994 = vadd.f32 %v3993, 0.041655596
    %v3995 = vmul.f32 %v3992, %v3994
    %v3996 = vadd.f32 %v3995, -0.4999988
    %v3997 = vmul.f32 %v3992, %v3996
    %v3998 = vadd.f32 1.0, %v3997
    %v3999 = vmul.f32 %v3990, %v3990
    %v4000 = vmul.f32 %v3999, -0.00019511016
    %v4001 = vadd.f32 %v4000, 0.008332121
    %v4002 = vmul.f32 %v3999, %v4001
    %v4003 = vadd.f32 %v4002, -0.16666654
    %v4004 = vmul.f32 %v3999, %v4003
    %v4005 = vadd.f32 %v4004, 1.0
    %v4006 = vmul.f32 %v4005, %v3990
    %vm4007 = vweird.f32 %v166
    %v4008 = vand.u32 %v3991, 3
    %vm4009 = vcmp.lt.s32.totalorder %v4008, 2
    %vm4010 = vcmp.eq.s32.totalorder %v4008, 0
    %v4011 = vxor.u32 %v4006, 2147483648
    %v4012 = vsel %vm4010, %v3998, %v4011
    %vm4013 = vcmp.eq.s32.totalorder %v4008, 2
    %v4014 = vxor.u32 %v3998, 2147483648
    %v4015 = vsel %vm4013, %v4014, %v4006
    %v4016 = vsel %vm4009, %v4012, %v4015
    %v4017 = vsel %vm4007, nan, %v4016
    %v4018 = vand.u32 2147483647, %v167
    %vm4019 = vcmp.le.f32.partialorder %v4018, 0.7853982
    %vm4020 = vcmp.lt.s32.totalorder %v167, 0
    %v4021 = vand.u32 %v167, 2139095040
    %v4022 = vshrl.u32 %v4021, 23
    %v4023 = vsub.s32 %v4022, 127
    %v4024 = vand.u32 2147483647, %v167
    %v4025 = vand.u32 %v4024, 8388607
    %v4026 = vor.u32 %v4025, 8388608
    %v4027 = vsub.s32 0, %v4026
    %v4028 = vadd.s32 %v4023, 1
    %vm4029 = vcmp.gt.s32.totalorder %v4028, 0
    %v4030 = vsel %vm4029, %v4028, 0
    %v4031 = vshrl.u32 %v4030, 5
    %v4032 = vand.u32 %v4030, 31
    %v4033 = vsub.s32 32, %v4032
    %v4034 = vshrl.u32 683565275, %v4033
    %v4035 = vshll.u32 683565275, %v4032
    %v4036 = vshrl.u32 2475754826, %v4033
    %v4037 = vor.u32 %v4035, %v4036
    %v4038 = vshll.u32 2475754826, %v4032
    %v4039 = vshrl.u32 2131351028, %v4033
    %v4040 = vor.u32 %v4038, %v4039
    %v4041 = vshll.u32 2131351028, %v4032
    %v4042 = vshrl.u32 2102212464, %v4033
    %v4043 = vor.u32 %v4041, %v4042
    %v4044 = vshll.u32 2102212464, %v4032
    %v4045 = vshrl.u32 920167782, %v4033
    %v4046 = vor.u32 %v4044, %v4045
    %v4047 = vshll.u32 920167782, %v4032
    %v4048 = vshrl.u32 1326507024, %v4033
    %v4049 = vor.u32 %v4047, %v4048
    %vm4050 = vcmp.lt.s32.totalorder %v4031, 1
    %vm4051 = vcmp.lt.s32.totalorder %v4031, 2
    %vm4052 = vcmp.lt.s32.totalorder %v4031, 3
    %vm4053 = vcmp.lt.s32.totalorder %v4031, 4
    %v4054 = vsel %vm4050, %v4034, %v4037
    %v4055 = vsel %vm4053, %v4043, 2102212464
    %v4056 = vsel %vm4052, %v4040, %v4055
    %v4057 = vsel %vm4051, %v4054, %v4056
    %v4058 = vsel %vm4050, %v4037, %v4040
    %v4059 = vsel %vm4053, %v4046, 920167782
    %v4060 = vsel %vm4052, %v4043, %v4059
    %v4061 = vsel %vm4051, %v4058, %v4060
    %v4062 = vsel %vm4050, %v4040, %v4043
    %v4063 = vsel %vm4053, %v4049, 1326507024
    %v4064 = vsel %vm4052, %v4046, %v4063
    %v4065 = vsel %vm4051, %v4062, %v4064
    %v4066 = vshll.u32 %v4026, 8
    %v4067 = vand.u32 %v4066, 65535
    %v4068 = vshrl.u32 %v4066, 16
    %v4069 = vand.u32 %v4065, 65535
    %v4070 = vshrl.u32 %v4065, 16
    %v4071 = vmul.u32 %v4067, %v4069
    %v4072 = vmul.u32 %v4067, %v4070
    %v4073 = vmul.u32 %v4068, %v4069
    %v4074 = vmul.u32 %v4068, %v4070
    %v4075 = vshll.u32 %v4072, 16
    %v4076 = vshrl.u32 %v4072, 16
    %v4077 = vshll.u32 %v4073, 16
    %v4078 = vshrl.u32 %v4073, 16
    %vm4079 = vc.u32 %v4071, %v4075
    %v4080 = vsel %vm4079, 1, 0
    %v4081 = vadd.s32 %v4071, %v4075
    %v4082 = vadd.s32 %v4074, %v4080
    %vm4083 = vc.u32 %v4081, %v4077
    %v4084 = vsel %vm4083, 1, 0
    %v4085 = vadd.s32 %v4081, %v4077
    %v4086 = vadd.s32 %v4082, %v4084
    %v4087 = vadd.s32 %v4086, %v4076
    %v4088 = vadd.s32 %v4087, %v4078
    %v4089 = vand.u32 %v4066, 65535
    %v4090 = vshrl.u32 %v4066, 16
    %v4091 = vand.u32 %v4061, 65535
    %v4092 = vshrl.u32 %v4061, 16
    %v4093 = vmul.u32 %v4089, %v4091
    %v4094 = vmul.u32 %v4089, %v4092
    %v4095 = vmul.u32 %v4090, %v4091
    %v4096 = vmul.u32 %v4090, %v4092
    %v4097 = vshll.u32 %v4094, 16
    %v4098 = vshrl.u32 %v4094, 16
    %v4099 = vshll.u32 %v4095, 16
    %v4100 = vshrl.u32 %v4095, 16
    %vm4101 = vc.u32 %v4093, %v4097
    %v4102 = vsel %vm4101, 1, 0
    %v4103 = vadd.s32 %v4093, %v4097
    %v4104 = vadd.s32 %v4096, %v4102
    %vm4105 = vc.u32 %v4103, %v4099
    %v4106 = vsel %vm4105, 1, 0
    %v4107 = vadd.s32 %v4103, %v4099
    %v4108 = vadd.s32 %v4104, %v4106
    %v4109 = vadd.s32 %v4108, %v4098
    %v4110 = vadd.s32 %v4109, %v4100
    %v4111 = vmul.u32 %v4066, %v4057
    %v4112 = vadd.s32 %v4088, %v4107
    %vm4113 = vc.u32 %v4088, %v4107
    %v4114 = vadd.s32 %v4110, 1
    %v4115 = vsel %vm4113, %v4114, %v4110
    %v4116 = vadd.s32 %v4111, %v4115
    %v4117 = vadd.s32 %v4116, 536870912
    %v4118 = vshrl.u32 %v4117, 30
    %v4119 = vshll.u32 %v4118, 30
    %v4120 = vsub.s32 %v4116, %v4119
    %vm4121 = vcmp.lt.s32.totalorder %v4120, 0
    %v4122 = vsub.s32 0, %v4120
    %v4123 = vsel %vm4121, %v4122, %v4120
    %v4124 = vclz %v4123
    %v4125 = vsub.s32 %v4124, 2
    %vm4126 = vcmp.gt.s32.totalorder 0, %v4125
    %v4127 = vsel %vm4126, 0, %v4125
    %v4128 = vsub.s32 32, %v4127
    %v4129 = vshll.u32 %v4120, %v4127
    %v4130 = vshrl.u32 %v4112, %v4128
    %v4131 = vor.u32 %v4129, %v4130
    %v4132 = vsub.s32 4294967266, %v4127
    %v4133 = vadd.s32 %v4132, 127
    %v4134 = vshll.u32 %v4133, 23
    %v4135 = vor.u32 4788187, %v4134
    %v4136 = vand.u32 2147483647, %v4135
    %v4138 = vcvt.s32.f32 %v4131
    %v4139 = vmul.f32 %v4138, %v4136
    %v4140 = vxor.u32 %v4139, 2147483648
    %v4141 = vsel %vm4020, %v4140, %v4139
    %v4142 = vsub.s32 4, %v4118
    %v4143 = vsel %vm4020, %v4142, %v4118
    %v4144 = vsel %vm4019, %v167, %v4141
    %v4145 = vsel %vm4019, 0, %v4143
    %v4146 = vmul.f32 %v4144, %v4144
    %v4147 = vmul.f32 %v4146, -0.001358992
    %v4148 = vadd.f32 %v4147, 0.041655596
    %v4149 = vmul.f32 %v4146, %v4148
    %v4150 = vadd.f32 %v4149, -0.4999988
    %v4151 = vmul.f32 %v4146, %v4150
    %v4152 = vadd.f32 1.0, %v4151
    %v4153 = vmul.f32 %v4144, %v4144
    %v4154 = vmul.f32 %v4153, -0.00019511016
    %v4155 = vadd.f32 %v4154, 0.008332121
    %v4156 = vmul.f32 %v4153, %v4155
    %v4157 = vadd.f32 %v4156, -0.16666654
    %v4158 = vmul.f32 %v4153, %v4157
    %v4159 = vadd.f32 %v4158, 1.0
    %v4160 = vmul.f32 %v4159, %v4144
    %vm4161 = vweird.f32 %v167
    %v4162 = vand.u32 %v4145, 3
    %vm4163 = vcmp.lt.s32.totalorder %v4162, 2
    %vm4164 = vcmp.eq.s32.totalorder %v4162, 0
    %v4165 = vxor.u32 %v4160, 2147483648
    %v4166 = vsel %vm4164, %v4152, %v4165
    %vm4167 = vcmp.eq.s32.totalorder %v4162, 2
    %v4168 = vxor.u32 %v4152, 2147483648
    %v4169 = vsel %vm4167, %v4168, %v4160
    %v4170 = vsel %vm4163, %v4166, %v4169
    %v4171 = vsel %vm4161, nan, %v4170
    %v4172 = vsub.f32 %v321, 1.0
    %v4173 = vsub.f32 %v475, 1.0
    %v4174 = vsub.f32 %v629, 1.0
    %v4175 = vsub.f32 %v783, 1.0
    %v4176 = vsub.f32 %v937, 1.0
    %v4177 = vsub.f32 %v1091, 1.0
    %v4178 = vsub.f32 %v1245, 1.0
    %v4179 = vsub.f32 %v1399, 1.0
    %v4180 = vsub.f32 %v1553, 1.0
    %v4181 = vsub.f32 %v1707, 1.0
    %v4182 = vsub.f32 %v1861, 1.0
    %v4183 = vsub.f32 %v2015, 1.0
    %v4184 = vsub.f32 %v2169, 1.0
    %v4185 = vsub.f32 %v2323, 1.0
    %v4186 = vsub.f32 %v2477, 1.0
    %v4187 = vsub.f32 %v2631, 1.0
    %v4188 = vsub.f32 %v2785, 1.0
    %v4189 = vsub.f32 %v2939, 1.0
    %v4190 = vsub.f32 %v3093, 1.0
    %v4191 = vsub.f32 %v3247, 1.0
    %v4192 = vsub.f32 %v3401, 1.0
    %v4193 = vsub.f32 %v3555, 1.0
    %v4194 = vsub.f32 %v3709, 1.0
    %v4195 = vsub.f32 %v3863, 1.0
    %v4196 = vsub.f32 %v4017, 1.0
    %v4197 = vsub.f32 %v4171, 1.0
    %v4198 = vstv %s29
    %v4199 = vmul.f32 %v4198, %v4172
    %v4200 = vmul.f32 %v4198, %v4173
    %v4201 = vmul.f32 %v4198, %v4174
    %v4202 = vmul.f32 %v4198, %v4175
    %v4203 = vmul.f32 %v4198, %v4176
    %v4204 = vmul.f32 %v4198, %v4177
    %v4205 = vmul.f32 %v4198, %v4178
    %v4206 = vmul.f32 %v4198, %v4179
    %v4207 = vmul.f32 %v4198, %v4180
    %v4208 = vmul.f32 %v4198, %v4181
    %v4209 = vmul.f32 %v4198, %v4182
    %v4210 = vmul.f32 %v4198, %v4183
    %v4211 = vmul.f32 %v4198, %v4184
    %v4212 = vmul.f32 %v4198, %v4185
    %v4213 = vmul.f32 %v4198, %v4186
    %v4214 = vmul.f32 %v4198, %v4187
    %v4215 = vmul.f32 %v4198, %v4188
    %v4216 = vmul.f32 %v4198, %v4189
    %v4217 = vmul.f32 %v4198, %v4190
    %v4218 = vmul.f32 %v4198, %v4191
    %v4219 = vmul.f32 %v4198, %v4192
    %v4220 = vmul.f32 %v4198, %v4193
    %v4221 = vmul.f32 %v4198, %v4194
    %v4222 = vmul.f32 %v4198, %v4195
    %v4223 = vmul.f32 %v4198, %v4196
    %v4224 = vmul.f32 %v4198, %v4197
    %v4225 = vmul.f32 %v4199, 1.442695
    %v4226 = vpow.pop %v4225
    %v4227 = vmul.f32 %v4200, 1.442695
    %v4228 = vpow.pop %v4227
    %v4229 = vmul.f32 %v4201, 1.442695
    %v4230 = vpow.pop %v4229
    %v4231 = vmul.f32 %v4202, 1.442695
    %v4232 = vpow.pop %v4231
    %v4233 = vmul.f32 %v4203, 1.442695
    %v4234 = vpow.pop %v4233
    %v4235 = vmul.f32 %v4204, 1.442695
    %v4236 = vpow.pop %v4235
    %v4237 = vmul.f32 %v4205, 1.442695
    %v4238 = vpow.pop %v4237
    %v4239 = vmul.f32 %v4206, 1.442695
    %v4240 = vpow.pop %v4239
    %v4241 = vmul.f32 %v4207, 1.442695
    %v4242 = vpow.pop %v4241
    %v4243 = vmul.f32 %v4208, 1.442695
    %v4244 = vpow.pop %v4243
    %v4245 = vmul.f32 %v4209, 1.442695
    %v4246 = vpow.pop %v4245
    %v4247 = vmul.f32 %v4210, 1.442695
    %v4248 = vpow.pop %v4247
    %v4249 = vmul.f32 %v4211, 1.442695
    %v4250 = vpow.pop %v4249
    %v4251 = vmul.f32 %v4212, 1.442695
    %v4252 = vpow.pop %v4251
    %v4253 = vmul.f32 %v4213, 1.442695
    %v4254 = vpow.pop %v4253
    %v4255 = vmul.f32 %v4214, 1.442695
    %v4256 = vpow.pop %v4255
    %v4257 = vmul.f32 %v4215, 1.442695
    %v4258 = vpow.pop %v4257
    %v4259 = vmul.f32 %v4216, 1.442695
    %v4260 = vpow.pop %v4259
    %v4261 = vmul.f32 %v4217, 1.442695
    %v4262 = vpow.pop %v4261
    %v4263 = vmul.f32 %v4218, 1.442695
    %v4264 = vpow.pop %v4263
    %v4265 = vmul.f32 %v4219, 1.442695
    %v4266 = vpow.pop %v4265
    %v4267 = vmul.f32 %v4220, 1.442695
    %v4268 = vpow.pop %v4267
    %v4269 = vmul.f32 %v4221, 1.442695
    %v4270 = vpow.pop %v4269
    %v4271 = vmul.f32 %v4222, 1.442695
    %v4272 = vpow.pop %v4271
    %v4273 = vmul.f32 %v4223, 1.442695
    %v4274 = vpow.pop %v4273
    %v4275 = vmul.f32 %v4224, 1.442695
    %v4276 = vpow.pop %v4275
    %v4277 = vstv %s30
    %v4278 = vmul.f32 %v4277, %v4226
    %v4279 = vmul.f32 %v4277, %v4228
    %v4280 = vmul.f32 %v4277, %v4230
    %v4281 = vmul.f32 %v4277, %v4232
    %v4282 = vmul.f32 %v4277, %v4234
    %v4283 = vmul.f32 %v4277, %v4236
    %v4284 = vmul.f32 %v4277, %v4238
    %v4285 = vmul.f32 %v4277, %v4240
    %v4286 = vmul.f32 %v4277, %v4242
    %v4287 = vmul.f32 %v4277, %v4244
    %v4288 = vmul.f32 %v4277, %v4246
    %v4289 = vmul.f32 %v4277, %v4248
    %v4290 = vmul.f32 %v4277, %v4250
    %v4291 = vmul.f32 %v4277, %v4252
    %v4292 = vmul.f32 %v4277, %v4254
    %v4293 = vmul.f32 %v4277, %v4256
    %v4294 = vmul.f32 %v4277, %v4258
    %v4295 = vmul.f32 %v4277, %v4260
    %v4296 = vmul.f32 %v4277, %v4262
    %v4297 = vmul.f32 %v4277, %v4264
    %v4298 = vmul.f32 %v4277, %v4266
    %v4299 = vmul.f32 %v4277, %v4268
    %v4300 = vmul.f32 %v4277, %v4270
    %v4301 = vmul.f32 %v4277, %v4272
    %v4302 = vmul.f32 %v4277, %v4274
    %v4303 = vmul.f32 %v4277, %v4276
    %4304 = vst [vmem:[#allocation5] sm:$0xff] %v4278
    %4305 = vst [vmem:[#allocation5 + $0x8] sm:$0xff] %v4279
    %4306 = vst [vmem:[#allocation5 + $0x10] sm:$0xff] %v4280
    %4307 = vst [vmem:[#allocation5 + $0x18] sm:$0xff] %v4281
    %4308 = vst [vmem:[#allocation5 + $0x20] sm:$0xff] %v4282
    %4309 = vst [vmem:[#allocation5 + $0x28] sm:$0xff] %v4283
    %4310 = vst [vmem:[#allocation5 + $0x30] sm:$0xff] %v4284
    %4311 = vst [vmem:[#allocation5 + $0x38] sm:$0xff] %v4285
    %4312 = vst [vmem:[#allocation5 + $0x40] sm:$0xff] %v4286
    %4313 = vst [vmem:[#allocation5 + $0x48] sm:$0xff] %v4287
    %4314 = vst [vmem:[#allocation5 + $0x50] sm:$0xff] %v4288
    %4315 = vst [vmem:[#allocation5 + $0x58] sm:$0xff] %v4289
    %4316 = vst [vmem:[#allocation5 + $0x60] sm:$0xff] %v4290
    %4317 = vst [vmem:[#allocation5 + $0x68] sm:$0xff] %v4291
    %4318 = vst [vmem:[#allocation5 + $0x70] sm:$0xff] %v4292
    %4319 = vst [vmem:[#allocation5 + $0x78] sm:$0xff] %v4293
    %4320 = vst [vmem:[#allocation5 + $0x80] sm:$0xff] %v4294
    %4321 = vst [vmem:[#allocation5 + $0x88] sm:$0xff] %v4295
    %4322 = vst [vmem:[#allocation5 + $0x90] sm:$0xff] %v4296
    %4323 = vst [vmem:[#allocation5 + $0x98] sm:$0xff] %v4297
    %4324 = vst [vmem:[#allocation5 + $0xa0] sm:$0xff] %v4298
    %4325 = vst [vmem:[#allocation5 + $0xa8] sm:$0xff] %v4299
    %4326 = vst [vmem:[#allocation5 + $0xb0] sm:$0xff] %v4300
    %4327 = vst [vmem:[#allocation5 + $0xb8] sm:$0xff] %v4301
    %4328 = vst [vmem:[#allocation5 + $0xc0] sm:$0xff] %v4302
    %4329 = vst [vmem:[#allocation5 + $0xc8] sm:$0xff] %v4303
    // Predicated region
    $region18: #{tpu_custom_call.1} parent=1 // pred_check
      _
    $region19: #{tpu_custom_call.1} parent=1 // pred_check_branch
      %4331 = sbr.rel (0) target = $region21
    $region20: #{tpu_custom_call.1} parent=1 // pred_region
      %4333 = vsyncadd [#allocation3], 0
      %s4334 = sshll.u32 [#allocation5], 4
      %s4335 = int_to_ptr.vmem [resolvable:$true] %s4334
      %s4336 = sshll.u32 %s3, 4
      %s4337 = int_to_ptr.hbm [resolvable:$true] %s4336
      %4342 = dma.vmem_to_hbm [thread:$0]  %s4335, 3328, %s4337, [#allocation3], 256, 256, 16
    $region21: #{tpu_custom_call.1} parent=1 // pred_fallthru
      _
    // Predicated region
    $region22: #{tpu_custom_call.1} parent=1 // pred_check
      _
    $region23: #{tpu_custom_call.1} parent=1 // pred_check_branch
      %4344 = sbr.rel (0) target = $region25
    $region24: #{tpu_custom_call.1} parent=1 // pred_region
      %4346 = dma.done [#allocation3], 3328
    $region25: #{tpu_custom_call.1} parent=1 // pred_fallthru
      _
    %4347 = vsyncpa [#allocation3], 1
    %4348 = vsyncpa [#allocation4], 1

</llo_original>
